<compile_context>
chip_gen: v6e
topology: v6e:2x2x1
jax: 0.10.0
libtpu: 0.0.40
codegen_flags: <defaults>
</compile_context>

<pallas_src>
import jax
import jax.numpy as jnp
from jax import lax
from jax.experimental import pallas as pl
from jax.experimental.pallas import tpu as pltpu


# ---------------------------------------------------------------------------
# Pallas kernel: one (batch, row-tile) grid step.
#   t_ref  : (TH, Wo+1, 4Cin)   phase-packed padded rows [TH*i, TH*i+TH)
#   h_ref  : (1,  Wo+1, 4Cin)   halo row TH*(i+1)
#   w1_ref : (4, 4Cin, 2Cout)   folded conv4x4 taps; side-conv weights in lanes [Cout:)
#   b1_ref : (1, Cout)          conv1 bias with BN1 folded
#   w2_ref : (Cout, Cout)       1x1 conv with BN2 folded
#   b2_ref : (1, Cout)          BN2 folded bias
#   out_ref: (TH*Wo, Cout)
#   acc_ref: (TH*Wo, 2Cout) f32 accumulator scratch (main | side lanes)
# ---------------------------------------------------------------------------
def _unet_down_kernel(t_ref, h_ref, w1_ref, b1_ref, w2_ref, b2_ref,
                      out_ref, acc_ref):
    th, wo1, c4 = t_ref.shape
    wo = wo1 - 1
    cout = out_ref.shape[-1]
    hw = th * wo
    body = (th - 1) * wo

    def mm(x2d, w):
        return jnp.dot(x2d, w, preferred_element_type=jnp.float32)

    # ty = 0 taps (tx in {0,1}): straight column windows of t_ref, full range.
    acc_ref[...] = (mm(t_ref[:, 0:wo, :].reshape(hw, c4), w1_ref[0]) +
                    mm(t_ref[:, 1:wo1, :].reshape(hw, c4), w1_ref[1]))

    # ty = 1 taps: rows 1..TH-1 of t_ref feed output rows 0..TH-2 ...
    if th > 1:
        acc_ref[0:body, :] += mm(t_ref[1:th, 0:wo, :].reshape(body, c4), w1_ref[2])
        acc_ref[0:body, :] += mm(t_ref[1:th, 1:wo1, :].reshape(body, c4), w1_ref[3])
    # ... and the halo row feeds the last output row.
    acc_ref[body:hw, :] += mm(h_ref[0, 0:wo, :], w1_ref[2])
    acc_ref[body:hw, :] += mm(h_ref[0, 1:wo1, :], w1_ref[3])

    acc = acc_ref[...]
    h1 = acc[:, 0:cout] + b1_ref[...]
    h1 = jnp.maximum(h1, 0.1 * h1)                              # LeakyReLU(0.1)
    h2 = mm(h1.astype(w2_ref.dtype), w2_ref[...]) + b2_ref[...]
    h2 = jnp.maximum(h2, 0.1 * h2)                              # LeakyReLU(0.1)
    out_ref[...] = (h2 + acc[:, cout:2 * cout]).astype(out_ref.dtype)


# ---------------------------------------------------------------------------
# VMEM budgeting / tiling helpers (generation-aware).
# ---------------------------------------------------------------------------
def _vmem_capacity_bytes():
    try:
        cap = getattr(pltpu.get_tpu_info(), "vmem_capacity_bytes", None)
        if cap:
            return int(cap)
    except Exception:
        pass
    return 64 * 1024 * 1024          # conservative default (v7x per-TC VMEM)


def _pick_row_tile(n, ho, wo, c4, cout, cdt_bytes, out_bytes, budget_bytes,
                   min_grid_steps=4):
    """Largest row tile (multiple of 8 dividing Ho, or Ho) whose per-step VMEM
    footprint (double-buffered tile/halo/out, weights, accumulator, live
    temporaries) fits the budget, preferring >= min_grid_steps grid steps."""
    def step_bytes(th):
        t_tile = th * (wo + 1) * c4 * cdt_bytes
        halo = (wo + 1) * c4 * cdt_bytes
        wts = (4 * c4 * 2 * cout + cout * cout) * cdt_bytes + 2 * cout * 4
        out_t = th * wo * cout * out_bytes
        acc = th * wo * 2 * cout * 4
        live = th * wo * c4 * cdt_bytes + 3 * th * wo * cout * 4
        return 2 * (t_tile + halo + out_t) + 2 * wts + acc + live

    cands = [t for t in range(8, ho, 8) if ho % t == 0] + [ho]
    fits = [t for t in cands if step_bytes(t) <= budget_bytes]
    if not fits:
        return min(cands)
    pref = [t for t in fits if n * (ho // t) >= min_grid_steps]
    return max(pref) if pref else max(fits)


# ---------------------------------------------------------------------------
# pallas_call wrapper.
# ---------------------------------------------------------------------------
def _down_block_call(t, w1f, b1, w2, b2, th, out_dtype, vmem_limit_bytes,
                     single_buffer_weights):
    n, ho1, wo1, c4 = t.shape
    ho, wo = ho1 - 1, wo1 - 1
    cout = w2.shape[-1]

    # Loop-invariant operands -> one VMEM buffer instead of a double buffer.
    wkw = dict(pipeline_mode=pl.Buffered(1)) if single_buffer_weights else {}
    in_specs = [
        # main row tile of T
        pl.BlockSpec((None, th, wo1, c4), lambda b, i: (b, i, 0, 0)),
        # 1-row halo (phase row TH*(i+1)) of the same tensor
        pl.BlockSpec((None, 1, wo1, c4), lambda b, i: (b, (i + 1) * th, 0, 0)),
        # weights / biases (constant index maps)
        pl.BlockSpec((4, c4, 2 * cout), lambda b, i: (0, 0, 0), **wkw),
        pl.BlockSpec((1, cout), lambda b, i: (0, 0), **wkw),
        pl.BlockSpec((cout, cout), lambda b, i: (0, 0), **wkw),
        pl.BlockSpec((1, cout), lambda b, i: (0, 0), **wkw),
    ]
    return pl.pallas_call(
        _unet_down_kernel,
        out_shape=jax.ShapeDtypeStruct((n, ho * wo, cout), out_dtype),
        grid_spec=pltpu.PrefetchScalarGridSpec(
            num_scalar_prefetch=0,
            grid=(n, ho // th),
            in_specs=in_specs,
            out_specs=pl.BlockSpec((None, th * wo, cout), lambda b, i: (b, i, 0)),
            scratch_shapes=[pltpu.VMEM((th * wo, 2 * cout), jnp.float32)],
        ),
        compiler_params=pltpu.CompilerParams(
            dimension_semantics=("parallel", "parallel"),
            vmem_limit_bytes=vmem_limit_bytes),
    )(t, t, w1f, b1, w2, b2)


_WEIGHT_SINGLE_BUFFER = [True]   # flipped off if pl.Buffered(1) is unsupported


# ---------------------------------------------------------------------------
# Parameter init (deterministic, synthetic) and the full forward.
# ---------------------------------------------------------------------------
def init_params(key, in_size, out_size):
    ks = jax.random.split(key, 12)
    f32 = jnp.float32
    return {
        'w1': 0.1 * jax.random.normal(ks[0], (4, 4, in_size, out_size), f32),  # HWIO
        'b1': 0.1 * jax.random.normal(ks[1], (out_size,), f32),
        'bn1_gamma': jax.random.uniform(ks[2], (out_size,), f32, 0.5, 1.5),
        'bn1_beta': 0.1 * jax.random.normal(ks[3], (out_size,), f32),
        'bn1_mean': 0.1 * jax.random.normal(ks[4], (out_size,), f32),
        'bn1_var': jax.random.uniform(ks[5], (out_size,), f32, 0.5, 1.5),
        'w2': 0.1 * jax.random.normal(ks[6], (out_size, out_size), f32),        # (Cin, Cout)
        'bn2_gamma': jax.random.uniform(ks[7], (out_size,), f32, 0.5, 1.5),
        'bn2_beta': 0.1 * jax.random.normal(ks[8], (out_size,), f32),
        'bn2_mean': 0.1 * jax.random.normal(ks[9], (out_size,), f32),
        'bn2_var': jax.random.uniform(ks[10], (out_size,), f32, 0.5, 1.5),
        'ws': 0.1 * jax.random.normal(ks[11], (2, 2, in_size, out_size), f32),  # HWIO
    }


def unet_down_forward(params, x_nchw, row_tile=None,
                      compute_dtype=jnp.bfloat16, out_dtype=jnp.float32):
    eps = 1e-5
    n, cin, h, w = x_nchw.shape
    assert h % 2 == 0 and w % 2 == 0
    ho, wo = h // 2, w // 2
    cout = params['w1'].shape[-1]
    c4 = 4 * cin

    # NCHW -> NHWC, 1px pad, phase packing (space-to-depth of the padded input),
    # channel order (py, px, cin).  Cast FIRST so this layout pass moves bf16.
    # TODO(synk): if the surrounding model keeps NHWC activations, the boundary
    #             transposes here and on the output could be dropped entirely.
    x = jnp.transpose(x_nchw.astype(compute_dtype), (0, 2, 3, 1))
    xp = jnp.pad(x, ((0, 0), (1, 1), (1, 1), (0, 0)))
    t = xp.reshape(n, ho + 1, 2, wo + 1, 2, cin)
    t = jnp.transpose(t, (0, 1, 3, 2, 4, 5)).reshape(n, ho + 1, wo + 1, c4)

    # Fold eval-mode BatchNorm into the convs (f32 math, cast at the end).
    s1 = params['bn1_gamma'] * lax.rsqrt(params['bn1_var'] + eps)
    w1 = params['w1'] * s1
    b1 = (params['b1'] - params['bn1_mean']) * s1 + params['bn1_beta']
    s2 = params['bn2_gamma'] * lax.rsqrt(params['bn2_var'] + eps)
    w2 = params['w2'] * s2
    b2 = params['bn2_beta'] - params['bn2_mean'] * s2

    # Conv4x4 -> tap-major (ty,tx) x (py,px,cin) im2col layout; then append the
    # side-conv weights into Cout extra output columns: side tap (dy,dx) hits
    # the (py=1-dy, px=1-dx) Cin block of the same phase-packed tap.
    w1p = w1.reshape(2, 2, 2, 2, cin, cout)                  # (ty,py,tx,px,ci,co)
    w1p = jnp.transpose(w1p, (0, 2, 1, 3, 4, 5)).reshape(4, 4, cin, cout)
    wsp = params['ws'].reshape(4, cin, cout)                 # tap-major (dy,dx)
    w1f = jnp.zeros((4, 4, cin, 2 * cout), jnp.float32)
    w1f = w1f.at[:, :, :, :cout].set(w1p)
    for k, (ty, tx) in enumerate(((0, 0), (0, 1), (1, 0), (1, 1))):
        w1f = w1f.at[k, (1 - ty) * 2 + (1 - tx), :, cout:].set(wsp[k])
    w1f = w1f.reshape(4, c4, 2 * cout)

    cap = _vmem_capacity_bytes()
    if row_tile is None:
        row_tile = _pick_row_tile(n, ho, wo, c4, cout,
                                  jnp.dtype(compute_dtype).itemsize,
                                  jnp.dtype(out_dtype).itemsize,
                                  budget_bytes=(2 * cap) // 5)
    assert ho % row_tile == 0, (ho, row_tile)
    vmem_limit = (3 * cap) // 4

    args = (t,
            w1f.astype(compute_dtype),
            b1[None, :].astype(jnp.float32),
            w2.astype(compute_dtype),
            b2[None, :].astype(jnp.float32))

    if _WEIGHT_SINGLE_BUFFER[0]:
        try:
            y = _down_block_call(*args, row_tile, out_dtype, vmem_limit, True)
        except Exception:            # pl.Buffered(1) unsupported on this build
            _WEIGHT_SINGLE_BUFFER[0] = False
            y = _down_block_call(*args, row_tile, out_dtype, vmem_limit, False)
    else:
        y = _down_block_call(*args, row_tile, out_dtype, vmem_limit, False)

    y = y.reshape(n, ho, wo, cout)
    return jnp.transpose(y, (0, 3, 1, 2))                    # back to NCHW


# pure-JAX reference (f32) for verification
def unet_down_reference(params, x_nchw):
    eps = 1e-5
    x = jnp.transpose(x_nchw, (0, 2, 3, 1)).astype(jnp.float32)
    y = lax.conv_general_dilated(x, params['w1'], (2, 2), [(1, 1), (1, 1)],
                                 dimension_numbers=('NHWC', 'HWIO', 'NHWC'))
    y = y + params['b1']
    y = (y - params['bn1_mean']) * lax.rsqrt(params['bn1_var'] + eps) \
        * params['bn1_gamma'] + params['bn1_beta']
    y = jnp.where(y > 0, y, 0.1 * y)
    y = jnp.einsum('nhwc,cd->nhwd', y, params['w2'])
    y = (y - params['bn2_mean']) * lax.rsqrt(params['bn2_var'] + eps) \
        * params['bn2_gamma'] + params['bn2_beta']
    y = jnp.where(y > 0, y, 0.1 * y)
    side = lax.conv_general_dilated(x, params['ws'], (2, 2), 'VALID',
                                    dimension_numbers=('NHWC', 'HWIO', 'NHWC'))
    out = y + side
    return jnp.transpose(out, (0, 3, 1, 2))


if __name__ == "__main__":
    key = jax.random.PRNGKey(0)
    in_size, out_size = 4, 8
    N, H, W = 2, 32, 32                      # Ho=Wo=16 -> auto tile TH=8 (4 grid steps)
    kx, kp = jax.random.split(key, 2)
    x = jax.random.normal(kx, (N, in_size, H, W), jnp.float32)
    params = init_params(kp, in_size, out_size)

    ref = jax.block_until_ready(unet_down_reference(params, x))

    # f32 path checks the tiling / halo / phase-packing / side-fusion logic
    # exactly; bf16 path checks the MXU compute path with operand-rounding slack.
    cases = [
        (None, jnp.float32, 1e-4),
        (16, jnp.float32, 1e-4),     # one row tile per image (halo = last T row)
        (None, jnp.bfloat16, 1e-1),
        (8, jnp.bfloat16, 1e-1),
    ]
    for rt, dt, tol in cases:
        out = jax.block_until_ready(
            unet_down_forward(params, x, row_tile=rt, compute_dtype=dt))
        assert out.shape == (N, out_size, H // 2, W // 2), out.shape
        err = float(jnp.max(jnp.abs(out - ref)))
        assert err < tol, f"row_tile={rt} dtype={dt}: max abs err {err}"

    print("KERNEL_OK")
</pallas_src>

<mosaic_0001>
module attributes {stable_mosaic.version = 11 : i64} {
  func.func @_unet_down_kernel(%arg0: i32, %arg1: i32, %arg2: memref<1x8x17x16xf32, #tpu.memory_space<vmem>>, %arg3: memref<1x1x17x16xf32, #tpu.memory_space<vmem>>, %arg4: memref<4x16x16xf32, #tpu.memory_space<vmem>>, %arg5: memref<1x8xf32, #tpu.memory_space<vmem>>, %arg6: memref<8x8xf32, #tpu.memory_space<vmem>>, %arg7: memref<1x8xf32, #tpu.memory_space<vmem>>, %arg8: memref<1x128x8xf32, #tpu.memory_space<vmem>>, %arg9: memref<128x16xf32, #tpu.memory_space<vmem>>) attributes {dimension_semantics = [#tpu.dimension_semantics<parallel>, #tpu.dimension_semantics<parallel>], iteration_bounds = array<i64: 2, 2>, scalar_prefetch = 0 : i64, scratch_operands = 1 : i64, tpu.core_type = #tpu.core_type<tc>, window_params = [{transform_indices = @transform_0, window_bounds = array<i64: 1, 8, 17, 16>}, {transform_indices = @transform_1, window_bounds = array<i64: 1, 1, 17, 16>}, {pipeline_mode = #tpu.pipeline_mode<synchronous>, transform_indices = @transform_2, window_bounds = array<i64: 4, 16, 16>}, {pipeline_mode = #tpu.pipeline_mode<synchronous>, transform_indices = @transform_3, window_bounds = array<i64: 1, 8>}, {pipeline_mode = #tpu.pipeline_mode<synchronous>, transform_indices = @transform_4, window_bounds = array<i64: 8, 8>}, {pipeline_mode = #tpu.pipeline_mode<synchronous>, transform_indices = @transform_5, window_bounds = array<i64: 1, 8>}, {transform_indices = @transform_6, window_bounds = array<i64: 1, 128, 8>}]} {
    %c0 = arith.constant 0 : index
    %c0_0 = arith.constant 0 : index
    %c0_1 = arith.constant 0 : index
    %c0_2 = arith.constant 0 : index
    %0 = vector.load %arg2[%c0, %c0_0, %c0_1, %c0_2] : memref<1x8x17x16xf32, #tpu.memory_space<vmem>>, vector<1x8x16x16xf32>
    %1 = vector.shape_cast %0 : vector<1x8x16x16xf32> to vector<8x16x16xf32>
    %2 = vector.shape_cast %1 : vector<8x16x16xf32> to vector<128x16xf32>
    %c0_3 = arith.constant 0 : index
    %c0_4 = arith.constant 0 : index
    %c0_5 = arith.constant 0 : index
    %3 = vector.load %arg4[%c0_3, %c0_4, %c0_5] : memref<4x16x16xf32, #tpu.memory_space<vmem>>, vector<1x16x16xf32>
    %4 = vector.shape_cast %3 : vector<1x16x16xf32> to vector<16x16xf32>
    %cst = arith.constant dense<0.000000e+00> : vector<128x16xf32>
    %5 = tpu.matmul %2, %4, %cst {dimension_numbers = #tpu.dot_dimension_numbers<[1], [0], [0], [1], [0, 0, 1, 1], [], []>} : vector<128x16xf32>, vector<16x16xf32>, vector<128x16xf32> -> vector<128x16xf32>
    %c0_6 = arith.constant 0 : index
    %c0_7 = arith.constant 0 : index
    %c1 = arith.constant 1 : index
    %c0_8 = arith.constant 0 : index
    %6 = vector.load %arg2[%c0_6, %c0_7, %c1, %c0_8] : memref<1x8x17x16xf32, #tpu.memory_space<vmem>>, vector<1x8x16x16xf32>
    %7 = vector.shape_cast %6 : vector<1x8x16x16xf32> to vector<8x16x16xf32>
    %8 = vector.shape_cast %7 : vector<8x16x16xf32> to vector<128x16xf32>
    %c1_9 = arith.constant 1 : index
    %c0_10 = arith.constant 0 : index
    %c0_11 = arith.constant 0 : index
    %9 = vector.load %arg4[%c1_9, %c0_10, %c0_11] : memref<4x16x16xf32, #tpu.memory_space<vmem>>, vector<1x16x16xf32>
    %10 = vector.shape_cast %9 : vector<1x16x16xf32> to vector<16x16xf32>
    %cst_12 = arith.constant dense<0.000000e+00> : vector<128x16xf32>
    %11 = tpu.matmul %8, %10, %cst_12 {dimension_numbers = #tpu.dot_dimension_numbers<[1], [0], [0], [1], [0, 0, 1, 1], [], []>} : vector<128x16xf32>, vector<16x16xf32>, vector<128x16xf32> -> vector<128x16xf32>
    %12 = arith.addf %5, %11 : vector<128x16xf32>
    %c0_13 = arith.constant 0 : index
    %c0_14 = arith.constant 0 : index
    %13 = vector.load %arg9[%c0_13, %c0_14] : memref<128x16xf32, #tpu.memory_space<vmem>>, vector<128x16xf32>
    tpu.vector_store %arg9[%c0_13, %c0_14], %12 {strides = array<i32>} : memref<128x16xf32, #tpu.memory_space<vmem>>, vector<128x16xf32>,
    %c0_15 = arith.constant 0 : index
    %c0_16 = arith.constant 0 : index
    %14 = vector.load %arg9[%c0_15, %c0_16] : memref<128x16xf32, #tpu.memory_space<vmem>>, vector<112x16xf32>
    %c0_17 = arith.constant 0 : index
    %c1_18 = arith.constant 1 : index
    %c0_19 = arith.constant 0 : index
    %c0_20 = arith.constant 0 : index
    %15 = vector.load %arg2[%c0_17, %c1_18, %c0_19, %c0_20] : memref<1x8x17x16xf32, #tpu.memory_space<vmem>>, vector<1x7x16x16xf32>
    %16 = vector.shape_cast %15 : vector<1x7x16x16xf32> to vector<7x16x16xf32>
    %17 = vector.shape_cast %16 : vector<7x16x16xf32> to vector<112x16xf32>
    %c2 = arith.constant 2 : index
    %c0_21 = arith.constant 0 : index
    %c0_22 = arith.constant 0 : index
    %18 = vector.load %arg4[%c2, %c0_21, %c0_22] : memref<4x16x16xf32, #tpu.memory_space<vmem>>, vector<1x16x16xf32>
    %19 = vector.shape_cast %18 : vector<1x16x16xf32> to vector<16x16xf32>
    %cst_23 = arith.constant dense<0.000000e+00> : vector<112x16xf32>
    %20 = tpu.matmul %17, %19, %cst_23 {dimension_numbers = #tpu.dot_dimension_numbers<[1], [0], [0], [1], [0, 0, 1, 1], [], []>} : vector<112x16xf32>, vector<16x16xf32>, vector<112x16xf32> -> vector<112x16xf32>
    %21 = arith.addf %14, %20 : vector<112x16xf32>
    %c0_24 = arith.constant 0 : index
    %c0_25 = arith.constant 0 : index
    %22 = vector.load %arg9[%c0_24, %c0_25] : memref<128x16xf32, #tpu.memory_space<vmem>>, vector<112x16xf32>
    tpu.vector_store %arg9[%c0_24, %c0_25], %21 {strides = array<i32>} : memref<128x16xf32, #tpu.memory_space<vmem>>, vector<112x16xf32>,
    %c0_26 = arith.constant 0 : index
    %c0_27 = arith.constant 0 : index
    %23 = vector.load %arg9[%c0_26, %c0_27] : memref<128x16xf32, #tpu.memory_space<vmem>>, vector<112x16xf32>
    %c0_28 = arith.constant 0 : index
    %c1_29 = arith.constant 1 : index
    %c1_30 = arith.constant 1 : index
    %c0_31 = arith.constant 0 : index
    %24 = vector.load %arg2[%c0_28, %c1_29, %c1_30, %c0_31] : memref<1x8x17x16xf32, #tpu.memory_space<vmem>>, vector<1x7x16x16xf32>
    %25 = vector.shape_cast %24 : vector<1x7x16x16xf32> to vector<7x16x16xf32>
    %26 = vector.shape_cast %25 : vector<7x16x16xf32> to vector<112x16xf32>
    %c3 = arith.constant 3 : index
    %c0_32 = arith.constant 0 : index
    %c0_33 = arith.constant 0 : index
    %27 = vector.load %arg4[%c3, %c0_32, %c0_33] : memref<4x16x16xf32, #tpu.memory_space<vmem>>, vector<1x16x16xf32>
    %28 = vector.shape_cast %27 : vector<1x16x16xf32> to vector<16x16xf32>
    %cst_34 = arith.constant dense<0.000000e+00> : vector<112x16xf32>
    %29 = tpu.matmul %26, %28, %cst_34 {dimension_numbers = #tpu.dot_dimension_numbers<[1], [0], [0], [1], [0, 0, 1, 1], [], []>} : vector<112x16xf32>, vector<16x16xf32>, vector<112x16xf32> -> vector<112x16xf32>
    %30 = arith.addf %23, %29 : vector<112x16xf32>
    %c0_35 = arith.constant 0 : index
    %c0_36 = arith.constant 0 : index
    %31 = vector.load %arg9[%c0_35, %c0_36] : memref<128x16xf32, #tpu.memory_space<vmem>>, vector<112x16xf32>
    tpu.vector_store %arg9[%c0_35, %c0_36], %30 {strides = array<i32>} : memref<128x16xf32, #tpu.memory_space<vmem>>, vector<112x16xf32>,
    %c112 = arith.constant 112 : index
    %c0_37 = arith.constant 0 : index
    %32 = vector.load %arg9[%c112, %c0_37] : memref<128x16xf32, #tpu.memory_space<vmem>>, vector<16x16xf32>
    %c0_38 = arith.constant 0 : index
    %c0_39 = arith.constant 0 : index
    %c0_40 = arith.constant 0 : index
    %c0_41 = arith.constant 0 : index
    %33 = vector.load %arg3[%c0_38, %c0_39, %c0_40, %c0_41] : memref<1x1x17x16xf32, #tpu.memory_space<vmem>>, vector<1x1x16x16xf32>
    %34 = vector.shape_cast %33 : vector<1x1x16x16xf32> to vector<16x16xf32>
    %c2_42 = arith.constant 2 : index
    %c0_43 = arith.constant 0 : index
    %c0_44 = arith.constant 0 : index
    %35 = vector.load %arg4[%c2_42, %c0_43, %c0_44] : memref<4x16x16xf32, #tpu.memory_space<vmem>>, vector<1x16x16xf32>
    %36 = vector.shape_cast %35 : vector<1x16x16xf32> to vector<16x16xf32>
    %cst_45 = arith.constant dense<0.000000e+00> : vector<16x16xf32>
    %37 = tpu.matmul %34, %36, %cst_45 {dimension_numbers = #tpu.dot_dimension_numbers<[1], [0], [0], [1], [0, 0, 1, 1], [], []>} : vector<16x16xf32>, vector<16x16xf32>, vector<16x16xf32> -> vector<16x16xf32>
    %38 = arith.addf %32, %37 : vector<16x16xf32>
    %c112_46 = arith.constant 112 : index
    %c0_47 = arith.constant 0 : index
    %39 = vector.load %arg9[%c112_46, %c0_47] : memref<128x16xf32, #tpu.memory_space<vmem>>, vector<16x16xf32>
    tpu.vector_store %arg9[%c112_46, %c0_47], %38 {strides = array<i32>} : memref<128x16xf32, #tpu.memory_space<vmem>>, vector<16x16xf32>,
    %c112_48 = arith.constant 112 : index
    %c0_49 = arith.constant 0 : index
    %40 = vector.load %arg9[%c112_48, %c0_49] : memref<128x16xf32, #tpu.memory_space<vmem>>, vector<16x16xf32>
    %c0_50 = arith.constant 0 : index
    %c0_51 = arith.constant 0 : index
    %c1_52 = arith.constant 1 : index
    %c0_53 = arith.constant 0 : index
    %41 = vector.load %arg3[%c0_50, %c0_51, %c1_52, %c0_53] : memref<1x1x17x16xf32, #tpu.memory_space<vmem>>, vector<1x1x16x16xf32>
    %42 = vector.shape_cast %41 : vector<1x1x16x16xf32> to vector<16x16xf32>
    %c3_54 = arith.constant 3 : index
    %c0_55 = arith.constant 0 : index
    %c0_56 = arith.constant 0 : index
    %43 = vector.load %arg4[%c3_54, %c0_55, %c0_56] : memref<4x16x16xf32, #tpu.memory_space<vmem>>, vector<1x16x16xf32>
    %44 = vector.shape_cast %43 : vector<1x16x16xf32> to vector<16x16xf32>
    %cst_57 = arith.constant dense<0.000000e+00> : vector<16x16xf32>
    %45 = tpu.matmul %42, %44, %cst_57 {dimension_numbers = #tpu.dot_dimension_numbers<[1], [0], [0], [1], [0, 0, 1, 1], [], []>} : vector<16x16xf32>, vector<16x16xf32>, vector<16x16xf32> -> vector<16x16xf32>
    %46 = arith.addf %40, %45 : vector<16x16xf32>
    %c112_58 = arith.constant 112 : index
    %c0_59 = arith.constant 0 : index
    %47 = vector.load %arg9[%c112_58, %c0_59] : memref<128x16xf32, #tpu.memory_space<vmem>>, vector<16x16xf32>
    tpu.vector_store %arg9[%c112_58, %c0_59], %46 {strides = array<i32>} : memref<128x16xf32, #tpu.memory_space<vmem>>, vector<16x16xf32>,
    %c0_60 = arith.constant 0 : index
    %c0_61 = arith.constant 0 : index
    %48 = vector.load %arg9[%c0_60, %c0_61] : memref<128x16xf32, #tpu.memory_space<vmem>>, vector<128x16xf32>
    %49 = vector.extract_strided_slice %48 {offsets = [0, 0], sizes = [128, 8], strides = [1, 1]} : vector<128x16xf32> to vector<128x8xf32>
    %c0_62 = arith.constant 0 : index
    %c0_63 = arith.constant 0 : index
    %50 = vector.load %arg5[%c0_62, %c0_63] : memref<1x8xf32, #tpu.memory_space<vmem>>, vector<1x8xf32>
    %51 = vector.broadcast %50 : vector<1x8xf32> to vector<128x8xf32>
    %52 = arith.addf %49, %51 : vector<128x8xf32>
    %cst_64 = arith.constant 1.000000e-01 : f32
    %53 = vector.broadcast %cst_64 : f32 to vector<128x8xf32>
    %54 = arith.mulf %53, %52 : vector<128x8xf32>
    %55 = arith.maximumf %52, %54 : vector<128x8xf32>
    %c0_65 = arith.constant 0 : index
    %c0_66 = arith.constant 0 : index
    %56 = vector.load %arg6[%c0_65, %c0_66] : memref<8x8xf32, #tpu.memory_space<vmem>>, vector<8x8xf32>
    %cst_67 = arith.constant dense<0.000000e+00> : vector<128x8xf32>
    %57 = tpu.matmul %55, %56, %cst_67 {dimension_numbers = #tpu.dot_dimension_numbers<[1], [0], [0], [1], [0, 0, 1, 1], [], []>} : vector<128x8xf32>, vector<8x8xf32>, vector<128x8xf32> -> vector<128x8xf32>
    %c0_68 = arith.constant 0 : index
    %c0_69 = arith.constant 0 : index
    %58 = vector.load %arg7[%c0_68, %c0_69] : memref<1x8xf32, #tpu.memory_space<vmem>>, vector<1x8xf32>
    %59 = vector.broadcast %58 : vector<1x8xf32> to vector<128x8xf32>
    %60 = arith.addf %57, %59 : vector<128x8xf32>
    %cst_70 = arith.constant 1.000000e-01 : f32
    %61 = vector.broadcast %cst_70 : f32 to vector<128x8xf32>
    %62 = arith.mulf %61, %60 : vector<128x8xf32>
    %63 = arith.maximumf %60, %62 : vector<128x8xf32>
    %64 = vector.extract_strided_slice %48 {offsets = [0, 8], sizes = [128, 8], strides = [1, 1]} : vector<128x16xf32> to vector<128x8xf32>
    %65 = arith.addf %63, %64 : vector<128x8xf32>
    %c0_71 = arith.constant 0 : index
    %c0_72 = arith.constant 0 : index
    %c0_73 = arith.constant 0 : index
    %66 = vector.load %arg8[%c0_71, %c0_72, %c0_73] : memref<1x128x8xf32, #tpu.memory_space<vmem>>, vector<1x128x8xf32>
    %67 = vector.shape_cast %66 : vector<1x128x8xf32> to vector<128x8xf32>
    %68 = vector.shape_cast %65 : vector<128x8xf32> to vector<1x128x8xf32>
    tpu.vector_store %arg8[%c0_71, %c0_72, %c0_73], %68 {strides = array<i32>} : memref<1x128x8xf32, #tpu.memory_space<vmem>>, vector<1x128x8xf32>,
    return
  }
  func.func @transform_0(%arg0: i32, %arg1: i32) -> (i32, i32, i32, i32) {
    %c0_i32 = arith.constant 0 : i32
    %c0_i32_0 = arith.constant 0 : i32
    %c0_i32_1 = arith.constant 0 : i32
    return %arg0, %arg1, %c0_i32, %c0_i32_0 : i32, i32, i32, i32
  }
  func.func @transform_1(%arg0: i32, %arg1: i32) -> (i32, i32, i32, i32) {
    %c1_i32 = arith.constant 1 : i32
    %0 = arith.addi %arg1, %c1_i32 : i32
    %c8_i32 = arith.constant 8 : i32
    %1 = arith.muli %0, %c8_i32 : i32
    %c0_i32 = arith.constant 0 : i32
    %c0_i32_0 = arith.constant 0 : i32
    %c0_i32_1 = arith.constant 0 : i32
    return %arg0, %1, %c0_i32, %c0_i32_0 : i32, i32, i32, i32
  }
  func.func @transform_2(%arg0: i32, %arg1: i32) -> (i32, i32, i32) {
    %c0_i32 = arith.constant 0 : i32
    %c0_i32_0 = arith.constant 0 : i32
    %c0_i32_1 = arith.constant 0 : i32
    %c0_i32_2 = arith.constant 0 : i32
    return %c0_i32, %c0_i32_0, %c0_i32_1 : i32, i32, i32
  }
  func.func @transform_3(%arg0: i32, %arg1: i32) -> (i32, i32) {
    %c0_i32 = arith.constant 0 : i32
    %c0_i32_0 = arith.constant 0 : i32
    %c0_i32_1 = arith.constant 0 : i32
    return %c0_i32, %c0_i32_0 : i32, i32
  }
  func.func @transform_4(%arg0: i32, %arg1: i32) -> (i32, i32) {
    %c0_i32 = arith.constant 0 : i32
    %c0_i32_0 = arith.constant 0 : i32
    %c0_i32_1 = arith.constant 0 : i32
    return %c0_i32, %c0_i32_0 : i32, i32
  }
  func.func @transform_5(%arg0: i32, %arg1: i32) -> (i32, i32) {
    %c0_i32 = arith.constant 0 : i32
    %c0_i32_0 = arith.constant 0 : i32
    %c0_i32_1 = arith.constant 0 : i32
    return %c0_i32, %c0_i32_0 : i32, i32
  }
  func.func @transform_6(%arg0: i32, %arg1: i32) -> (i32, i32, i32) {
    %c0_i32 = arith.constant 0 : i32
    %c0_i32_0 = arith.constant 0 : i32
    return %arg0, %arg1, %c0_i32 : i32, i32, i32
  }
}

module attributes {stable_mosaic.version = 11 : i64} {
  func.func @_unet_down_kernel(%arg0: i32, %arg1: i32, %arg2: memref<1x8x17x16xf32, #tpu.memory_space<vmem>>, %arg3: memref<1x1x17x16xf32, #tpu.memory_space<vmem>>, %arg4: memref<4x16x16xf32, #tpu.memory_space<vmem>>, %arg5: memref<1x8xf32, #tpu.memory_space<vmem>>, %arg6: memref<8x8xf32, #tpu.memory_space<vmem>>, %arg7: memref<1x8xf32, #tpu.memory_space<vmem>>, %arg8: memref<1x128x8xf32, #tpu.memory_space<vmem>>, %arg9: memref<128x16xf32, #tpu.memory_space<vmem>>) attributes {dimension_semantics = [#tpu.dimension_semantics<parallel>, #tpu.dimension_semantics<parallel>], iteration_bounds = array<i64: 2, 2>, scalar_prefetch = 0 : i64, scratch_operands = 1 : i64, tpu.core_type = #tpu.core_type<tc>, window_params = [{transform_indices = @transform_0, window_bounds = array<i64: 1, 8, 17, 16>}, {transform_indices = @transform_1, window_bounds = array<i64: 1, 1, 17, 16>}, {pipeline_mode = #tpu.pipeline_mode<synchronous>, transform_indices = @transform_2, window_bounds = array<i64: 4, 16, 16>}, {pipeline_mode = #tpu.pipeline_mode<synchronous>, transform_indices = @transform_3, window_bounds = array<i64: 1, 8>}, {pipeline_mode = #tpu.pipeline_mode<synchronous>, transform_indices = @transform_4, window_bounds = array<i64: 8, 8>}, {pipeline_mode = #tpu.pipeline_mode<synchronous>, transform_indices = @transform_5, window_bounds = array<i64: 1, 8>}, {transform_indices = @transform_6, window_bounds = array<i64: 1, 128, 8>}]} {
    %c0 = arith.constant 0 : index
    %c0_0 = arith.constant 0 : index
    %c0_1 = arith.constant 0 : index
    %c0_2 = arith.constant 0 : index
    %0 = vector.load %arg2[%c0, %c0_0, %c0_1, %c0_2] : memref<1x8x17x16xf32, #tpu.memory_space<vmem>>, vector<1x8x16x16xf32>
    %1 = vector.shape_cast %0 : vector<1x8x16x16xf32> to vector<8x16x16xf32>
    %2 = vector.shape_cast %1 : vector<8x16x16xf32> to vector<128x16xf32>
    %c0_3 = arith.constant 0 : index
    %c0_4 = arith.constant 0 : index
    %c0_5 = arith.constant 0 : index
    %3 = vector.load %arg4[%c0_3, %c0_4, %c0_5] : memref<4x16x16xf32, #tpu.memory_space<vmem>>, vector<1x16x16xf32>
    %4 = vector.shape_cast %3 : vector<1x16x16xf32> to vector<16x16xf32>
    %cst = arith.constant dense<0.000000e+00> : vector<128x16xf32>
    %5 = tpu.matmul %2, %4, %cst {dimension_numbers = #tpu.dot_dimension_numbers<[1], [0], [0], [1], [0, 0, 1, 1], [], []>} : vector<128x16xf32>, vector<16x16xf32>, vector<128x16xf32> -> vector<128x16xf32>
    %c0_6 = arith.constant 0 : index
    %c0_7 = arith.constant 0 : index
    %c1 = arith.constant 1 : index
    %c0_8 = arith.constant 0 : index
    %6 = vector.load %arg2[%c0_6, %c0_7, %c1, %c0_8] : memref<1x8x17x16xf32, #tpu.memory_space<vmem>>, vector<1x8x16x16xf32>
    %7 = vector.shape_cast %6 : vector<1x8x16x16xf32> to vector<8x16x16xf32>
    %8 = vector.shape_cast %7 : vector<8x16x16xf32> to vector<128x16xf32>
    %c1_9 = arith.constant 1 : index
    %c0_10 = arith.constant 0 : index
    %c0_11 = arith.constant 0 : index
    %9 = vector.load %arg4[%c1_9, %c0_10, %c0_11] : memref<4x16x16xf32, #tpu.memory_space<vmem>>, vector<1x16x16xf32>
    %10 = vector.shape_cast %9 : vector<1x16x16xf32> to vector<16x16xf32>
    %cst_12 = arith.constant dense<0.000000e+00> : vector<128x16xf32>
    %11 = tpu.matmul %8, %10, %cst_12 {dimension_numbers = #tpu.dot_dimension_numbers<[1], [0], [0], [1], [0, 0, 1, 1], [], []>} : vector<128x16xf32>, vector<16x16xf32>, vector<128x16xf32> -> vector<128x16xf32>
    %12 = arith.addf %5, %11 : vector<128x16xf32>
    %c0_13 = arith.constant 0 : index
    %c0_14 = arith.constant 0 : index
    %13 = vector.load %arg9[%c0_13, %c0_14] : memref<128x16xf32, #tpu.memory_space<vmem>>, vector<128x16xf32>
    tpu.vector_store %arg9[%c0_13, %c0_14], %12 {strides = array<i32>} : memref<128x16xf32, #tpu.memory_space<vmem>>, vector<128x16xf32>,
    %c0_15 = arith.constant 0 : index
    %c0_16 = arith.constant 0 : index
    %14 = vector.load %arg9[%c0_15, %c0_16] : memref<128x16xf32, #tpu.memory_space<vmem>>, vector<112x16xf32>
    %c0_17 = arith.constant 0 : index
    %c1_18 = arith.constant 1 : index
    %c0_19 = arith.constant 0 : index
    %c0_20 = arith.constant 0 : index
    %15 = vector.load %arg2[%c0_17, %c1_18, %c0_19, %c0_20] : memref<1x8x17x16xf32, #tpu.memory_space<vmem>>, vector<1x7x16x16xf32>
    %16 = vector.shape_cast %15 : vector<1x7x16x16xf32> to vector<7x16x16xf32>
    %17 = vector.shape_cast %16 : vector<7x16x16xf32> to vector<112x16xf32>
    %c2 = arith.constant 2 : index
    %c0_21 = arith.constant 0 : index
    %c0_22 = arith.constant 0 : index
    %18 = vector.load %arg4[%c2, %c0_21, %c0_22] : memref<4x16x16xf32, #tpu.memory_space<vmem>>, vector<1x16x16xf32>
    %19 = vector.shape_cast %18 : vector<1x16x16xf32> to vector<16x16xf32>
    %cst_23 = arith.constant dense<0.000000e+00> : vector<112x16xf32>
    %20 = tpu.matmul %17, %19, %cst_23 {dimension_numbers = #tpu.dot_dimension_numbers<[1], [0], [0], [1], [0, 0, 1, 1], [], []>} : vector<112x16xf32>, vector<16x16xf32>, vector<112x16xf32> -> vector<112x16xf32>
    %21 = arith.addf %14, %20 : vector<112x16xf32>
    %c0_24 = arith.constant 0 : index
    %c0_25 = arith.constant 0 : index
    %22 = vector.load %arg9[%c0_24, %c0_25] : memref<128x16xf32, #tpu.memory_space<vmem>>, vector<112x16xf32>
    tpu.vector_store %arg9[%c0_24, %c0_25], %21 {strides = array<i32>} : memref<128x16xf32, #tpu.memory_space<vmem>>, vector<112x16xf32>,
    %c0_26 = arith.constant 0 : index
    %c0_27 = arith.constant 0 : index
    %23 = vector.load %arg9[%c0_26, %c0_27] : memref<128x16xf32, #tpu.memory_space<vmem>>, vector<112x16xf32>
    %c0_28 = arith.constant 0 : index
    %c1_29 = arith.constant 1 : index
    %c1_30 = arith.constant 1 : index
    %c0_31 = arith.constant 0 : index
    %24 = vector.load %arg2[%c0_28, %c1_29, %c1_30, %c0_31] : memref<1x8x17x16xf32, #tpu.memory_space<vmem>>, vector<1x7x16x16xf32>
    %25 = vector.shape_cast %24 : vector<1x7x16x16xf32> to vector<7x16x16xf32>
    %26 = vector.shape_cast %25 : vector<7x16x16xf32> to vector<112x16xf32>
    %c3 = arith.constant 3 : index
    %c0_32 = arith.constant 0 : index
    %c0_33 = arith.constant 0 : index
    %27 = vector.load %arg4[%c3, %c0_32, %c0_33] : memref<4x16x16xf32, #tpu.memory_space<vmem>>, vector<1x16x16xf32>
    %28 = vector.shape_cast %27 : vector<1x16x16xf32> to vector<16x16xf32>
    %cst_34 = arith.constant dense<0.000000e+00> : vector<112x16xf32>
    %29 = tpu.matmul %26, %28, %cst_34 {dimension_numbers = #tpu.dot_dimension_numbers<[1], [0], [0], [1], [0, 0, 1, 1], [], []>} : vector<112x16xf32>, vector<16x16xf32>, vector<112x16xf32> -> vector<112x16xf32>
    %30 = arith.addf %23, %29 : vector<112x16xf32>
    %c0_35 = arith.constant 0 : index
    %c0_36 = arith.constant 0 : index
    %31 = vector.load %arg9[%c0_35, %c0_36] : memref<128x16xf32, #tpu.memory_space<vmem>>, vector<112x16xf32>
    tpu.vector_store %arg9[%c0_35, %c0_36], %30 {strides = array<i32>} : memref<128x16xf32, #tpu.memory_space<vmem>>, vector<112x16xf32>,
    %c112 = arith.constant 112 : index
    %c0_37 = arith.constant 0 : index
    %32 = vector.load %arg9[%c112, %c0_37] : memref<128x16xf32, #tpu.memory_space<vmem>>, vector<16x16xf32>
    %c0_38 = arith.constant 0 : index
    %c0_39 = arith.constant 0 : index
    %c0_40 = arith.constant 0 : index
    %c0_41 = arith.constant 0 : index
    %33 = vector.load %arg3[%c0_38, %c0_39, %c0_40, %c0_41] : memref<1x1x17x16xf32, #tpu.memory_space<vmem>>, vector<1x1x16x16xf32>
    %34 = vector.shape_cast %33 : vector<1x1x16x16xf32> to vector<16x16xf32>
    %c2_42 = arith.constant 2 : index
    %c0_43 = arith.constant 0 : index
    %c0_44 = arith.constant 0 : index
    %35 = vector.load %arg4[%c2_42, %c0_43, %c0_44] : memref<4x16x16xf32, #tpu.memory_space<vmem>>, vector<1x16x16xf32>
    %36 = vector.shape_cast %35 : vector<1x16x16xf32> to vector<16x16xf32>
    %cst_45 = arith.constant dense<0.000000e+00> : vector<16x16xf32>
    %37 = tpu.matmul %34, %36, %cst_45 {dimension_numbers = #tpu.dot_dimension_numbers<[1], [0], [0], [1], [0, 0, 1, 1], [], []>} : vector<16x16xf32>, vector<16x16xf32>, vector<16x16xf32> -> vector<16x16xf32>
    %38 = arith.addf %32, %37 : vector<16x16xf32>
    %c112_46 = arith.constant 112 : index
    %c0_47 = arith.constant 0 : index
    %39 = vector.load %arg9[%c112_46, %c0_47] : memref<128x16xf32, #tpu.memory_space<vmem>>, vector<16x16xf32>
    tpu.vector_store %arg9[%c112_46, %c0_47], %38 {strides = array<i32>} : memref<128x16xf32, #tpu.memory_space<vmem>>, vector<16x16xf32>,
    %c112_48 = arith.constant 112 : index
    %c0_49 = arith.constant 0 : index
    %40 = vector.load %arg9[%c112_48, %c0_49] : memref<128x16xf32, #tpu.memory_space<vmem>>, vector<16x16xf32>
    %c0_50 = arith.constant 0 : index
    %c0_51 = arith.constant 0 : index
    %c1_52 = arith.constant 1 : index
    %c0_53 = arith.constant 0 : index
    %41 = vector.load %arg3[%c0_50, %c0_51, %c1_52, %c0_53] : memref<1x1x17x16xf32, #tpu.memory_space<vmem>>, vector<1x1x16x16xf32>
    %42 = vector.shape_cast %41 : vector<1x1x16x16xf32> to vector<16x16xf32>
    %c3_54 = arith.constant 3 : index
    %c0_55 = arith.constant 0 : index
    %c0_56 = arith.constant 0 : index
    %43 = vector.load %arg4[%c3_54, %c0_55, %c0_56] : memref<4x16x16xf32, #tpu.memory_space<vmem>>, vector<1x16x16xf32>
    %44 = vector.shape_cast %43 : vector<1x16x16xf32> to vector<16x16xf32>
    %cst_57 = arith.constant dense<0.000000e+00> : vector<16x16xf32>
    %45 = tpu.matmul %42, %44, %cst_57 {dimension_numbers = #tpu.dot_dimension_numbers<[1], [0], [0], [1], [0, 0, 1, 1], [], []>} : vector<16x16xf32>, vector<16x16xf32>, vector<16x16xf32> -> vector<16x16xf32>
    %46 = arith.addf %40, %45 : vector<16x16xf32>
    %c112_58 = arith.constant 112 : index
    %c0_59 = arith.constant 0 : index
    %47 = vector.load %arg9[%c112_58, %c0_59] : memref<128x16xf32, #tpu.memory_space<vmem>>, vector<16x16xf32>
    tpu.vector_store %arg9[%c112_58, %c0_59], %46 {strides = array<i32>} : memref<128x16xf32, #tpu.memory_space<vmem>>, vector<16x16xf32>,
    %c0_60 = arith.constant 0 : index
    %c0_61 = arith.constant 0 : index
    %48 = vector.load %arg9[%c0_60, %c0_61] : memref<128x16xf32, #tpu.memory_space<vmem>>, vector<128x16xf32>
    %49 = vector.extract_strided_slice %48 {offsets = [0, 0], sizes = [128, 8], strides = [1, 1]} : vector<128x16xf32> to vector<128x8xf32>
    %c0_62 = arith.constant 0 : index
    %c0_63 = arith.constant 0 : index
    %50 = vector.load %arg5[%c0_62, %c0_63] : memref<1x8xf32, #tpu.memory_space<vmem>>, vector<1x8xf32>
    %51 = vector.broadcast %50 : vector<1x8xf32> to vector<128x8xf32>
    %52 = arith.addf %49, %51 : vector<128x8xf32>
    %cst_64 = arith.constant 1.000000e-01 : f32
    %53 = vector.broadcast %cst_64 : f32 to vector<128x8xf32>
    %54 = arith.mulf %53, %52 : vector<128x8xf32>
    %55 = arith.maximumf %52, %54 : vector<128x8xf32>
    %c0_65 = arith.constant 0 : index
    %c0_66 = arith.constant 0 : index
    %56 = vector.load %arg6[%c0_65, %c0_66] : memref<8x8xf32, #tpu.memory_space<vmem>>, vector<8x8xf32>
    %cst_67 = arith.constant dense<0.000000e+00> : vector<128x8xf32>
    %57 = tpu.matmul %55, %56, %cst_67 {dimension_numbers = #tpu.dot_dimension_numbers<[1], [0], [0], [1], [0, 0, 1, 1], [], []>} : vector<128x8xf32>, vector<8x8xf32>, vector<128x8xf32> -> vector<128x8xf32>
    %c0_68 = arith.constant 0 : index
    %c0_69 = arith.constant 0 : index
    %58 = vector.load %arg7[%c0_68, %c0_69] : memref<1x8xf32, #tpu.memory_space<vmem>>, vector<1x8xf32>
    %59 = vector.broadcast %58 : vector<1x8xf32> to vector<128x8xf32>
    %60 = arith.addf %57, %59 : vector<128x8xf32>
    %cst_70 = arith.constant 1.000000e-01 : f32
    %61 = vector.broadcast %cst_70 : f32 to vector<128x8xf32>
    %62 = arith.mulf %61, %60 : vector<128x8xf32>
    %63 = arith.maximumf %60, %62 : vector<128x8xf32>
    %64 = vector.extract_strided_slice %48 {offsets = [0, 8], sizes = [128, 8], strides = [1, 1]} : vector<128x16xf32> to vector<128x8xf32>
    %65 = arith.addf %63, %64 : vector<128x8xf32>
    %c0_71 = arith.constant 0 : index
    %c0_72 = arith.constant 0 : index
    %c0_73 = arith.constant 0 : index
    %66 = vector.load %arg8[%c0_71, %c0_72, %c0_73] : memref<1x128x8xf32, #tpu.memory_space<vmem>>, vector<1x128x8xf32>
    %67 = vector.shape_cast %66 : vector<1x128x8xf32> to vector<128x8xf32>
    %68 = vector.shape_cast %65 : vector<128x8xf32> to vector<1x128x8xf32>
    tpu.vector_store %arg8[%c0_71, %c0_72, %c0_73], %68 {strides = array<i32>} : memref<1x128x8xf32, #tpu.memory_space<vmem>>, vector<1x128x8xf32>,
    return
  }
  func.func @transform_0(%arg0: i32, %arg1: i32) -> (i32, i32, i32, i32) {
    %c0_i32 = arith.constant 0 : i32
    %c0_i32_0 = arith.constant 0 : i32
    %c0_i32_1 = arith.constant 0 : i32
    return %arg0, %arg1, %c0_i32, %c0_i32_0 : i32, i32, i32, i32
  }
  func.func @transform_1(%arg0: i32, %arg1: i32) -> (i32, i32, i32, i32) {
    %c1_i32 = arith.constant 1 : i32
    %0 = arith.addi %arg1, %c1_i32 : i32
    %c8_i32 = arith.constant 8 : i32
    %1 = arith.muli %0, %c8_i32 : i32
    %c0_i32 = arith.constant 0 : i32
    %c0_i32_0 = arith.constant 0 : i32
    %c0_i32_1 = arith.constant 0 : i32
    return %arg0, %1, %c0_i32, %c0_i32_0 : i32, i32, i32, i32
  }
  func.func @transform_2(%arg0: i32, %arg1: i32) -> (i32, i32, i32) {
    %c0_i32 = arith.constant 0 : i32
    %c0_i32_0 = arith.constant 0 : i32
    %c0_i32_1 = arith.constant 0 : i32
    %c0_i32_2 = arith.constant 0 : i32
    return %c0_i32, %c0_i32_0, %c0_i32_1 : i32, i32, i32
  }
  func.func @transform_3(%arg0: i32, %arg1: i32) -> (i32, i32) {
    %c0_i32 = arith.constant 0 : i32
    %c0_i32_0 = arith.constant 0 : i32
    %c0_i32_1 = arith.constant 0 : i32
    return %c0_i32, %c0_i32_0 : i32, i32
  }
  func.func @transform_4(%arg0: i32, %arg1: i32) -> (i32, i32) {
    %c0_i32 = arith.constant 0 : i32
    %c0_i32_0 = arith.constant 0 : i32
    %c0_i32_1 = arith.constant 0 : i32
    return %c0_i32, %c0_i32_0 : i32, i32
  }
  func.func @transform_5(%arg0: i32, %arg1: i32) -> (i32, i32) {
    %c0_i32 = arith.constant 0 : i32
    %c0_i32_0 = arith.constant 0 : i32
    %c0_i32_1 = arith.constant 0 : i32
    return %c0_i32, %c0_i32_0 : i32, i32
  }
  func.func @transform_6(%arg0: i32, %arg1: i32) -> (i32, i32, i32) {
    %c0_i32 = arith.constant 0 : i32
    %c0_i32_0 = arith.constant 0 : i32
    return %arg0, %arg1, %c0_i32 : i32, i32, i32
  }
}

</mosaic_0001>

<llo_original>
// kernel: tpu_custom_call.1
$region0: #{tpu_custom_call.1}
  #allocation0 [shape = 'u32[]', space=smem, size = 0x4, offset = 0x4, fixed_abs, tag = 'smem constant byte address 0x4 - core index']
  #allocation1 [shape = 'u32[144,128]{1,0:T(1,128)}', space=vmem, size = 0x12000, scoped, tag = 'internal scratch']
  #allocation2 [shape = 'f32[128,16]{1,0:T(8,128)}', space=vmem, size = 0x10000, scoped, tag = 'scratch operand']
  %s0 = inlined_call_operand.vmem [shape: f32[2,17,17,16], index: 0, kind: input, shape index: {}]
  %s1 = inlined_call_operand.vmem [shape: f32[2,17,17,16], index: 1, kind: input, shape index: {}]
  %s2 = inlined_call_operand.vmem [shape: f32[4,16,16], index: 2, kind: input, shape index: {}]
  %s3 = inlined_call_operand.vmem [shape: f32[1,8], index: 3, kind: input, shape index: {}]
  %s4 = inlined_call_operand.vmem [shape: f32[8,8], index: 4, kind: input, shape index: {}]
  %s5 = inlined_call_operand.vmem [shape: f32[1,8], index: 5, kind: input, shape index: {}]
  %s6 = inlined_call_operand.vmem [shape: f32[2,256,8], index: 6, kind: output, shape index: {}]
  %s7 = sld [smem:[#allocation0]]
  $region57: #{tpu_custom_call.1} parent=0
    _
  %s9 = ssub.s32 1, %s7
  %s10 = scalar_select 0, %s9, %s7
  loop: start=0, step=1, limit=6
  $region2: #{tpu_custom_call.1} parent=0 // loop_pre_header
    _
  $region3: #{tpu_custom_call.1} parent=0 // loop_header
    %s12 = sphi 0, %s16
    %p13 = scmp.ge.s32.totalorder %s12, 6
    %s19 = sphi 0, %s31
    %s20 = sphi 0, %s27
    %s21 = sphi 0, %s19
    %s22 = sphi 0, %s20
    %s23 = sphi 0, %s21
    %s24 = sphi 0, %s22
    %s36 = sphi 0, %s38
    %s39 = sphi 0, %s36
    %s40 = sphi 0, %s39
    %s56 = sphi 0, %s40
    %s68 = sphi 0, %s70
    %s71 = sphi 0, %s68
    %s72 = sphi 0, %s71
    %s88 = sphi 0, %s72
    %s92 = sphi 0, %s92
    %s94 = sphi 0, %s92
    %s95 = sphi 0, %s94
    %s109 = sphi 0, %s95
    %s113 = sphi 0, %s113
    %s115 = sphi 0, %s113
    %s116 = sphi 0, %s115
    %s130 = sphi 0, %s116
    %s134 = sphi 0, %s134
    %s136 = sphi 0, %s134
    %s137 = sphi 0, %s136
    %s151 = sphi 0, %s137
    %s155 = sphi 0, %s155
    %s157 = sphi 0, %s155
    %s158 = sphi 0, %s157
    %s172 = sphi 0, %s158
    %s180 = sphi 0, %s182
    %s183 = sphi 0, %s180
    %s184 = sphi 0, %s183
    %s200 = sphi 0, %s184
  $region4: #{tpu_custom_call.1} parent=0 // loop_header_branch
    %15 = sbr.rel (%p13) target = $region8
  $region5: #{tpu_custom_call.1} parent=0 // loop_body
    %s17 = ssub.s32 %s12, 1
    %s18 = ssub.s32 %s12, 2
    %s25 = sadd.s32 1, %s20
    %p26 = scmp.ge.s32.totalorder %s25, 2
    %s27 = scalar_select %p26, 0, %s25
    %s28 = sadd.s32 1, %s19
    %s29 = scalar_select %p26, %s28, %s19
    %p30 = scmp.ge.s32.totalorder %s29, 2
    %s31 = scalar_select %p30, 0, %s29
    %s32 = ssub.s32 %s19, %s31
    %s33 = ssub.s32 %s20, %s27
    %s34 = sor.u32 %s32, %s33
    %p35 = scmp.eq.s32.totalorder %s34, 0
    %s37 = sadd.s32 %s36, 1
    %s38 = scalar_select %p35, %s36, %s37
    %p41 = pneg %p35
    %p42 = scmp.eq.s32.totalorder %s12, 3
    %p43 = por %p41, %p42
    %p44 = scmp.ne.s32.totalorder %s36, %s39
    %p45 = scmp.eq.s32.totalorder %s12, 0
    %p46 = por %p44, %p45
    %p47 = scmp.ne.s32.totalorder %s36, %s39
    %p48 = scmp.eq.s32.totalorder %s17, 3
    %p49 = por %p47, %p48
    %p50 = scmp.ne.s32.totalorder %s39, %s40
    %p51 = scmp.eq.s32.totalorder %s17, 0
    %p52 = por %p50, %p51
    %p53 = scmp.ne.s32.totalorder %s39, %s40
    %p54 = scmp.eq.s32.totalorder %s18, 3
    %p55 = por %p53, %p54
    %p57 = scmp.ne.s32.totalorder %s40, %s56
    %p58 = scmp.eq.s32.totalorder %s18, 0
    %p59 = por %p57, %p58
    %s60 = sadd.s32 %s20, 1
    %s61 = smul.u32 %s60, 8
    %s62 = sadd.s32 %s27, 1
    %s63 = smul.u32 %s62, 8
    %s64 = ssub.s32 %s19, %s31
    %s65 = ssub.s32 %s61, %s63
    %s66 = sor.u32 %s64, %s65
    %p67 = scmp.eq.s32.totalorder %s66, 0
    %s69 = sadd.s32 %s68, 1
    %s70 = scalar_select %p67, %s68, %s69
    %p73 = pneg %p67
    %p74 = scmp.eq.s32.totalorder %s12, 3
    %p75 = por %p73, %p74
    %p76 = scmp.ne.s32.totalorder %s68, %s71
    %p77 = scmp.eq.s32.totalorder %s12, 0
    %p78 = por %p76, %p77
    %p79 = scmp.ne.s32.totalorder %s68, %s71
    %p80 = scmp.eq.s32.totalorder %s17, 3
    %p81 = por %p79, %p80
    %p82 = scmp.ne.s32.totalorder %s71, %s72
    %p83 = scmp.eq.s32.totalorder %s17, 0
    %p84 = por %p82, %p83
    %p85 = scmp.ne.s32.totalorder %s71, %s72
    %p86 = scmp.eq.s32.totalorder %s18, 3
    %p87 = por %p85, %p86
    %p89 = scmp.ne.s32.totalorder %s72, %s88
    %p90 = scmp.eq.s32.totalorder %s18, 0
    %p91 = por %p89, %p90
    %s93 = sadd.s32 %s92, 1
    %p96 = scmp.eq.s32.totalorder %s12, 3
    %p97 = scmp.ne.s32.totalorder %s92, %s94
    %p98 = scmp.eq.s32.totalorder %s12, 0
    %p99 = por %p97, %p98
    %p100 = scmp.ne.s32.totalorder %s92, %s94
    %p101 = scmp.eq.s32.totalorder %s17, 3
    %p102 = por %p100, %p101
    %p103 = scmp.ne.s32.totalorder %s94, %s95
    %p104 = scmp.eq.s32.totalorder %s17, 0
    %p105 = por %p103, %p104
    %p106 = scmp.ne.s32.totalorder %s94, %s95
    %p107 = scmp.eq.s32.totalorder %s18, 3
    %p108 = por %p106, %p107
    %p110 = scmp.ne.s32.totalorder %s95, %s109
    %p111 = scmp.eq.s32.totalorder %s18, 0
    %p112 = por %p110, %p111
    %s114 = sadd.s32 %s113, 1
    %p117 = scmp.eq.s32.totalorder %s12, 3
    %p118 = scmp.ne.s32.totalorder %s113, %s115
    %p119 = scmp.eq.s32.totalorder %s12, 0
    %p120 = por %p118, %p119
    %p121 = scmp.ne.s32.totalorder %s113, %s115
    %p122 = scmp.eq.s32.totalorder %s17, 3
    %p123 = por %p121, %p122
    %p124 = scmp.ne.s32.totalorder %s115, %s116
    %p125 = scmp.eq.s32.totalorder %s17, 0
    %p126 = por %p124, %p125
    %p127 = scmp.ne.s32.totalorder %s115, %s116
    %p128 = scmp.eq.s32.totalorder %s18, 3
    %p129 = por %p127, %p128
    %p131 = scmp.ne.s32.totalorder %s116, %s130
    %p132 = scmp.eq.s32.totalorder %s18, 0
    %p133 = por %p131, %p132
    %s135 = sadd.s32 %s134, 1
    %p138 = scmp.eq.s32.totalorder %s12, 3
    %p139 = scmp.ne.s32.totalorder %s134, %s136
    %p140 = scmp.eq.s32.totalorder %s12, 0
    %p141 = por %p139, %p140
    %p142 = scmp.ne.s32.totalorder %s134, %s136
    %p143 = scmp.eq.s32.totalorder %s17, 3
    %p144 = por %p142, %p143
    %p145 = scmp.ne.s32.totalorder %s136, %s137
    %p146 = scmp.eq.s32.totalorder %s17, 0
    %p147 = por %p145, %p146
    %p148 = scmp.ne.s32.totalorder %s136, %s137
    %p149 = scmp.eq.s32.totalorder %s18, 3
    %p150 = por %p148, %p149
    %p152 = scmp.ne.s32.totalorder %s137, %s151
    %p153 = scmp.eq.s32.totalorder %s18, 0
    %p154 = por %p152, %p153
    %s156 = sadd.s32 %s155, 1
    %p159 = scmp.eq.s32.totalorder %s12, 3
    %p160 = scmp.ne.s32.totalorder %s155, %s157
    %p161 = scmp.eq.s32.totalorder %s12, 0
    %p162 = por %p160, %p161
    %p163 = scmp.ne.s32.totalorder %s155, %s157
    %p164 = scmp.eq.s32.totalorder %s17, 3
    %p165 = por %p163, %p164
    %p166 = scmp.ne.s32.totalorder %s157, %s158
    %p167 = scmp.eq.s32.totalorder %s17, 0
    %p168 = por %p166, %p167
    %p169 = scmp.ne.s32.totalorder %s157, %s158
    %p170 = scmp.eq.s32.totalorder %s18, 3
    %p171 = por %p169, %p170
    %p173 = scmp.ne.s32.totalorder %s158, %s172
    %p174 = scmp.eq.s32.totalorder %s18, 0
    %p175 = por %p173, %p174
    %s176 = ssub.s32 %s19, %s31
    %s177 = ssub.s32 %s20, %s27
    %s178 = sor.u32 %s176, %s177
    %p179 = scmp.eq.s32.totalorder %s178, 0
    %s181 = sadd.s32 %s180, 1
    %s182 = scalar_select %p179, %s180, %s181
    %p185 = pneg %p179
    %p186 = scmp.eq.s32.totalorder %s12, 3
    %p187 = por %p185, %p186
    %p188 = scmp.ne.s32.totalorder %s180, %s183
    %p189 = scmp.eq.s32.totalorder %s12, 0
    %p190 = por %p188, %p189
    %p191 = scmp.ne.s32.totalorder %s180, %s183
    %p192 = scmp.eq.s32.totalorder %s17, 3
    %p193 = por %p191, %p192
    %p194 = scmp.ne.s32.totalorder %s183, %s184
    %p195 = scmp.eq.s32.totalorder %s17, 0
    %p196 = por %p194, %p195
    %p197 = scmp.ne.s32.totalorder %s183, %s184
    %p198 = scmp.eq.s32.totalorder %s18, 3
    %p199 = por %p197, %p198
    %p201 = scmp.ne.s32.totalorder %s184, %s200
    %p202 = scmp.eq.s32.totalorder %s18, 0
    %p203 = por %p201, %p202
    %p204 = scmp.le.s32.totalorder 1, %s12
    %p205 = scmp.lt.s32.totalorder %s12, 5
    %p206 = pnand %p204, %p205
    %p207 = pneg %p206
    // Predicated region
    $region9: #{tpu_custom_call.1} parent=5 // pred_check
      _
    $region10: #{tpu_custom_call.1} parent=5 // pred_check_branch
      %209 = sbr.rel (%p206) target = $region12
    $region11: #{tpu_custom_call.1} parent=5 // pred_region
      %s210 = ssub.s32 %s12, 1
      // Predicated region
      $region13: #{tpu_custom_call.1} parent=11 // pred_check
        %p211 = pneg %p105
      $region14: #{tpu_custom_call.1} parent=11 // pred_check_branch
        %213 = sbr.rel (%p211) target = $region16
      $region15: #{tpu_custom_call.1} parent=11 // pred_region
        _
      $region16: #{tpu_custom_call.1} parent=11 // pred_fallthru
        _
      // Predicated region
      $region17: #{tpu_custom_call.1} parent=11 // pred_check
        %p214 = pneg %p126
      $region18: #{tpu_custom_call.1} parent=11 // pred_check_branch
        %216 = sbr.rel (%p214) target = $region20
      $region19: #{tpu_custom_call.1} parent=11 // pred_region
        _
      $region20: #{tpu_custom_call.1} parent=11 // pred_fallthru
        _
      // Predicated region
      $region21: #{tpu_custom_call.1} parent=11 // pred_check
        %p217 = pneg %p147
      $region22: #{tpu_custom_call.1} parent=11 // pred_check_branch
        %219 = sbr.rel (%p217) target = $region24
      $region23: #{tpu_custom_call.1} parent=11 // pred_region
        _
      $region24: #{tpu_custom_call.1} parent=11 // pred_fallthru
        _
      // Predicated region
      $region25: #{tpu_custom_call.1} parent=11 // pred_check
        %p220 = pneg %p168
      $region26: #{tpu_custom_call.1} parent=11 // pred_check_branch
        %222 = sbr.rel (%p220) target = $region28
      $region27: #{tpu_custom_call.1} parent=11 // pred_region
        _
      $region28: #{tpu_custom_call.1} parent=11 // pred_fallthru
        _
    $region12: #{tpu_custom_call.1} parent=5 // pred_fallthru
      _
    %p223 = scmp.lt.s32.totalorder %s12, 4
    // Predicated region
    $region29: #{tpu_custom_call.1} parent=5 // pred_check
      %p224 = pneg %p223
    $region30: #{tpu_custom_call.1} parent=5 // pred_check_branch
      %226 = sbr.rel (%p224) target = $region32
    $region31: #{tpu_custom_call.1} parent=5 // pred_region
      // Predicated region
      $region33: #{tpu_custom_call.1} parent=31 // pred_check
        %p227 = pneg %p46
      $region34: #{tpu_custom_call.1} parent=31 // pred_check_branch
        %229 = sbr.rel (%p227) target = $region36
      $region35: #{tpu_custom_call.1} parent=31 // pred_region
        %s230 = smul.u32 8, %s20
        %s231 = ssub.s32 17, %s230
        %p232 = scmp.lt.s32.totalorder %s231, 8
        %s233 = scalar_select %p232, %s231, 8
        %s234 = smul.u32 128, %s233
        %s235 = smul.u32 %s234, 3
        %p236 = scmp.lt.s32.totalorder %s19, 1
        %s237 = scalar_select %p236, %s19, 1
        %p238 = scmp.lt.s32.totalorder %s230, 16
        %s239 = scalar_select %p238, %s230, 16
        %s240 = smul.addr %s239, 3
        %s241 = smul.addr %s237, 51
        %s242 = sadd.s32 %s240, %s241
        %s243 = smul.addr %s242, 8
        %s244 = scalar_lea.vmem %s0, %s243
        %s245 = smul.u32 8, %s20
        %s246 = ssub.s32 17, %s245
        %p247 = scmp.lt.s32.totalorder %s246, 8
        %s248 = scalar_select %p247, %s246, 8
        %s249 = smul.u32 128, %s248
        %s250 = smul.u32 %s249, 3
      $region36: #{tpu_custom_call.1} parent=31 // pred_fallthru
        _
      // Predicated region
      $region37: #{tpu_custom_call.1} parent=31 // pred_check
        %p251 = pneg %p78
      $region38: #{tpu_custom_call.1} parent=31 // pred_check_branch
        %253 = sbr.rel (%p251) target = $region40
      $region39: #{tpu_custom_call.1} parent=31 // pred_region
        %s254 = sadd.s32 %s20, 1
        %s255 = smul.u32 %s254, 8
        %p256 = scmp.lt.s32.totalorder %s19, 1
        %s257 = scalar_select %p256, %s19, 1
        %p258 = scmp.lt.s32.totalorder %s255, 16
        %s259 = scalar_select %p258, %s255, 16
        %s260 = smul.addr %s259, 3
        %s261 = smul.addr %s257, 51
        %s262 = sadd.s32 %s260, %s261
        %s263 = smul.addr %s262, 8
        %s264 = scalar_lea.vmem %s1, %s263
        %s265 = sadd.s32 %s20, 1
        %s266 = smul.u32 %s265, 8
      $region40: #{tpu_custom_call.1} parent=31 // pred_fallthru
        _
    $region32: #{tpu_custom_call.1} parent=5 // pred_fallthru
      _
    %p267 = scmp.le.s32.totalorder 1, %s12
    %p268 = scmp.lt.s32.totalorder %s12, 5
    %p269 = pnand %p267, %p268
    %p270 = pneg %p269
    // Predicated region
    $region41: #{tpu_custom_call.1} parent=5 // pred_check
      _
    $region42: #{tpu_custom_call.1} parent=5 // pred_check_branch
      %272 = sbr.rel (%p269) target = $region44
    $region43: #{tpu_custom_call.1} parent=5 // pred_region
      %s273 = ssub.s32 %s12, 1
      %s274 = smul.u32 8, %s22
      %s275 = ssub.s32 17, %s274
      %p276 = scmp.lt.s32.totalorder %s275, 8
      %s277 = scalar_select %p276, %s275, 8
      %s278 = smul.u32 128, %s277
      %s279 = smul.u32 %s278, 3
      %p280 = scmp.lt.s32.totalorder %s21, 1
      %s281 = scalar_select %p280, %s21, 1
      %p282 = scmp.lt.s32.totalorder %s274, 16
      %s283 = scalar_select %p282, %s274, 16
      %s284 = smul.addr %s283, 3
      %s285 = smul.addr %s281, 51
      %s286 = sadd.s32 %s284, %s285
      %s287 = smul.addr %s286, 8
      %s288 = scalar_lea.vmem %s0, %s287
      %p289 = pneg %p52
      %p290 = pneg %p49
      %s291 = sadd.s32 %s22, 1
      %s292 = smul.u32 %s291, 8
      %p293 = scmp.lt.s32.totalorder %s21, 1
      %s294 = scalar_select %p293, %s21, 1
      %p295 = scmp.lt.s32.totalorder %s292, 16
      %s296 = scalar_select %p295, %s292, 16
      %s297 = smul.addr %s296, 3
      %s298 = smul.addr %s294, 51
      %s299 = sadd.s32 %s297, %s298
      %s300 = smul.addr %s299, 8
      %s301 = scalar_lea.vmem %s1, %s300
      %p302 = pneg %p84
      %p303 = pneg %p81
      %p304 = pneg %p105
      %p305 = pneg %p102
      %p306 = pneg %p126
      %p307 = pneg %p123
      %p308 = pneg %p147
      %p309 = pneg %p144
      %p310 = pneg %p168
      %p311 = pneg %p165
      %p312 = pneg %p196
      %p313 = pneg %p193
      %s314 = smul.u32 16, %s22
      %p315 = scmp.lt.s32.totalorder %s21, 1
      %s316 = scalar_select %p315, %s21, 1
      %p317 = scmp.lt.s32.totalorder %s314, 31
      %s318 = scalar_select %p317, %s314, 31
      %s319 = smul.addr %s316, 32
      %s320 = sadd.s32 %s318, %s319
      %s321 = smul.addr %s320, 8
      %s322 = scalar_lea.vmem %s6, %s321
      %s323 = smul.u32 8, %s22
      %s324 = ssub.s32 17, %s323
      %p325 = scmp.lt.s32.totalorder %s324, 8
      %s326 = scalar_select %p325, %s324, 8
      %s327 = smul.u32 128, %s326
      %s328 = smul.u32 %s327, 3
      %p329 = scmp.lt.s32.totalorder %s21, 1
      %s330 = scalar_select %p329, %s21, 1
      %p331 = scmp.lt.s32.totalorder %s323, 16
      %s332 = scalar_select %p331, %s323, 16
      %s333 = smul.addr %s332, 3
      %s334 = smul.addr %s330, 51
      %s335 = sadd.s32 %s333, %s334
      %s336 = smul.addr %s335, 8
      %s337 = scalar_lea.vmem %s0, %s336
      %s338 = smul.u32 8, %s22
      %s339 = ssub.s32 17, %s338
      %p340 = scmp.lt.s32.totalorder %s339, 8
      %s341 = scalar_select %p340, %s339, 8
      %s342 = smul.u32 128, %s341
      %s343 = smul.u32 %s342, 3
      %s344 = sadd.s32 %s22, 1
      %s345 = smul.u32 %s344, 8
      %p346 = scmp.lt.s32.totalorder %s21, 1
      %s347 = scalar_select %p346, %s21, 1
      %p348 = scmp.lt.s32.totalorder %s345, 16
      %s349 = scalar_select %p348, %s345, 16
      %s350 = smul.addr %s349, 3
      %s351 = smul.addr %s347, 51
      %s352 = sadd.s32 %s350, %s351
      %s353 = smul.addr %s352, 8
      %s354 = scalar_lea.vmem %s1, %s353
      %s355 = sadd.s32 %s22, 1
      %s356 = smul.u32 %s355, 8
      %s357 = smul.u32 16, %s22
      %p358 = scmp.lt.s32.totalorder %s21, 1
      %s359 = scalar_select %p358, %s21, 1
      %p360 = scmp.lt.s32.totalorder %s357, 31
      %s361 = scalar_select %p360, %s357, 31
      %s362 = smul.addr %s359, 32
      %s363 = sadd.s32 %s361, %s362
      %s364 = smul.addr %s363, 8
      %s365 = scalar_lea.vmem %s6, %s364
      %s366 = smul.u32 16, %s22
      %v367 = vld [vmem:[%s337] sm:$0xff]
      %v368 = vld [vmem:[%s337 + $0x8] sm:$0xff]
      %v369 = vld [vmem:[%s337 + $0x18] sm:$0xff]
      %v370 = vld [vmem:[%s337 + $0x20] sm:$0xff]
      %v371 = vld [vmem:[%s337 + $0x30] sm:$0xff]
      %v372 = vld [vmem:[%s337 + $0x38] sm:$0xff]
      %v373 = vld [vmem:[%s337 + $0x48] sm:$0xff]
      %v374 = vld [vmem:[%s337 + $0x50] sm:$0xff]
      %v375 = vld [vmem:[%s337 + $0x60] sm:$0xff]
      %v376 = vld [vmem:[%s337 + $0x68] sm:$0xff]
      %v377 = vld [vmem:[%s337 + $0x78] sm:$0xff]
      %v378 = vld [vmem:[%s337 + $0x80] sm:$0xff]
      %v379 = vld [vmem:[%s337 + $0x90] sm:$0xff]
      %v380 = vld [vmem:[%s337 + $0x98] sm:$0xff]
      %v381 = vld [vmem:[%s337 + $0xa8] sm:$0xff]
      %v382 = vld [vmem:[%s337 + $0xb0] sm:$0xff]
      %v383 = vld [vmem:[%s2] sm:$0xff]
      %v384 = vld [vmem:[%s2 + $0x8] sm:$0xff]
      %v385 = vld [vmem:[%s337 + $0x1] sm:$0xff]
      %v386 = vld [vmem:[%s337 + $0x9] sm:$0xff]
      %v387 = vld [vmem:[%s337 + $0x19] sm:$0xff]
      %v388 = vld [vmem:[%s337 + $0x21] sm:$0xff]
      %v389 = vld [vmem:[%s337 + $0x31] sm:$0xff]
      %v390 = vld [vmem:[%s337 + $0x39] sm:$0xff]
      %v391 = vld [vmem:[%s337 + $0x49] sm:$0xff]
      %v392 = vld [vmem:[%s337 + $0x51] sm:$0xff]
      %v393 = vld [vmem:[%s337 + $0x61] sm:$0xff]
      %v394 = vld [vmem:[%s337 + $0x69] sm:$0xff]
      %v395 = vld [vmem:[%s337 + $0x79] sm:$0xff]
      %v396 = vld [vmem:[%s337 + $0x81] sm:$0xff]
      %v397 = vld [vmem:[%s337 + $0x91] sm:$0xff]
      %v398 = vld [vmem:[%s337 + $0x99] sm:$0xff]
      %v399 = vld [vmem:[%s337 + $0xa9] sm:$0xff]
      %v400 = vld [vmem:[%s337 + $0xb1] sm:$0xff]
      %s401 = scalar_lea.vmem %s2, 16
      %v402 = vld [vmem:[%s401] sm:$0xff]
      %v403 = vld [vmem:[%s401 + $0x8] sm:$0xff]
      %vm404 = vcmask 130048
      %v406 = vsel %vm404, %v385, 0
      %v409 = vsel %vm404, %v386, 0
      %v412 = vsel %vm404, %v387, 0
      %v415 = vsel %vm404, %v388, 0
      %v418 = vsel %vm404, %v389, 0
      %v421 = vsel %vm404, %v390, 0
      %v424 = vsel %vm404, %v391, 0
      %v427 = vsel %vm404, %v392, 0
      %v430 = vsel %vm404, %v393, 0
      %v433 = vsel %vm404, %v394, 0
      %v436 = vsel %vm404, %v395, 0
      %v439 = vsel %vm404, %v396, 0
      %v442 = vsel %vm404, %v397, 0
      %v445 = vsel %vm404, %v398, 0
      %v448 = vsel %vm404, %v399, 0
      %v451 = vsel %vm404, %v400, 0
      %453 = vmatprep.subr.mxu0 0.0
      %454 = vmatpush1.msra.mxu0 0.0
      %455 = vmatprep.subr.mxu0 0.0
      %456 = vmatpush1.msra.mxu0 0.0
      %457 = vmatprep.subr.mxu0 0.0
      %458 = vmatpush1.msra.mxu0 0.0
      %459 = vmatprep.subr.mxu0 0.0
      %460 = vmatpush1.msra.mxu0 0.0
      %461 = vmatprep.subr.mxu0 0.0
      %462 = vmatpush1.msra.mxu0 0.0
      %463 = vmatprep.subr.mxu0 0.0
      %464 = vmatpush1.msra.mxu0 0.0
      %465 = vmatprep.subr.mxu0 0.0
      %466 = vmatpush1.msra.mxu0 0.0
      %467 = vmatprep.subr.mxu0 0.0
      %468 = vmatpush1.msra.mxu0 0.0
      %469 = vmatprep.subr.mxu0 0.0
      %470 = vmatpush1.msra.mxu0 0.0
      %471 = vmatprep.subr.mxu0 0.0
      %472 = vmatpush1.msra.mxu0 0.0
      %473 = vmatprep.subr.mxu0 0.0
      %474 = vmatpush1.msra.mxu0 0.0
      %475 = vmatprep.subr.mxu0 0.0
      %476 = vmatpush1.msra.mxu0 0.0
      %477 = vmatprep.subr.mxu0 0.0
      %478 = vmatpush1.msra.mxu0 0.0
      %479 = vmatprep.subr.mxu0 0.0
      %480 = vmatpush1.msra.mxu0 0.0
      %481 = vmatprep.subr.mxu0 0.0
      %482 = vmatpush1.msra.mxu0 %v403
      %483 = vmatprep.subr.mxu0 0.0
      %484 = vmatpush1.msra.mxu0 %v402
      %485 = vmatprep.subr.mxu0 0.0
      %486 = vmatpush2.msra.mxu0 0.0
      %487 = vmatprep.subr.mxu0 0.0
      %488 = vmatpush2.msra.mxu0 0.0
      %489 = vmatprep.subr.mxu0 0.0
      %490 = vmatpush2.msra.mxu0 0.0
      %491 = vmatprep.subr.mxu0 0.0
      %492 = vmatpush2.msra.mxu0 0.0
      %493 = vmatprep.subr.mxu0 0.0
      %494 = vmatpush2.msra.mxu0 0.0
      %495 = vmatprep.subr.mxu0 0.0
      %496 = vmatpush2.msra.mxu0 0.0
      %497 = vmatprep.subr.mxu0 0.0
      %498 = vmatpush2.msra.mxu0 0.0
      %499 = vmatprep.subr.mxu0 0.0
      %500 = vmatpush2.msra.mxu0 0.0
      %501 = vmatprep.subr.mxu0 0.0
      %502 = vmatpush2.msra.mxu0 0.0
      %503 = vmatprep.subr.mxu0 0.0
      %504 = vmatpush2.msra.mxu0 0.0
      %505 = vmatprep.subr.mxu0 0.0
      %506 = vmatpush2.msra.mxu0 0.0
      %507 = vmatprep.subr.mxu0 0.0
      %508 = vmatpush2.msra.mxu0 0.0
      %509 = vmatprep.subr.mxu0 0.0
      %510 = vmatpush2.msra.mxu0 0.0
      %511 = vmatprep.subr.mxu0 0.0
      %512 = vmatpush2.msra.mxu0 0.0
      %513 = vmatprep.subr.mxu0 0.0
      %514 = vmatpush2.msra.mxu0 0.0
      %515 = vmatprep.subr.mxu0 0.0
      %516 = vmatpush2.msra.mxu0 0.0
      %517 = vmatprep.mubr.f32.mxu0 0.0
      %518 = vmatmul.mubr.f32.gmra.mxu0 %v406
      %v519 = vpop.f32.mrf.mxu0
      %v520 = vadd.f32 0.0, %v519
      %v521 = vpop.f32.mrf.mxu0
      %522 = vmatprep.mubr.f32.mxu0 0.0
      %523 = vmatmul.mubr.f32.gmra.mxu0 %v409
      %v524 = vpop.f32.mrf.mxu0
      %v525 = vadd.f32 0.0, %v524
      %v526 = vpop.f32.mrf.mxu0
      %527 = vmatprep.mubr.f32.mxu0 0.0
      %528 = vmatmul.mubr.f32.gmra.mxu0 %v412
      %v529 = vpop.f32.mrf.mxu0
      %v530 = vadd.f32 0.0, %v529
      %v531 = vpop.f32.mrf.mxu0
      %532 = vmatprep.mubr.f32.mxu0 0.0
      %533 = vmatmul.mubr.f32.gmra.mxu0 %v415
      %v534 = vpop.f32.mrf.mxu0
      %v535 = vadd.f32 0.0, %v534
      %v536 = vpop.f32.mrf.mxu0
      %537 = vmatprep.mubr.f32.mxu0 0.0
      %538 = vmatmul.mubr.f32.gmra.mxu0 %v418
      %v539 = vpop.f32.mrf.mxu0
      %v540 = vadd.f32 0.0, %v539
      %v541 = vpop.f32.mrf.mxu0
      %542 = vmatprep.mubr.f32.mxu0 0.0
      %543 = vmatmul.mubr.f32.gmra.mxu0 %v421
      %v544 = vpop.f32.mrf.mxu0
      %v545 = vadd.f32 0.0, %v544
      %v546 = vpop.f32.mrf.mxu0
      %547 = vmatprep.mubr.f32.mxu0 0.0
      %548 = vmatmul.mubr.f32.gmra.mxu0 %v424
      %v549 = vpop.f32.mrf.mxu0
      %v550 = vadd.f32 0.0, %v549
      %v551 = vpop.f32.mrf.mxu0
      %552 = vmatprep.mubr.f32.mxu0 0.0
      %553 = vmatmul.mubr.f32.gmra.mxu0 %v427
      %v554 = vpop.f32.mrf.mxu0
      %v555 = vadd.f32 0.0, %v554
      %v556 = vpop.f32.mrf.mxu0
      %557 = vmatprep.mubr.f32.mxu0 0.0
      %558 = vmatmul.mubr.f32.gmra.mxu0 %v430
      %v559 = vpop.f32.mrf.mxu0
      %v560 = vadd.f32 0.0, %v559
      %v561 = vpop.f32.mrf.mxu0
      %562 = vmatprep.mubr.f32.mxu0 0.0
      %563 = vmatmul.mubr.f32.gmra.mxu0 %v433
      %v564 = vpop.f32.mrf.mxu0
      %v565 = vadd.f32 0.0, %v564
      %v566 = vpop.f32.mrf.mxu0
      %567 = vmatprep.mubr.f32.mxu0 0.0
      %568 = vmatmul.mubr.f32.gmra.mxu0 %v436
      %v569 = vpop.f32.mrf.mxu0
      %v570 = vadd.f32 0.0, %v569
      %v571 = vpop.f32.mrf.mxu0
      %572 = vmatprep.mubr.f32.mxu0 0.0
      %573 = vmatmul.mubr.f32.gmra.mxu0 %v439
      %v574 = vpop.f32.mrf.mxu0
      %v575 = vadd.f32 0.0, %v574
      %v576 = vpop.f32.mrf.mxu0
      %577 = vmatprep.mubr.f32.mxu0 0.0
      %578 = vmatmul.mubr.f32.gmra.mxu0 %v442
      %v579 = vpop.f32.mrf.mxu0
      %v580 = vadd.f32 0.0, %v579
      %v581 = vpop.f32.mrf.mxu0
      %582 = vmatprep.mubr.f32.mxu0 0.0
      %583 = vmatmul.mubr.f32.gmra.mxu0 %v445
      %v584 = vpop.f32.mrf.mxu0
      %v585 = vadd.f32 0.0, %v584
      %v586 = vpop.f32.mrf.mxu0
      %587 = vmatprep.mubr.f32.mxu0 0.0
      %588 = vmatmul.mubr.f32.gmra.mxu0 %v448
      %v589 = vpop.f32.mrf.mxu0
      %v590 = vadd.f32 0.0, %v589
      %v591 = vpop.f32.mrf.mxu0
      %592 = vmatprep.mubr.f32.mxu0 0.0
      %593 = vmatmul.mubr.f32.gmra.mxu0 %v451
      %v594 = vpop.f32.mrf.mxu0
      %v595 = vadd.f32 0.0, %v594
      %v596 = vpop.f32.mrf.mxu0
      %597 = vdwg.mxu0
      %v599 = vsel %vm404, %v367, 0
      %v602 = vsel %vm404, %v368, 0
      %v605 = vsel %vm404, %v369, 0
      %v608 = vsel %vm404, %v370, 0
      %v611 = vsel %vm404, %v371, 0
      %v614 = vsel %vm404, %v372, 0
      %v617 = vsel %vm404, %v373, 0
      %v620 = vsel %vm404, %v374, 0
      %v623 = vsel %vm404, %v375, 0
      %v626 = vsel %vm404, %v376, 0
      %v629 = vsel %vm404, %v377, 0
      %v632 = vsel %vm404, %v378, 0
      %v635 = vsel %vm404, %v379, 0
      %v638 = vsel %vm404, %v380, 0
      %v641 = vsel %vm404, %v381, 0
      %v644 = vsel %vm404, %v382, 0
      %646 = vmatprep.subr.mxu0 0.0
      %647 = vmatpush1.msra.mxu0 0.0
      %648 = vmatprep.subr.mxu0 0.0
      %649 = vmatpush1.msra.mxu0 0.0
      %650 = vmatprep.subr.mxu0 0.0
      %651 = vmatpush1.msra.mxu0 0.0
      %652 = vmatprep.subr.mxu0 0.0
      %653 = vmatpush1.msra.mxu0 0.0
      %654 = vmatprep.subr.mxu0 0.0
      %655 = vmatpush1.msra.mxu0 0.0
      %656 = vmatprep.subr.mxu0 0.0
      %657 = vmatpush1.msra.mxu0 0.0
      %658 = vmatprep.subr.mxu0 0.0
      %659 = vmatpush1.msra.mxu0 0.0
      %660 = vmatprep.subr.mxu0 0.0
      %661 = vmatpush1.msra.mxu0 0.0
      %662 = vmatprep.subr.mxu0 0.0
      %663 = vmatpush1.msra.mxu0 0.0
      %664 = vmatprep.subr.mxu0 0.0
      %665 = vmatpush1.msra.mxu0 0.0
      %666 = vmatprep.subr.mxu0 0.0
      %667 = vmatpush1.msra.mxu0 0.0
      %668 = vmatprep.subr.mxu0 0.0
      %669 = vmatpush1.msra.mxu0 0.0
      %670 = vmatprep.subr.mxu0 0.0
      %671 = vmatpush1.msra.mxu0 0.0
      %672 = vmatprep.subr.mxu0 0.0
      %673 = vmatpush1.msra.mxu0 0.0
      %674 = vmatprep.subr.mxu0 0.0
      %675 = vmatpush1.msra.mxu0 %v384
      %676 = vmatprep.subr.mxu0 0.0
      %677 = vmatpush1.msra.mxu0 %v383
      %678 = vmatprep.subr.mxu0 0.0
      %679 = vmatpush2.msra.mxu0 0.0
      %680 = vmatprep.subr.mxu0 0.0
      %681 = vmatpush2.msra.mxu0 0.0
      %682 = vmatprep.subr.mxu0 0.0
      %683 = vmatpush2.msra.mxu0 0.0
      %684 = vmatprep.subr.mxu0 0.0
      %685 = vmatpush2.msra.mxu0 0.0
      %686 = vmatprep.subr.mxu0 0.0
      %687 = vmatpush2.msra.mxu0 0.0
      %688 = vmatprep.subr.mxu0 0.0
      %689 = vmatpush2.msra.mxu0 0.0
      %690 = vmatprep.subr.mxu0 0.0
      %691 = vmatpush2.msra.mxu0 0.0
      %692 = vmatprep.subr.mxu0 0.0
      %693 = vmatpush2.msra.mxu0 0.0
      %694 = vmatprep.subr.mxu0 0.0
      %695 = vmatpush2.msra.mxu0 0.0
      %696 = vmatprep.subr.mxu0 0.0
      %697 = vmatpush2.msra.mxu0 0.0
      %698 = vmatprep.subr.mxu0 0.0
      %699 = vmatpush2.msra.mxu0 0.0
      %700 = vmatprep.subr.mxu0 0.0
      %701 = vmatpush2.msra.mxu0 0.0
      %702 = vmatprep.subr.mxu0 0.0
      %703 = vmatpush2.msra.mxu0 0.0
      %704 = vmatprep.subr.mxu0 0.0
      %705 = vmatpush2.msra.mxu0 0.0
      %706 = vmatprep.subr.mxu0 0.0
      %707 = vmatpush2.msra.mxu0 0.0
      %708 = vmatprep.subr.mxu0 0.0
      %709 = vmatpush2.msra.mxu0 0.0
      %710 = vmatprep.mubr.f32.mxu0 0.0
      %711 = vmatmul.mubr.f32.gmra.mxu0 %v599
      %v712 = vpop.f32.mrf.mxu0
      %v713 = vadd.f32 %v520, %v712
      %v714 = vpop.f32.mrf.mxu0
      %715 = vmatprep.mubr.f32.mxu0 0.0
      %716 = vmatmul.mubr.f32.gmra.mxu0 %v602
      %v717 = vpop.f32.mrf.mxu0
      %v718 = vadd.f32 %v525, %v717
      %v719 = vpop.f32.mrf.mxu0
      %720 = vmatprep.mubr.f32.mxu0 0.0
      %721 = vmatmul.mubr.f32.gmra.mxu0 %v605
      %v722 = vpop.f32.mrf.mxu0
      %v723 = vadd.f32 %v530, %v722
      %v724 = vpop.f32.mrf.mxu0
      %725 = vmatprep.mubr.f32.mxu0 0.0
      %726 = vmatmul.mubr.f32.gmra.mxu0 %v608
      %v727 = vpop.f32.mrf.mxu0
      %v728 = vadd.f32 %v535, %v727
      %v729 = vpop.f32.mrf.mxu0
      %730 = vmatprep.mubr.f32.mxu0 0.0
      %731 = vmatmul.mubr.f32.gmra.mxu0 %v611
      %v732 = vpop.f32.mrf.mxu0
      %v733 = vadd.f32 %v540, %v732
      %v734 = vpop.f32.mrf.mxu0
      %735 = vmatprep.mubr.f32.mxu0 0.0
      %736 = vmatmul.mubr.f32.gmra.mxu0 %v614
      %v737 = vpop.f32.mrf.mxu0
      %v738 = vadd.f32 %v545, %v737
      %v739 = vpop.f32.mrf.mxu0
      %740 = vmatprep.mubr.f32.mxu0 0.0
      %741 = vmatmul.mubr.f32.gmra.mxu0 %v617
      %v742 = vpop.f32.mrf.mxu0
      %v743 = vadd.f32 %v550, %v742
      %v744 = vpop.f32.mrf.mxu0
      %745 = vmatprep.mubr.f32.mxu0 0.0
      %746 = vmatmul.mubr.f32.gmra.mxu0 %v620
      %v747 = vpop.f32.mrf.mxu0
      %v748 = vadd.f32 %v555, %v747
      %v749 = vpop.f32.mrf.mxu0
      %750 = vmatprep.mubr.f32.mxu0 0.0
      %751 = vmatmul.mubr.f32.gmra.mxu0 %v623
      %v752 = vpop.f32.mrf.mxu0
      %v753 = vadd.f32 %v560, %v752
      %v754 = vpop.f32.mrf.mxu0
      %755 = vmatprep.mubr.f32.mxu0 0.0
      %756 = vmatmul.mubr.f32.gmra.mxu0 %v626
      %v757 = vpop.f32.mrf.mxu0
      %v758 = vadd.f32 %v565, %v757
      %v759 = vpop.f32.mrf.mxu0
      %760 = vmatprep.mubr.f32.mxu0 0.0
      %761 = vmatmul.mubr.f32.gmra.mxu0 %v629
      %v762 = vpop.f32.mrf.mxu0
      %v763 = vadd.f32 %v570, %v762
      %v764 = vpop.f32.mrf.mxu0
      %765 = vmatprep.mubr.f32.mxu0 0.0
      %766 = vmatmul.mubr.f32.gmra.mxu0 %v632
      %v767 = vpop.f32.mrf.mxu0
      %v768 = vadd.f32 %v575, %v767
      %v769 = vpop.f32.mrf.mxu0
      %770 = vmatprep.mubr.f32.mxu0 0.0
      %771 = vmatmul.mubr.f32.gmra.mxu0 %v635
      %v772 = vpop.f32.mrf.mxu0
      %v773 = vadd.f32 %v580, %v772
      %v774 = vpop.f32.mrf.mxu0
      %775 = vmatprep.mubr.f32.mxu0 0.0
      %776 = vmatmul.mubr.f32.gmra.mxu0 %v638
      %v777 = vpop.f32.mrf.mxu0
      %v778 = vadd.f32 %v585, %v777
      %v779 = vpop.f32.mrf.mxu0
      %780 = vmatprep.mubr.f32.mxu0 0.0
      %781 = vmatmul.mubr.f32.gmra.mxu0 %v641
      %v782 = vpop.f32.mrf.mxu0
      %v783 = vadd.f32 %v590, %v782
      %v784 = vpop.f32.mrf.mxu0
      %785 = vmatprep.mubr.f32.mxu0 0.0
      %786 = vmatmul.mubr.f32.gmra.mxu0 %v644
      %v787 = vpop.f32.mrf.mxu0
      %v788 = vadd.f32 %v595, %v787
      %v789 = vpop.f32.mrf.mxu0
      %790 = vdwg.mxu0
      %791 = vst.msk [vmem:[#allocation2] sm:$0xff] %vm404, %v713
      %792 = vst.msk [vmem:[#allocation2 + $0x8] sm:$0xff] %vm404, %v718
      %793 = vst.msk [vmem:[#allocation2 + $0x10] sm:$0xff] %vm404, %v723
      %794 = vst.msk [vmem:[#allocation2 + $0x18] sm:$0xff] %vm404, %v728
      %795 = vst.msk [vmem:[#allocation2 + $0x20] sm:$0xff] %vm404, %v733
      %796 = vst.msk [vmem:[#allocation2 + $0x28] sm:$0xff] %vm404, %v738
      %797 = vst.msk [vmem:[#allocation2 + $0x30] sm:$0xff] %vm404, %v743
      %798 = vst.msk [vmem:[#allocation2 + $0x38] sm:$0xff] %vm404, %v748
      %799 = vst.msk [vmem:[#allocation2 + $0x40] sm:$0xff] %vm404, %v753
      %800 = vst.msk [vmem:[#allocation2 + $0x48] sm:$0xff] %vm404, %v758
      %801 = vst.msk [vmem:[#allocation2 + $0x50] sm:$0xff] %vm404, %v763
      %802 = vst.msk [vmem:[#allocation2 + $0x58] sm:$0xff] %vm404, %v768
      %803 = vst.msk [vmem:[#allocation2 + $0x60] sm:$0xff] %vm404, %v773
      %804 = vst.msk [vmem:[#allocation2 + $0x68] sm:$0xff] %vm404, %v778
      %805 = vst.msk [vmem:[#allocation2 + $0x70] sm:$0xff] %vm404, %v783
      %806 = vst.msk [vmem:[#allocation2 + $0x78] sm:$0xff] %vm404, %v788
      %v807 = vld [vmem:[#allocation2] sm:$0xff]
      %v808 = vld [vmem:[#allocation2 + $0x8] sm:$0xff]
      %v809 = vld [vmem:[#allocation2 + $0x10] sm:$0xff]
      %v810 = vld [vmem:[#allocation2 + $0x18] sm:$0xff]
      %v811 = vld [vmem:[#allocation2 + $0x20] sm:$0xff]
      %v812 = vld [vmem:[#allocation2 + $0x28] sm:$0xff]
      %v813 = vld [vmem:[#allocation2 + $0x30] sm:$0xff]
      %v814 = vld [vmem:[#allocation2 + $0x38] sm:$0xff]
      %v815 = vld [vmem:[#allocation2 + $0x40] sm:$0xff]
      %v816 = vld [vmem:[#allocation2 + $0x48] sm:$0xff]
      %v817 = vld [vmem:[#allocation2 + $0x50] sm:$0xff]
      %v818 = vld [vmem:[#allocation2 + $0x58] sm:$0xff]
      %v819 = vld [vmem:[#allocation2 + $0x60] sm:$0xff]
      %v820 = vld [vmem:[#allocation2 + $0x68] sm:$0xff]
      %s821 = scalar_lea.vmem %s337, 24
      %v822 = vld [vmem:[%s821] sm:$0xff]
      %v823 = vld [vmem:[%s821 + $0x8] sm:$0xff]
      %v824 = vld [vmem:[%s821 + $0x18] sm:$0xff]
      %v825 = vld [vmem:[%s821 + $0x20] sm:$0xff]
      %v826 = vld [vmem:[%s821 + $0x30] sm:$0xff]
      %v827 = vld [vmem:[%s821 + $0x38] sm:$0xff]
      %v828 = vld [vmem:[%s821 + $0x48] sm:$0xff]
      %v829 = vld [vmem:[%s821 + $0x50] sm:$0xff]
      %v830 = vld [vmem:[%s821 + $0x60] sm:$0xff]
      %v831 = vld [vmem:[%s821 + $0x68] sm:$0xff]
      %v832 = vld [vmem:[%s821 + $0x78] sm:$0xff]
      %v833 = vld [vmem:[%s821 + $0x80] sm:$0xff]
      %v834 = vld [vmem:[%s821 + $0x90] sm:$0xff]
      %v835 = vld [vmem:[%s821 + $0x98] sm:$0xff]
      %s836 = scalar_lea.vmem %s2, 32
      %v837 = vld [vmem:[%s836] sm:$0xff]
      %v838 = vld [vmem:[%s836 + $0x8] sm:$0xff]
      %v840 = vsel %vm404, %v822, 0
      %v843 = vsel %vm404, %v823, 0
      %v846 = vsel %vm404, %v824, 0
      %v849 = vsel %vm404, %v825, 0
      %v852 = vsel %vm404, %v826, 0
      %v855 = vsel %vm404, %v827, 0
      %v858 = vsel %vm404, %v828, 0
      %v861 = vsel %vm404, %v829, 0
      %v864 = vsel %vm404, %v830, 0
      %v867 = vsel %vm404, %v831, 0
      %v870 = vsel %vm404, %v832, 0
      %v873 = vsel %vm404, %v833, 0
      %v876 = vsel %vm404, %v834, 0
      %v879 = vsel %vm404, %v835, 0
      %881 = vmatprep.subr.mxu0 0.0
      %882 = vmatpush1.msra.mxu0 0.0
      %883 = vmatprep.subr.mxu0 0.0
      %884 = vmatpush1.msra.mxu0 0.0
      %885 = vmatprep.subr.mxu0 0.0
      %886 = vmatpush1.msra.mxu0 0.0
      %887 = vmatprep.subr.mxu0 0.0
      %888 = vmatpush1.msra.mxu0 0.0
      %889 = vmatprep.subr.mxu0 0.0
      %890 = vmatpush1.msra.mxu0 0.0
      %891 = vmatprep.subr.mxu0 0.0
      %892 = vmatpush1.msra.mxu0 0.0
      %893 = vmatprep.subr.mxu0 0.0
      %894 = vmatpush1.msra.mxu0 0.0
      %895 = vmatprep.subr.mxu0 0.0
      %896 = vmatpush1.msra.mxu0 0.0
      %897 = vmatprep.subr.mxu0 0.0
      %898 = vmatpush1.msra.mxu0 0.0
      %899 = vmatprep.subr.mxu0 0.0
      %900 = vmatpush1.msra.mxu0 0.0
      %901 = vmatprep.subr.mxu0 0.0
      %902 = vmatpush1.msra.mxu0 0.0
      %903 = vmatprep.subr.mxu0 0.0
      %904 = vmatpush1.msra.mxu0 0.0
      %905 = vmatprep.subr.mxu0 0.0
      %906 = vmatpush1.msra.mxu0 0.0
      %907 = vmatprep.subr.mxu0 0.0
      %908 = vmatpush1.msra.mxu0 0.0
      %909 = vmatprep.subr.mxu0 0.0
      %910 = vmatpush1.msra.mxu0 %v838
      %911 = vmatprep.subr.mxu0 0.0
      %912 = vmatpush1.msra.mxu0 %v837
      %913 = vmatprep.subr.mxu0 0.0
      %914 = vmatpush2.msra.mxu0 0.0
      %915 = vmatprep.subr.mxu0 0.0
      %916 = vmatpush2.msra.mxu0 0.0
      %917 = vmatprep.subr.mxu0 0.0
      %918 = vmatpush2.msra.mxu0 0.0
      %919 = vmatprep.subr.mxu0 0.0
      %920 = vmatpush2.msra.mxu0 0.0
      %921 = vmatprep.subr.mxu0 0.0
      %922 = vmatpush2.msra.mxu0 0.0
      %923 = vmatprep.subr.mxu0 0.0
      %924 = vmatpush2.msra.mxu0 0.0
      %925 = vmatprep.subr.mxu0 0.0
      %926 = vmatpush2.msra.mxu0 0.0
      %927 = vmatprep.subr.mxu0 0.0
      %928 = vmatpush2.msra.mxu0 0.0
      %929 = vmatprep.subr.mxu0 0.0
      %930 = vmatpush2.msra.mxu0 0.0
      %931 = vmatprep.subr.mxu0 0.0
      %932 = vmatpush2.msra.mxu0 0.0
      %933 = vmatprep.subr.mxu0 0.0
      %934 = vmatpush2.msra.mxu0 0.0
      %935 = vmatprep.subr.mxu0 0.0
      %936 = vmatpush2.msra.mxu0 0.0
      %937 = vmatprep.subr.mxu0 0.0
      %938 = vmatpush2.msra.mxu0 0.0
      %939 = vmatprep.subr.mxu0 0.0
      %940 = vmatpush2.msra.mxu0 0.0
      %941 = vmatprep.subr.mxu0 0.0
      %942 = vmatpush2.msra.mxu0 0.0
      %943 = vmatprep.subr.mxu0 0.0
      %944 = vmatpush2.msra.mxu0 0.0
      %945 = vmatprep.mubr.f32.mxu0 0.0
      %946 = vmatmul.mubr.f32.gmra.mxu0 %v840
      %v947 = vpop.f32.mrf.mxu0
      %v948 = vadd.f32 0.0, %v947
      %v949 = vpop.f32.mrf.mxu0
      %950 = vmatprep.mubr.f32.mxu0 0.0
      %951 = vmatmul.mubr.f32.gmra.mxu0 %v843
      %v952 = vpop.f32.mrf.mxu0
      %v953 = vadd.f32 0.0, %v952
      %v954 = vpop.f32.mrf.mxu0
      %955 = vmatprep.mubr.f32.mxu0 0.0
      %956 = vmatmul.mubr.f32.gmra.mxu0 %v846
      %v957 = vpop.f32.mrf.mxu0
      %v958 = vadd.f32 0.0, %v957
      %v959 = vpop.f32.mrf.mxu0
      %960 = vmatprep.mubr.f32.mxu0 0.0
      %961 = vmatmul.mubr.f32.gmra.mxu0 %v849
      %v962 = vpop.f32.mrf.mxu0
      %v963 = vadd.f32 0.0, %v962
      %v964 = vpop.f32.mrf.mxu0
      %965 = vmatprep.mubr.f32.mxu0 0.0
      %966 = vmatmul.mubr.f32.gmra.mxu0 %v852
      %v967 = vpop.f32.mrf.mxu0
      %v968 = vadd.f32 0.0, %v967
      %v969 = vpop.f32.mrf.mxu0
      %970 = vmatprep.mubr.f32.mxu0 0.0
      %971 = vmatmul.mubr.f32.gmra.mxu0 %v855
      %v972 = vpop.f32.mrf.mxu0
      %v973 = vadd.f32 0.0, %v972
      %v974 = vpop.f32.mrf.mxu0
      %975 = vmatprep.mubr.f32.mxu0 0.0
      %976 = vmatmul.mubr.f32.gmra.mxu0 %v858
      %v977 = vpop.f32.mrf.mxu0
      %v978 = vadd.f32 0.0, %v977
      %v979 = vpop.f32.mrf.mxu0
      %980 = vmatprep.mubr.f32.mxu0 0.0
      %981 = vmatmul.mubr.f32.gmra.mxu0 %v861
      %v982 = vpop.f32.mrf.mxu0
      %v983 = vadd.f32 0.0, %v982
      %v984 = vpop.f32.mrf.mxu0
      %985 = vmatprep.mubr.f32.mxu0 0.0
      %986 = vmatmul.mubr.f32.gmra.mxu0 %v864
      %v987 = vpop.f32.mrf.mxu0
      %v988 = vadd.f32 0.0, %v987
      %v989 = vpop.f32.mrf.mxu0
      %990 = vmatprep.mubr.f32.mxu0 0.0
      %991 = vmatmul.mubr.f32.gmra.mxu0 %v867
      %v992 = vpop.f32.mrf.mxu0
      %v993 = vadd.f32 0.0, %v992
      %v994 = vpop.f32.mrf.mxu0
      %995 = vmatprep.mubr.f32.mxu0 0.0
      %996 = vmatmul.mubr.f32.gmra.mxu0 %v870
      %v997 = vpop.f32.mrf.mxu0
      %v998 = vadd.f32 0.0, %v997
      %v999 = vpop.f32.mrf.mxu0
      %1000 = vmatprep.mubr.f32.mxu0 0.0
      %1001 = vmatmul.mubr.f32.gmra.mxu0 %v873
      %v1002 = vpop.f32.mrf.mxu0
      %v1003 = vadd.f32 0.0, %v1002
      %v1004 = vpop.f32.mrf.mxu0
      %1005 = vmatprep.mubr.f32.mxu0 0.0
      %1006 = vmatmul.mubr.f32.gmra.mxu0 %v876
      %v1007 = vpop.f32.mrf.mxu0
      %v1008 = vadd.f32 0.0, %v1007
      %v1009 = vpop.f32.mrf.mxu0
      %1010 = vmatprep.mubr.f32.mxu0 0.0
      %1011 = vmatmul.mubr.f32.gmra.mxu0 %v879
      %v1012 = vpop.f32.mrf.mxu0
      %v1013 = vadd.f32 0.0, %v1012
      %v1014 = vpop.f32.mrf.mxu0
      %1015 = vdwg.mxu0
      %v1016 = vadd.f32 %v807, %v948
      %v1017 = vadd.f32 %v808, %v953
      %v1018 = vadd.f32 %v809, %v958
      %v1019 = vadd.f32 %v810, %v963
      %v1020 = vadd.f32 %v811, %v968
      %v1021 = vadd.f32 %v812, %v973
      %v1022 = vadd.f32 %v813, %v978
      %v1023 = vadd.f32 %v814, %v983
      %v1024 = vadd.f32 %v815, %v988
      %v1025 = vadd.f32 %v816, %v993
      %v1026 = vadd.f32 %v817, %v998
      %v1027 = vadd.f32 %v818, %v1003
      %v1028 = vadd.f32 %v819, %v1008
      %v1029 = vadd.f32 %v820, %v1013
      %1030 = vst.msk [vmem:[#allocation2] sm:$0xff] %vm404, %v1016
      %1031 = vst.msk [vmem:[#allocation2 + $0x8] sm:$0xff] %vm404, %v1017
      %1032 = vst.msk [vmem:[#allocation2 + $0x10] sm:$0xff] %vm404, %v1018
      %1033 = vst.msk [vmem:[#allocation2 + $0x18] sm:$0xff] %vm404, %v1019
      %1034 = vst.msk [vmem:[#allocation2 + $0x20] sm:$0xff] %vm404, %v1020
      %1035 = vst.msk [vmem:[#allocation2 + $0x28] sm:$0xff] %vm404, %v1021
      %1036 = vst.msk [vmem:[#allocation2 + $0x30] sm:$0xff] %vm404, %v1022
      %1037 = vst.msk [vmem:[#allocation2 + $0x38] sm:$0xff] %vm404, %v1023
      %1038 = vst.msk [vmem:[#allocation2 + $0x40] sm:$0xff] %vm404, %v1024
      %1039 = vst.msk [vmem:[#allocation2 + $0x48] sm:$0xff] %vm404, %v1025
      %1040 = vst.msk [vmem:[#allocation2 + $0x50] sm:$0xff] %vm404, %v1026
      %1041 = vst.msk [vmem:[#allocation2 + $0x58] sm:$0xff] %vm404, %v1027
      %1042 = vst.msk [vmem:[#allocation2 + $0x60] sm:$0xff] %vm404, %v1028
      %1043 = vst.msk [vmem:[#allocation2 + $0x68] sm:$0xff] %vm404, %v1029
      %v1044 = vld [vmem:[#allocation2] sm:$0xff]
      %v1045 = vld [vmem:[#allocation2 + $0x8] sm:$0xff]
      %v1046 = vld [vmem:[#allocation2 + $0x10] sm:$0xff]
      %v1047 = vld [vmem:[#allocation2 + $0x18] sm:$0xff]
      %v1048 = vld [vmem:[#allocation2 + $0x20] sm:$0xff]
      %v1049 = vld [vmem:[#allocation2 + $0x28] sm:$0xff]
      %v1050 = vld [vmem:[#allocation2 + $0x30] sm:$0xff]
      %v1051 = vld [vmem:[#allocation2 + $0x38] sm:$0xff]
      %v1052 = vld [vmem:[#allocation2 + $0x40] sm:$0xff]
      %v1053 = vld [vmem:[#allocation2 + $0x48] sm:$0xff]
      %v1054 = vld [vmem:[#allocation2 + $0x50] sm:$0xff]
      %v1055 = vld [vmem:[#allocation2 + $0x58] sm:$0xff]
      %v1056 = vld [vmem:[#allocation2 + $0x60] sm:$0xff]
      %v1057 = vld [vmem:[#allocation2 + $0x68] sm:$0xff]
      %v1058 = vld [vmem:[%s821 + $0x1] sm:$0xff]
      %v1059 = vld [vmem:[%s821 + $0x9] sm:$0xff]
      %v1060 = vld [vmem:[%s821 + $0x19] sm:$0xff]
      %v1061 = vld [vmem:[%s821 + $0x21] sm:$0xff]
      %v1062 = vld [vmem:[%s821 + $0x31] sm:$0xff]
      %v1063 = vld [vmem:[%s821 + $0x39] sm:$0xff]
      %v1064 = vld [vmem:[%s821 + $0x49] sm:$0xff]
      %v1065 = vld [vmem:[%s821 + $0x51] sm:$0xff]
      %v1066 = vld [vmem:[%s821 + $0x61] sm:$0xff]
      %v1067 = vld [vmem:[%s821 + $0x69] sm:$0xff]
      %v1068 = vld [vmem:[%s821 + $0x79] sm:$0xff]
      %v1069 = vld [vmem:[%s821 + $0x81] sm:$0xff]
      %v1070 = vld [vmem:[%s821 + $0x91] sm:$0xff]
      %v1071 = vld [vmem:[%s821 + $0x99] sm:$0xff]
      %s1072 = scalar_lea.vmem %s2, 48
      %v1073 = vld [vmem:[%s1072] sm:$0xff]
      %v1074 = vld [vmem:[%s1072 + $0x8] sm:$0xff]
      %v1076 = vsel %vm404, %v1058, 0
      %v1079 = vsel %vm404, %v1059, 0
      %v1082 = vsel %vm404, %v1060, 0
      %v1085 = vsel %vm404, %v1061, 0
      %v1088 = vsel %vm404, %v1062, 0
      %v1091 = vsel %vm404, %v1063, 0
      %v1094 = vsel %vm404, %v1064, 0
      %v1097 = vsel %vm404, %v1065, 0
      %v1100 = vsel %vm404, %v1066, 0
      %v1103 = vsel %vm404, %v1067, 0
      %v1106 = vsel %vm404, %v1068, 0
      %v1109 = vsel %vm404, %v1069, 0
      %v1112 = vsel %vm404, %v1070, 0
      %v1115 = vsel %vm404, %v1071, 0
      %1117 = vmatprep.subr.mxu0 0.0
      %1118 = vmatpush1.msra.mxu0 0.0
      %1119 = vmatprep.subr.mxu0 0.0
      %1120 = vmatpush1.msra.mxu0 0.0
      %1121 = vmatprep.subr.mxu0 0.0
      %1122 = vmatpush1.msra.mxu0 0.0
      %1123 = vmatprep.subr.mxu0 0.0
      %1124 = vmatpush1.msra.mxu0 0.0
      %1125 = vmatprep.subr.mxu0 0.0
      %1126 = vmatpush1.msra.mxu0 0.0
      %1127 = vmatprep.subr.mxu0 0.0
      %1128 = vmatpush1.msra.mxu0 0.0
      %1129 = vmatprep.subr.mxu0 0.0
      %1130 = vmatpush1.msra.mxu0 0.0
      %1131 = vmatprep.subr.mxu0 0.0
      %1132 = vmatpush1.msra.mxu0 0.0
      %1133 = vmatprep.subr.mxu0 0.0
      %1134 = vmatpush1.msra.mxu0 0.0
      %1135 = vmatprep.subr.mxu0 0.0
      %1136 = vmatpush1.msra.mxu0 0.0
      %1137 = vmatprep.subr.mxu0 0.0
      %1138 = vmatpush1.msra.mxu0 0.0
      %1139 = vmatprep.subr.mxu0 0.0
      %1140 = vmatpush1.msra.mxu0 0.0
      %1141 = vmatprep.subr.mxu0 0.0
      %1142 = vmatpush1.msra.mxu0 0.0
      %1143 = vmatprep.subr.mxu0 0.0
      %1144 = vmatpush1.msra.mxu0 0.0
      %1145 = vmatprep.subr.mxu0 0.0
      %1146 = vmatpush1.msra.mxu0 %v1074
      %1147 = vmatprep.subr.mxu0 0.0
      %1148 = vmatpush1.msra.mxu0 %v1073
      %1149 = vmatprep.subr.mxu0 0.0
      %1150 = vmatpush2.msra.mxu0 0.0
      %1151 = vmatprep.subr.mxu0 0.0
      %1152 = vmatpush2.msra.mxu0 0.0
      %1153 = vmatprep.subr.mxu0 0.0
      %1154 = vmatpush2.msra.mxu0 0.0
      %1155 = vmatprep.subr.mxu0 0.0
      %1156 = vmatpush2.msra.mxu0 0.0
      %1157 = vmatprep.subr.mxu0 0.0
      %1158 = vmatpush2.msra.mxu0 0.0
      %1159 = vmatprep.subr.mxu0 0.0
      %1160 = vmatpush2.msra.mxu0 0.0
      %1161 = vmatprep.subr.mxu0 0.0
      %1162 = vmatpush2.msra.mxu0 0.0
      %1163 = vmatprep.subr.mxu0 0.0
      %1164 = vmatpush2.msra.mxu0 0.0
      %1165 = vmatprep.subr.mxu0 0.0
      %1166 = vmatpush2.msra.mxu0 0.0
      %1167 = vmatprep.subr.mxu0 0.0
      %1168 = vmatpush2.msra.mxu0 0.0
      %1169 = vmatprep.subr.mxu0 0.0
      %1170 = vmatpush2.msra.mxu0 0.0
      %1171 = vmatprep.subr.mxu0 0.0
      %1172 = vmatpush2.msra.mxu0 0.0
      %1173 = vmatprep.subr.mxu0 0.0
      %1174 = vmatpush2.msra.mxu0 0.0
      %1175 = vmatprep.subr.mxu0 0.0
      %1176 = vmatpush2.msra.mxu0 0.0
      %1177 = vmatprep.subr.mxu0 0.0
      %1178 = vmatpush2.msra.mxu0 0.0
      %1179 = vmatprep.subr.mxu0 0.0
      %1180 = vmatpush2.msra.mxu0 0.0
      %1181 = vmatprep.mubr.f32.mxu0 0.0
      %1182 = vmatmul.mubr.f32.gmra.mxu0 %v1076
      %v1183 = vpop.f32.mrf.mxu0
      %v1184 = vadd.f32 0.0, %v1183
      %v1185 = vpop.f32.mrf.mxu0
      %1186 = vmatprep.mubr.f32.mxu0 0.0
      %1187 = vmatmul.mubr.f32.gmra.mxu0 %v1079
      %v1188 = vpop.f32.mrf.mxu0
      %v1189 = vadd.f32 0.0, %v1188
      %v1190 = vpop.f32.mrf.mxu0
      %1191 = vmatprep.mubr.f32.mxu0 0.0
      %1192 = vmatmul.mubr.f32.gmra.mxu0 %v1082
      %v1193 = vpop.f32.mrf.mxu0
      %v1194 = vadd.f32 0.0, %v1193
      %v1195 = vpop.f32.mrf.mxu0
      %1196 = vmatprep.mubr.f32.mxu0 0.0
      %1197 = vmatmul.mubr.f32.gmra.mxu0 %v1085
      %v1198 = vpop.f32.mrf.mxu0
      %v1199 = vadd.f32 0.0, %v1198
      %v1200 = vpop.f32.mrf.mxu0
      %1201 = vmatprep.mubr.f32.mxu0 0.0
      %1202 = vmatmul.mubr.f32.gmra.mxu0 %v1088
      %v1203 = vpop.f32.mrf.mxu0
      %v1204 = vadd.f32 0.0, %v1203
      %v1205 = vpop.f32.mrf.mxu0
      %1206 = vmatprep.mubr.f32.mxu0 0.0
      %1207 = vmatmul.mubr.f32.gmra.mxu0 %v1091
      %v1208 = vpop.f32.mrf.mxu0
      %v1209 = vadd.f32 0.0, %v1208
      %v1210 = vpop.f32.mrf.mxu0
      %1211 = vmatprep.mubr.f32.mxu0 0.0
      %1212 = vmatmul.mubr.f32.gmra.mxu0 %v1094
      %v1213 = vpop.f32.mrf.mxu0
      %v1214 = vadd.f32 0.0, %v1213
      %v1215 = vpop.f32.mrf.mxu0
      %1216 = vmatprep.mubr.f32.mxu0 0.0
      %1217 = vmatmul.mubr.f32.gmra.mxu0 %v1097
      %v1218 = vpop.f32.mrf.mxu0
      %v1219 = vadd.f32 0.0, %v1218
      %v1220 = vpop.f32.mrf.mxu0
      %1221 = vmatprep.mubr.f32.mxu0 0.0
      %1222 = vmatmul.mubr.f32.gmra.mxu0 %v1100
      %v1223 = vpop.f32.mrf.mxu0
      %v1224 = vadd.f32 0.0, %v1223
      %v1225 = vpop.f32.mrf.mxu0
      %1226 = vmatprep.mubr.f32.mxu0 0.0
      %1227 = vmatmul.mubr.f32.gmra.mxu0 %v1103
      %v1228 = vpop.f32.mrf.mxu0
      %v1229 = vadd.f32 0.0, %v1228
      %v1230 = vpop.f32.mrf.mxu0
      %1231 = vmatprep.mubr.f32.mxu0 0.0
      %1232 = vmatmul.mubr.f32.gmra.mxu0 %v1106
      %v1233 = vpop.f32.mrf.mxu0
      %v1234 = vadd.f32 0.0, %v1233
      %v1235 = vpop.f32.mrf.mxu0
      %1236 = vmatprep.mubr.f32.mxu0 0.0
      %1237 = vmatmul.mubr.f32.gmra.mxu0 %v1109
      %v1238 = vpop.f32.mrf.mxu0
      %v1239 = vadd.f32 0.0, %v1238
      %v1240 = vpop.f32.mrf.mxu0
      %1241 = vmatprep.mubr.f32.mxu0 0.0
      %1242 = vmatmul.mubr.f32.gmra.mxu0 %v1112
      %v1243 = vpop.f32.mrf.mxu0
      %v1244 = vadd.f32 0.0, %v1243
      %v1245 = vpop.f32.mrf.mxu0
      %1246 = vmatprep.mubr.f32.mxu0 0.0
      %1247 = vmatmul.mubr.f32.gmra.mxu0 %v1115
      %v1248 = vpop.f32.mrf.mxu0
      %v1249 = vadd.f32 0.0, %v1248
      %v1250 = vpop.f32.mrf.mxu0
      %1251 = vdwg.mxu0
      %v1252 = vadd.f32 %v1044, %v1184
      %v1253 = vadd.f32 %v1045, %v1189
      %v1254 = vadd.f32 %v1046, %v1194
      %v1255 = vadd.f32 %v1047, %v1199
      %v1256 = vadd.f32 %v1048, %v1204
      %v1257 = vadd.f32 %v1049, %v1209
      %v1258 = vadd.f32 %v1050, %v1214
      %v1259 = vadd.f32 %v1051, %v1219
      %v1260 = vadd.f32 %v1052, %v1224
      %v1261 = vadd.f32 %v1053, %v1229
      %v1262 = vadd.f32 %v1054, %v1234
      %v1263 = vadd.f32 %v1055, %v1239
      %v1264 = vadd.f32 %v1056, %v1244
      %v1265 = vadd.f32 %v1057, %v1249
      %1266 = vst.msk [vmem:[#allocation2] sm:$0xff] %vm404, %v1252
      %1267 = vst.msk [vmem:[#allocation2 + $0x8] sm:$0xff] %vm404, %v1253
      %1268 = vst.msk [vmem:[#allocation2 + $0x10] sm:$0xff] %vm404, %v1254
      %1269 = vst.msk [vmem:[#allocation2 + $0x18] sm:$0xff] %vm404, %v1255
      %1270 = vst.msk [vmem:[#allocation2 + $0x20] sm:$0xff] %vm404, %v1256
      %1271 = vst.msk [vmem:[#allocation2 + $0x28] sm:$0xff] %vm404, %v1257
      %1272 = vst.msk [vmem:[#allocation2 + $0x30] sm:$0xff] %vm404, %v1258
      %1273 = vst.msk [vmem:[#allocation2 + $0x38] sm:$0xff] %vm404, %v1259
      %1274 = vst.msk [vmem:[#allocation2 + $0x40] sm:$0xff] %vm404, %v1260
      %1275 = vst.msk [vmem:[#allocation2 + $0x48] sm:$0xff] %vm404, %v1261
      %1276 = vst.msk [vmem:[#allocation2 + $0x50] sm:$0xff] %vm404, %v1262
      %1277 = vst.msk [vmem:[#allocation2 + $0x58] sm:$0xff] %vm404, %v1263
      %1278 = vst.msk [vmem:[#allocation2 + $0x60] sm:$0xff] %vm404, %v1264
      %1279 = vst.msk [vmem:[#allocation2 + $0x68] sm:$0xff] %vm404, %v1265
      %v1280 = vld [vmem:[#allocation2 + $0x70] sm:$0xff]
      %v1281 = vld [vmem:[#allocation2 + $0x78] sm:$0xff]
      %v1282 = vld [vmem:[%s354] sm:$0xff]
      %v1283 = vld [vmem:[%s354 + $0x8] sm:$0xff]
      %v1284 = vld [vmem:[%s836] sm:$0xff]
      %v1285 = vld [vmem:[%s836 + $0x8] sm:$0xff]
      %v1287 = vsel %vm404, %v1282, 0
      %v1290 = vsel %vm404, %v1283, 0
      %1292 = vmatprep.subr.mxu0 0.0
      %1293 = vmatpush1.msra.mxu0 0.0
      %1294 = vmatprep.subr.mxu0 0.0
      %1295 = vmatpush1.msra.mxu0 0.0
      %1296 = vmatprep.subr.mxu0 0.0
      %1297 = vmatpush1.msra.mxu0 0.0
      %1298 = vmatprep.subr.mxu0 0.0
      %1299 = vmatpush1.msra.mxu0 0.0
      %1300 = vmatprep.subr.mxu0 0.0
      %1301 = vmatpush1.msra.mxu0 0.0
      %1302 = vmatprep.subr.mxu0 0.0
      %1303 = vmatpush1.msra.mxu0 0.0
      %1304 = vmatprep.subr.mxu0 0.0
      %1305 = vmatpush1.msra.mxu0 0.0
      %1306 = vmatprep.subr.mxu0 0.0
      %1307 = vmatpush1.msra.mxu0 0.0
      %1308 = vmatprep.subr.mxu0 0.0
      %1309 = vmatpush1.msra.mxu0 0.0
      %1310 = vmatprep.subr.mxu0 0.0
      %1311 = vmatpush1.msra.mxu0 0.0
      %1312 = vmatprep.subr.mxu0 0.0
      %1313 = vmatpush1.msra.mxu0 0.0
      %1314 = vmatprep.subr.mxu0 0.0
      %1315 = vmatpush1.msra.mxu0 0.0
      %1316 = vmatprep.subr.mxu0 0.0
      %1317 = vmatpush1.msra.mxu0 0.0
      %1318 = vmatprep.subr.mxu0 0.0
      %1319 = vmatpush1.msra.mxu0 0.0
      %1320 = vmatprep.subr.mxu0 0.0
      %1321 = vmatpush1.msra.mxu0 %v1285
      %1322 = vmatprep.subr.mxu0 0.0
      %1323 = vmatpush1.msra.mxu0 %v1284
      %1324 = vmatprep.subr.mxu0 0.0
      %1325 = vmatpush2.msra.mxu0 0.0
      %1326 = vmatprep.subr.mxu0 0.0
      %1327 = vmatpush2.msra.mxu0 0.0
      %1328 = vmatprep.subr.mxu0 0.0
      %1329 = vmatpush2.msra.mxu0 0.0
      %1330 = vmatprep.subr.mxu0 0.0
      %1331 = vmatpush2.msra.mxu0 0.0
      %1332 = vmatprep.subr.mxu0 0.0
      %1333 = vmatpush2.msra.mxu0 0.0
      %1334 = vmatprep.subr.mxu0 0.0
      %1335 = vmatpush2.msra.mxu0 0.0
      %1336 = vmatprep.subr.mxu0 0.0
      %1337 = vmatpush2.msra.mxu0 0.0
      %1338 = vmatprep.subr.mxu0 0.0
      %1339 = vmatpush2.msra.mxu0 0.0
      %1340 = vmatprep.subr.mxu0 0.0
      %1341 = vmatpush2.msra.mxu0 0.0
      %1342 = vmatprep.subr.mxu0 0.0
      %1343 = vmatpush2.msra.mxu0 0.0
      %1344 = vmatprep.subr.mxu0 0.0
      %1345 = vmatpush2.msra.mxu0 0.0
      %1346 = vmatprep.subr.mxu0 0.0
      %1347 = vmatpush2.msra.mxu0 0.0
      %1348 = vmatprep.subr.mxu0 0.0
      %1349 = vmatpush2.msra.mxu0 0.0
      %1350 = vmatprep.subr.mxu0 0.0
      %1351 = vmatpush2.msra.mxu0 0.0
      %1352 = vmatprep.subr.mxu0 0.0
      %1353 = vmatpush2.msra.mxu0 0.0
      %1354 = vmatprep.subr.mxu0 0.0
      %1355 = vmatpush2.msra.mxu0 0.0
      %1356 = vmatprep.mubr.f32.mxu0 0.0
      %1357 = vmatmul.mubr.f32.gmra.mxu0 %v1287
      %v1358 = vpop.f32.mrf.mxu0
      %v1359 = vadd.f32 0.0, %v1358
      %v1360 = vpop.f32.mrf.mxu0
      %1361 = vmatprep.mubr.f32.mxu0 0.0
      %1362 = vmatmul.mubr.f32.gmra.mxu0 %v1290
      %v1363 = vpop.f32.mrf.mxu0
      %v1364 = vadd.f32 0.0, %v1363
      %v1365 = vpop.f32.mrf.mxu0
      %1366 = vdwg.mxu0
      %v1367 = vadd.f32 %v1280, %v1359
      %v1368 = vadd.f32 %v1281, %v1364
      %1369 = vst.msk [vmem:[#allocation2 + $0x70] sm:$0xff] %vm404, %v1367
      %1370 = vst.msk [vmem:[#allocation2 + $0x78] sm:$0xff] %vm404, %v1368
      %v1371 = vld [vmem:[#allocation2 + $0x70] sm:$0xff]
      %v1372 = vld [vmem:[#allocation2 + $0x78] sm:$0xff]
      %v1373 = vld [vmem:[%s354 + $0x1] sm:$0xff]
      %v1374 = vld [vmem:[%s354 + $0x9] sm:$0xff]
      %v1375 = vld [vmem:[%s1072] sm:$0xff]
      %v1376 = vld [vmem:[%s1072 + $0x8] sm:$0xff]
      %v1378 = vsel %vm404, %v1373, 0
      %v1381 = vsel %vm404, %v1374, 0
      %1383 = vmatprep.subr.mxu0 0.0
      %1384 = vmatpush1.msra.mxu0 0.0
      %1385 = vmatprep.subr.mxu0 0.0
      %1386 = vmatpush1.msra.mxu0 0.0
      %1387 = vmatprep.subr.mxu0 0.0
      %1388 = vmatpush1.msra.mxu0 0.0
      %1389 = vmatprep.subr.mxu0 0.0
      %1390 = vmatpush1.msra.mxu0 0.0
      %1391 = vmatprep.subr.mxu0 0.0
      %1392 = vmatpush1.msra.mxu0 0.0
      %1393 = vmatprep.subr.mxu0 0.0
      %1394 = vmatpush1.msra.mxu0 0.0
      %1395 = vmatprep.subr.mxu0 0.0
      %1396 = vmatpush1.msra.mxu0 0.0
      %1397 = vmatprep.subr.mxu0 0.0
      %1398 = vmatpush1.msra.mxu0 0.0
      %1399 = vmatprep.subr.mxu0 0.0
      %1400 = vmatpush1.msra.mxu0 0.0
      %1401 = vmatprep.subr.mxu0 0.0
      %1402 = vmatpush1.msra.mxu0 0.0
      %1403 = vmatprep.subr.mxu0 0.0
      %1404 = vmatpush1.msra.mxu0 0.0
      %1405 = vmatprep.subr.mxu0 0.0
      %1406 = vmatpush1.msra.mxu0 0.0
      %1407 = vmatprep.subr.mxu0 0.0
      %1408 = vmatpush1.msra.mxu0 0.0
      %1409 = vmatprep.subr.mxu0 0.0
      %1410 = vmatpush1.msra.mxu0 0.0
      %1411 = vmatprep.subr.mxu0 0.0
      %1412 = vmatpush1.msra.mxu0 %v1376
      %1413 = vmatprep.subr.mxu0 0.0
      %1414 = vmatpush1.msra.mxu0 %v1375
      %1415 = vmatprep.subr.mxu0 0.0
      %1416 = vmatpush2.msra.mxu0 0.0
      %1417 = vmatprep.subr.mxu0 0.0
      %1418 = vmatpush2.msra.mxu0 0.0
      %1419 = vmatprep.subr.mxu0 0.0
      %1420 = vmatpush2.msra.mxu0 0.0
      %1421 = vmatprep.subr.mxu0 0.0
      %1422 = vmatpush2.msra.mxu0 0.0
      %1423 = vmatprep.subr.mxu0 0.0
      %1424 = vmatpush2.msra.mxu0 0.0
      %1425 = vmatprep.subr.mxu0 0.0
      %1426 = vmatpush2.msra.mxu0 0.0
      %1427 = vmatprep.subr.mxu0 0.0
      %1428 = vmatpush2.msra.mxu0 0.0
      %1429 = vmatprep.subr.mxu0 0.0
      %1430 = vmatpush2.msra.mxu0 0.0
      %1431 = vmatprep.subr.mxu0 0.0
      %1432 = vmatpush2.msra.mxu0 0.0
      %1433 = vmatprep.subr.mxu0 0.0
      %1434 = vmatpush2.msra.mxu0 0.0
      %1435 = vmatprep.subr.mxu0 0.0
      %1436 = vmatpush2.msra.mxu0 0.0
      %1437 = vmatprep.subr.mxu0 0.0
      %1438 = vmatpush2.msra.mxu0 0.0
      %1439 = vmatprep.subr.mxu0 0.0
      %1440 = vmatpush2.msra.mxu0 0.0
      %1441 = vmatprep.subr.mxu0 0.0
      %1442 = vmatpush2.msra.mxu0 0.0
      %1443 = vmatprep.subr.mxu0 0.0
      %1444 = vmatpush2.msra.mxu0 0.0
      %1445 = vmatprep.subr.mxu0 0.0
      %1446 = vmatpush2.msra.mxu0 0.0
      %1447 = vmatprep.mubr.f32.mxu0 0.0
      %1448 = vmatmul.mubr.f32.gmra.mxu0 %v1378
      %v1449 = vpop.f32.mrf.mxu0
      %v1450 = vadd.f32 0.0, %v1449
      %v1451 = vpop.f32.mrf.mxu0
      %1452 = vmatprep.mubr.f32.mxu0 0.0
      %1453 = vmatmul.mubr.f32.gmra.mxu0 %v1381
      %v1454 = vpop.f32.mrf.mxu0
      %v1455 = vadd.f32 0.0, %v1454
      %v1456 = vpop.f32.mrf.mxu0
      %1457 = vdwg.mxu0
      %v1458 = vadd.f32 %v1371, %v1450
      %v1459 = vadd.f32 %v1372, %v1455
      %1460 = vst.msk [vmem:[#allocation2 + $0x70] sm:$0xff] %vm404, %v1458
      %1461 = vst.msk [vmem:[#allocation2 + $0x78] sm:$0xff] %vm404, %v1459
      %v1462 = vld [vmem:[#allocation2] sm:$0xff]
      %v1463 = vld [vmem:[#allocation2 + $0x8] sm:$0xff]
      %v1464 = vld [vmem:[#allocation2 + $0x10] sm:$0xff]
      %v1465 = vld [vmem:[#allocation2 + $0x18] sm:$0xff]
      %v1466 = vld [vmem:[#allocation2 + $0x20] sm:$0xff]
      %v1467 = vld [vmem:[#allocation2 + $0x28] sm:$0xff]
      %v1468 = vld [vmem:[#allocation2 + $0x30] sm:$0xff]
      %v1469 = vld [vmem:[#allocation2 + $0x38] sm:$0xff]
      %v1470 = vld [vmem:[#allocation2 + $0x40] sm:$0xff]
      %v1471 = vld [vmem:[#allocation2 + $0x48] sm:$0xff]
      %v1472 = vld [vmem:[#allocation2 + $0x50] sm:$0xff]
      %v1473 = vld [vmem:[#allocation2 + $0x58] sm:$0xff]
      %v1474 = vld [vmem:[#allocation2 + $0x60] sm:$0xff]
      %v1475 = vld [vmem:[#allocation2 + $0x68] sm:$0xff]
      %v1476 = vld [vmem:[#allocation2 + $0x70] sm:$0xff]
      %v1477 = vld [vmem:[#allocation2 + $0x78] sm:$0xff]
      %v1478 = vld [vmem:[%s3] sm:$0x1]
      %v1480 = vlaneseq
      %v1481 = vshrl.u32 %v1480, 7
      %v1482 = vsub.s32 0, %v1481
      %v1483 = vrot.slane %v1478, %v1482
      %v1485 = vadd.f32 %v1462, %v1483
      %v1486 = vadd.f32 %v1463, %v1483
      %v1487 = vadd.f32 %v1464, %v1483
      %v1488 = vadd.f32 %v1465, %v1483
      %v1489 = vadd.f32 %v1466, %v1483
      %v1490 = vadd.f32 %v1467, %v1483
      %v1491 = vadd.f32 %v1468, %v1483
      %v1492 = vadd.f32 %v1469, %v1483
      %v1493 = vadd.f32 %v1470, %v1483
      %v1494 = vadd.f32 %v1471, %v1483
      %v1495 = vadd.f32 %v1472, %v1483
      %v1496 = vadd.f32 %v1473, %v1483
      %v1497 = vadd.f32 %v1474, %v1483
      %v1498 = vadd.f32 %v1475, %v1483
      %v1499 = vadd.f32 %v1476, %v1483
      %v1500 = vadd.f32 %v1477, %v1483
      %v1501 = vmul.f32 %v1485, 0.1
      %v1502 = vmul.f32 %v1486, 0.1
      %v1503 = vmul.f32 %v1487, 0.1
      %v1504 = vmul.f32 %v1488, 0.1
      %v1505 = vmul.f32 %v1489, 0.1
      %v1506 = vmul.f32 %v1490, 0.1
      %v1507 = vmul.f32 %v1491, 0.1
      %v1508 = vmul.f32 %v1492, 0.1
      %v1509 = vmul.f32 %v1493, 0.1
      %v1510 = vmul.f32 %v1494, 0.1
      %v1511 = vmul.f32 %v1495, 0.1
      %v1512 = vmul.f32 %v1496, 0.1
      %v1513 = vmul.f32 %v1497, 0.1
      %v1514 = vmul.f32 %v1498, 0.1
      %v1515 = vmul.f32 %v1499, 0.1
      %v1516 = vmul.f32 %v1500, 0.1
      %v1517 = vmax.f32 %v1485, %v1501
      %v1518 = vmax.f32 %v1486, %v1502
      %v1519 = vmax.f32 %v1487, %v1503
      %v1520 = vmax.f32 %v1488, %v1504
      %v1521 = vmax.f32 %v1489, %v1505
      %v1522 = vmax.f32 %v1490, %v1506
      %v1523 = vmax.f32 %v1491, %v1507
      %v1524 = vmax.f32 %v1492, %v1508
      %v1525 = vmax.f32 %v1493, %v1509
      %v1526 = vmax.f32 %v1494, %v1510
      %v1527 = vmax.f32 %v1495, %v1511
      %v1528 = vmax.f32 %v1496, %v1512
      %v1529 = vmax.f32 %v1497, %v1513
      %v1530 = vmax.f32 %v1498, %v1514
      %v1531 = vmax.f32 %v1499, %v1515
      %v1532 = vmax.f32 %v1500, %v1516
      %v1533 = vld [vmem:[%s4] sm:$0xff]
      %v1534 = vld [vmem:[%s5] sm:$0x1]
      %v1536 = vlaneseq
      %v1537 = vshrl.u32 %v1536, 7
      %v1538 = vsub.s32 0, %v1537
      %v1539 = vrot.slane %v1534, %v1538
      %vm1541 = vcmask 64512
      %v1543 = vsel %vm1541, %v1517, 0
      %v1546 = vsel %vm1541, %v1518, 0
      %v1549 = vsel %vm1541, %v1519, 0
      %v1552 = vsel %vm1541, %v1520, 0
      %v1555 = vsel %vm1541, %v1521, 0
      %v1558 = vsel %vm1541, %v1522, 0
      %v1561 = vsel %vm1541, %v1523, 0
      %v1564 = vsel %vm1541, %v1524, 0
      %v1567 = vsel %vm1541, %v1525, 0
      %v1570 = vsel %vm1541, %v1526, 0
      %v1573 = vsel %vm1541, %v1527, 0
      %v1576 = vsel %vm1541, %v1528, 0
      %v1579 = vsel %vm1541, %v1529, 0
      %v1582 = vsel %vm1541, %v1530, 0
      %v1585 = vsel %vm1541, %v1531, 0
      %v1588 = vsel %vm1541, %v1532, 0
      %1590 = vmatprep.subr.mxu0 0.0
      %1591 = vmatpush1.msra.mxu0 0.0
      %1592 = vmatprep.subr.mxu0 0.0
      %1593 = vmatpush1.msra.mxu0 0.0
      %1594 = vmatprep.subr.mxu0 0.0
      %1595 = vmatpush1.msra.mxu0 0.0
      %1596 = vmatprep.subr.mxu0 0.0
      %1597 = vmatpush1.msra.mxu0 0.0
      %1598 = vmatprep.subr.mxu0 0.0
      %1599 = vmatpush1.msra.mxu0 0.0
      %1600 = vmatprep.subr.mxu0 0.0
      %1601 = vmatpush1.msra.mxu0 0.0
      %1602 = vmatprep.subr.mxu0 0.0
      %1603 = vmatpush1.msra.mxu0 0.0
      %1604 = vmatprep.subr.mxu0 0.0
      %1605 = vmatpush1.msra.mxu0 0.0
      %1606 = vmatprep.subr.mxu0 0.0
      %1607 = vmatpush1.msra.mxu0 0.0
      %1608 = vmatprep.subr.mxu0 0.0
      %1609 = vmatpush1.msra.mxu0 0.0
      %1610 = vmatprep.subr.mxu0 0.0
      %1611 = vmatpush1.msra.mxu0 0.0
      %1612 = vmatprep.subr.mxu0 0.0
      %1613 = vmatpush1.msra.mxu0 0.0
      %1614 = vmatprep.subr.mxu0 0.0
      %1615 = vmatpush1.msra.mxu0 0.0
      %1616 = vmatprep.subr.mxu0 0.0
      %1617 = vmatpush1.msra.mxu0 0.0
      %1618 = vmatprep.subr.mxu0 0.0
      %1619 = vmatpush1.msra.mxu0 0.0
      %1620 = vmatprep.subr.mxu0 0.0
      %1621 = vmatpush1.msra.mxu0 %v1533
      %1622 = vmatprep.subr.mxu0 0.0
      %1623 = vmatpush2.msra.mxu0 0.0
      %1624 = vmatprep.subr.mxu0 0.0
      %1625 = vmatpush2.msra.mxu0 0.0
      %1626 = vmatprep.subr.mxu0 0.0
      %1627 = vmatpush2.msra.mxu0 0.0
      %1628 = vmatprep.subr.mxu0 0.0
      %1629 = vmatpush2.msra.mxu0 0.0
      %1630 = vmatprep.subr.mxu0 0.0
      %1631 = vmatpush2.msra.mxu0 0.0
      %1632 = vmatprep.subr.mxu0 0.0
      %1633 = vmatpush2.msra.mxu0 0.0
      %1634 = vmatprep.subr.mxu0 0.0
      %1635 = vmatpush2.msra.mxu0 0.0
      %1636 = vmatprep.subr.mxu0 0.0
      %1637 = vmatpush2.msra.mxu0 0.0
      %1638 = vmatprep.subr.mxu0 0.0
      %1639 = vmatpush2.msra.mxu0 0.0
      %1640 = vmatprep.subr.mxu0 0.0
      %1641 = vmatpush2.msra.mxu0 0.0
      %1642 = vmatprep.subr.mxu0 0.0
      %1643 = vmatpush2.msra.mxu0 0.0
      %1644 = vmatprep.subr.mxu0 0.0
      %1645 = vmatpush2.msra.mxu0 0.0
      %1646 = vmatprep.subr.mxu0 0.0
      %1647 = vmatpush2.msra.mxu0 0.0
      %1648 = vmatprep.subr.mxu0 0.0
      %1649 = vmatpush2.msra.mxu0 0.0
      %1650 = vmatprep.subr.mxu0 0.0
      %1651 = vmatpush2.msra.mxu0 0.0
      %1652 = vmatprep.subr.mxu0 0.0
      %1653 = vmatpush2.msra.mxu0 0.0
      %1654 = vmatprep.mubr.f32.mxu0 0.0
      %1655 = vmatmul.mubr.f32.gmra.mxu0 %v1543
      %v1656 = vpop.f32.mrf.mxu0
      %v1657 = vadd.f32 %v1539, %v1656
      %v1658 = vpop.f32.mrf.mxu0
      %1659 = vmatprep.mubr.f32.mxu0 0.0
      %1660 = vmatmul.mubr.f32.gmra.mxu0 %v1546
      %v1661 = vpop.f32.mrf.mxu0
      %v1662 = vadd.f32 %v1539, %v1661
      %v1663 = vpop.f32.mrf.mxu0
      %1664 = vmatprep.mubr.f32.mxu0 0.0
      %1665 = vmatmul.mubr.f32.gmra.mxu0 %v1549
      %v1666 = vpop.f32.mrf.mxu0
      %v1667 = vadd.f32 %v1539, %v1666
      %v1668 = vpop.f32.mrf.mxu0
      %1669 = vmatprep.mubr.f32.mxu0 0.0
      %1670 = vmatmul.mubr.f32.gmra.mxu0 %v1552
      %v1671 = vpop.f32.mrf.mxu0
      %v1672 = vadd.f32 %v1539, %v1671
      %v1673 = vpop.f32.mrf.mxu0
      %1674 = vmatprep.mubr.f32.mxu0 0.0
      %1675 = vmatmul.mubr.f32.gmra.mxu0 %v1555
      %v1676 = vpop.f32.mrf.mxu0
      %v1677 = vadd.f32 %v1539, %v1676
      %v1678 = vpop.f32.mrf.mxu0
      %1679 = vmatprep.mubr.f32.mxu0 0.0
      %1680 = vmatmul.mubr.f32.gmra.mxu0 %v1558
      %v1681 = vpop.f32.mrf.mxu0
      %v1682 = vadd.f32 %v1539, %v1681
      %v1683 = vpop.f32.mrf.mxu0
      %1684 = vmatprep.mubr.f32.mxu0 0.0
      %1685 = vmatmul.mubr.f32.gmra.mxu0 %v1561
      %v1686 = vpop.f32.mrf.mxu0
      %v1687 = vadd.f32 %v1539, %v1686
      %v1688 = vpop.f32.mrf.mxu0
      %1689 = vmatprep.mubr.f32.mxu0 0.0
      %1690 = vmatmul.mubr.f32.gmra.mxu0 %v1564
      %v1691 = vpop.f32.mrf.mxu0
      %v1692 = vadd.f32 %v1539, %v1691
      %v1693 = vpop.f32.mrf.mxu0
      %1694 = vmatprep.mubr.f32.mxu0 0.0
      %1695 = vmatmul.mubr.f32.gmra.mxu0 %v1567
      %v1696 = vpop.f32.mrf.mxu0
      %v1697 = vadd.f32 %v1539, %v1696
      %v1698 = vpop.f32.mrf.mxu0
      %1699 = vmatprep.mubr.f32.mxu0 0.0
      %1700 = vmatmul.mubr.f32.gmra.mxu0 %v1570
      %v1701 = vpop.f32.mrf.mxu0
      %v1702 = vadd.f32 %v1539, %v1701
      %v1703 = vpop.f32.mrf.mxu0
      %1704 = vmatprep.mubr.f32.mxu0 0.0
      %1705 = vmatmul.mubr.f32.gmra.mxu0 %v1573
      %v1706 = vpop.f32.mrf.mxu0
      %v1707 = vadd.f32 %v1539, %v1706
      %v1708 = vpop.f32.mrf.mxu0
      %1709 = vmatprep.mubr.f32.mxu0 0.0
      %1710 = vmatmul.mubr.f32.gmra.mxu0 %v1576
      %v1711 = vpop.f32.mrf.mxu0
      %v1712 = vadd.f32 %v1539, %v1711
      %v1713 = vpop.f32.mrf.mxu0
      %1714 = vmatprep.mubr.f32.mxu0 0.0
      %1715 = vmatmul.mubr.f32.gmra.mxu0 %v1579
      %v1716 = vpop.f32.mrf.mxu0
      %v1717 = vadd.f32 %v1539, %v1716
      %v1718 = vpop.f32.mrf.mxu0
      %1719 = vmatprep.mubr.f32.mxu0 0.0
      %1720 = vmatmul.mubr.f32.gmra.mxu0 %v1582
      %v1721 = vpop.f32.mrf.mxu0
      %v1722 = vadd.f32 %v1539, %v1721
      %v1723 = vpop.f32.mrf.mxu0
      %1724 = vmatprep.mubr.f32.mxu0 0.0
      %1725 = vmatmul.mubr.f32.gmra.mxu0 %v1585
      %v1726 = vpop.f32.mrf.mxu0
      %v1727 = vadd.f32 %v1539, %v1726
      %v1728 = vpop.f32.mrf.mxu0
      %1729 = vmatprep.mubr.f32.mxu0 0.0
      %1730 = vmatmul.mubr.f32.gmra.mxu0 %v1588
      %v1731 = vpop.f32.mrf.mxu0
      %v1732 = vadd.f32 %v1539, %v1731
      %v1733 = vpop.f32.mrf.mxu0
      %1734 = vdwg.mxu0
      %v1735 = vmul.f32 %v1657, 0.1
      %v1736 = vmul.f32 %v1662, 0.1
      %v1737 = vmul.f32 %v1667, 0.1
      %v1738 = vmul.f32 %v1672, 0.1
      %v1739 = vmul.f32 %v1677, 0.1
      %v1740 = vmul.f32 %v1682, 0.1
      %v1741 = vmul.f32 %v1687, 0.1
      %v1742 = vmul.f32 %v1692, 0.1
      %v1743 = vmul.f32 %v1697, 0.1
      %v1744 = vmul.f32 %v1702, 0.1
      %v1745 = vmul.f32 %v1707, 0.1
      %v1746 = vmul.f32 %v1712, 0.1
      %v1747 = vmul.f32 %v1717, 0.1
      %v1748 = vmul.f32 %v1722, 0.1
      %v1749 = vmul.f32 %v1727, 0.1
      %v1750 = vmul.f32 %v1732, 0.1
      %v1751 = vmax.f32 %v1657, %v1735
      %v1752 = vmax.f32 %v1662, %v1736
      %v1753 = vmax.f32 %v1667, %v1737
      %v1754 = vmax.f32 %v1672, %v1738
      %v1755 = vmax.f32 %v1677, %v1739
      %v1756 = vmax.f32 %v1682, %v1740
      %v1757 = vmax.f32 %v1687, %v1741
      %v1758 = vmax.f32 %v1692, %v1742
      %v1759 = vmax.f32 %v1697, %v1743
      %v1760 = vmax.f32 %v1702, %v1744
      %v1761 = vmax.f32 %v1707, %v1745
      %v1762 = vmax.f32 %v1712, %v1746
      %v1763 = vmax.f32 %v1717, %v1747
      %v1764 = vmax.f32 %v1722, %v1748
      %v1765 = vmax.f32 %v1727, %v1749
      %v1766 = vmax.f32 %v1732, %v1750
      %1783 = vrot.lane.b32.xlu0 %v1462, 120
      %v1784 = vpop.permute.xlu0 %1783
      %1785 = vrot.lane.b32.xlu0 %v1463, 120
      %v1786 = vpop.permute.xlu0 %1785
      %1787 = vrot.lane.b32.xlu0 %v1464, 120
      %v1788 = vpop.permute.xlu0 %1787
      %1789 = vrot.lane.b32.xlu0 %v1465, 120
      %v1790 = vpop.permute.xlu0 %1789
      %1791 = vrot.lane.b32.xlu0 %v1466, 120
      %v1792 = vpop.permute.xlu0 %1791
      %1793 = vrot.lane.b32.xlu0 %v1467, 120
      %v1794 = vpop.permute.xlu0 %1793
      %1795 = vrot.lane.b32.xlu0 %v1468, 120
      %v1796 = vpop.permute.xlu0 %1795
      %1797 = vrot.lane.b32.xlu0 %v1469, 120
      %v1798 = vpop.permute.xlu0 %1797
      %1799 = vrot.lane.b32.xlu0 %v1470, 120
      %v1800 = vpop.permute.xlu0 %1799
      %1801 = vrot.lane.b32.xlu0 %v1471, 120
      %v1802 = vpop.permute.xlu0 %1801
      %1803 = vrot.lane.b32.xlu0 %v1472, 120
      %v1804 = vpop.permute.xlu0 %1803
      %1805 = vrot.lane.b32.xlu0 %v1473, 120
      %v1806 = vpop.permute.xlu0 %1805
      %1807 = vrot.lane.b32.xlu0 %v1474, 120
      %v1808 = vpop.permute.xlu0 %1807
      %1809 = vrot.lane.b32.xlu0 %v1475, 120
      %v1810 = vpop.permute.xlu0 %1809
      %1811 = vrot.lane.b32.xlu0 %v1476, 120
      %v1812 = vpop.permute.xlu0 %1811
      %1813 = vrot.lane.b32.xlu0 %v1477, 120
      %v1814 = vpop.permute.xlu0 %1813
      %v1831 = vadd.f32 %v1751, %v1784
      %v1832 = vadd.f32 %v1752, %v1786
      %v1833 = vadd.f32 %v1753, %v1788
      %v1834 = vadd.f32 %v1754, %v1790
      %v1835 = vadd.f32 %v1755, %v1792
      %v1836 = vadd.f32 %v1756, %v1794
      %v1837 = vadd.f32 %v1757, %v1796
      %v1838 = vadd.f32 %v1758, %v1798
      %v1839 = vadd.f32 %v1759, %v1800
      %v1840 = vadd.f32 %v1760, %v1802
      %v1841 = vadd.f32 %v1761, %v1804
      %v1842 = vadd.f32 %v1762, %v1806
      %v1843 = vadd.f32 %v1763, %v1808
      %v1844 = vadd.f32 %v1764, %v1810
      %v1845 = vadd.f32 %v1765, %v1812
      %v1846 = vadd.f32 %v1766, %v1814
      %1847 = vst.msk [vmem:[%s365] sm:$0xff] %vm1541, %v1831
      %1848 = vst.msk [vmem:[%s365 + $0x8] sm:$0xff] %vm1541, %v1832
      %1849 = vst.msk [vmem:[%s365 + $0x10] sm:$0xff] %vm1541, %v1833
      %1850 = vst.msk [vmem:[%s365 + $0x18] sm:$0xff] %vm1541, %v1834
      %1851 = vst.msk [vmem:[%s365 + $0x20] sm:$0xff] %vm1541, %v1835
      %1852 = vst.msk [vmem:[%s365 + $0x28] sm:$0xff] %vm1541, %v1836
      %1853 = vst.msk [vmem:[%s365 + $0x30] sm:$0xff] %vm1541, %v1837
      %1854 = vst.msk [vmem:[%s365 + $0x38] sm:$0xff] %vm1541, %v1838
      %1855 = vst.msk [vmem:[%s365 + $0x40] sm:$0xff] %vm1541, %v1839
      %1856 = vst.msk [vmem:[%s365 + $0x48] sm:$0xff] %vm1541, %v1840
      %1857 = vst.msk [vmem:[%s365 + $0x50] sm:$0xff] %vm1541, %v1841
      %1858 = vst.msk [vmem:[%s365 + $0x58] sm:$0xff] %vm1541, %v1842
      %1859 = vst.msk [vmem:[%s365 + $0x60] sm:$0xff] %vm1541, %v1843
      %1860 = vst.msk [vmem:[%s365 + $0x68] sm:$0xff] %vm1541, %v1844
      %1861 = vst.msk [vmem:[%s365 + $0x70] sm:$0xff] %vm1541, %v1845
      %1862 = vst.msk [vmem:[%s365 + $0x78] sm:$0xff] %vm1541, %v1846
      %s1863 = smul.u32 16, %s22
      %p1864 = scmp.lt.s32.totalorder %s21, 1
      %s1865 = scalar_select %p1864, %s21, 1
      %p1866 = scmp.lt.s32.totalorder %s1863, 31
      %s1867 = scalar_select %p1866, %s1863, 31
      %s1868 = smul.addr %s1865, 32
      %s1869 = sadd.s32 %s1867, %s1868
      %s1870 = smul.addr %s1869, 8
      %s1871 = scalar_lea.vmem %s6, %s1870
      // Predicated region
      $region45: #{tpu_custom_call.1} parent=43 // pred_check
        %p1872 = pneg %p193
      $region46: #{tpu_custom_call.1} parent=43 // pred_check_branch
        %1874 = sbr.rel (%p1872) target = $region48
      $region47: #{tpu_custom_call.1} parent=43 // pred_region
        %s1875 = smul.u32 16, %s22
      $region48: #{tpu_custom_call.1} parent=43 // pred_fallthru
        _
    $region44: #{tpu_custom_call.1} parent=5 // pred_fallthru
      _
    %p1876 = scmp.le.s32.totalorder 2, %s12
    // Predicated region
    $region49: #{tpu_custom_call.1} parent=5 // pred_check
      %p1877 = pneg %p1876
    $region50: #{tpu_custom_call.1} parent=5 // pred_check_branch
      %1879 = sbr.rel (%p1877) target = $region52
    $region51: #{tpu_custom_call.1} parent=5 // pred_region
      %s1880 = ssub.s32 %s12, 2
      // Predicated region
      $region53: #{tpu_custom_call.1} parent=51 // pred_check
        %p1881 = pneg %p199
      $region54: #{tpu_custom_call.1} parent=51 // pred_check_branch
        %1883 = sbr.rel (%p1881) target = $region56
      $region55: #{tpu_custom_call.1} parent=51 // pred_region
        %s1884 = smul.u32 16, %s24
        %p1885 = scmp.lt.s32.totalorder %s23, 1
        %s1886 = scalar_select %p1885, %s23, 1
        %p1887 = scmp.lt.s32.totalorder %s1884, 31
        %s1888 = scalar_select %p1887, %s1884, 31
        %s1889 = smul.addr %s1886, 32
        %s1890 = sadd.s32 %s1888, %s1889
        %s1891 = smul.addr %s1890, 8
        %s1892 = scalar_lea.vmem %s6, %s1891
      $region56: #{tpu_custom_call.1} parent=51 // pred_fallthru
        _
    $region52: #{tpu_custom_call.1} parent=5 // pred_fallthru
      _
  $region6: #{tpu_custom_call.1} parent=0 // loop_footer
    %s16 = sadd.s32 1, %s12
  $region7: #{tpu_custom_call.1} parent=0 // loop_footer_branch
    %11 = sbr.rel target = $region3
  $region8: #{tpu_custom_call.1} parent=0 // loop_exit
    _

// kernel: tpu_custom_call.1
$region0: #{tpu_custom_call.1}
  #allocation0 [shape = 'u32[]', space=smem, size = 0x4, offset = 0x4, fixed_abs, tag = 'smem constant byte address 0x4 - core index']
  #allocation1 [shape = 'u32[144,128]{1,0:T(1,128)}', space=vmem, size = 0x12000, scoped, tag = 'internal scratch']
  #allocation2 [shape = 'f32[128,16]{1,0:T(8,128)}', space=vmem, size = 0x10000, scoped, tag = 'scratch operand']
  %s0 = inlined_call_operand.vmem [shape: f32[2,17,17,16], index: 0, kind: input, shape index: {}]
  %s1 = inlined_call_operand.vmem [shape: f32[2,17,17,16], index: 1, kind: input, shape index: {}]
  %s2 = inlined_call_operand.vmem [shape: f32[4,16,16], index: 2, kind: input, shape index: {}]
  %s3 = inlined_call_operand.vmem [shape: f32[1,8], index: 3, kind: input, shape index: {}]
  %s4 = inlined_call_operand.vmem [shape: f32[8,8], index: 4, kind: input, shape index: {}]
  %s5 = inlined_call_operand.vmem [shape: f32[1,8], index: 5, kind: input, shape index: {}]
  %s6 = inlined_call_operand.vmem [shape: f32[2,256,8], index: 6, kind: output, shape index: {}]
  %s7 = sld [smem:[#allocation0]]
  $region57: #{tpu_custom_call.1} parent=0
    _
  %s9 = ssub.s32 1, %s7
  %s10 = scalar_select 0, %s9, %s7
  loop: start=0, step=1, limit=6
  $region2: #{tpu_custom_call.1} parent=0 // loop_pre_header
    _
  $region3: #{tpu_custom_call.1} parent=0 // loop_header
    %s12 = sphi 0, %s16
    %p13 = scmp.ge.s32.totalorder %s12, 6
    %s19 = sphi 0, %s31
    %s20 = sphi 0, %s27
    %s21 = sphi 0, %s19
    %s22 = sphi 0, %s20
    %s23 = sphi 0, %s21
    %s24 = sphi 0, %s22
    %s36 = sphi 0, %s38
    %s39 = sphi 0, %s36
    %s40 = sphi 0, %s39
    %s56 = sphi 0, %s40
    %s68 = sphi 0, %s70
    %s71 = sphi 0, %s68
    %s72 = sphi 0, %s71
    %s88 = sphi 0, %s72
    %s92 = sphi 0, %s92
    %s94 = sphi 0, %s92
    %s95 = sphi 0, %s94
    %s109 = sphi 0, %s95
    %s113 = sphi 0, %s113
    %s115 = sphi 0, %s113
    %s116 = sphi 0, %s115
    %s130 = sphi 0, %s116
    %s134 = sphi 0, %s134
    %s136 = sphi 0, %s134
    %s137 = sphi 0, %s136
    %s151 = sphi 0, %s137
    %s155 = sphi 0, %s155
    %s157 = sphi 0, %s155
    %s158 = sphi 0, %s157
    %s172 = sphi 0, %s158
    %s180 = sphi 0, %s182
    %s183 = sphi 0, %s180
    %s184 = sphi 0, %s183
    %s200 = sphi 0, %s184
  $region4: #{tpu_custom_call.1} parent=0 // loop_header_branch
    %15 = sbr.rel (%p13) target = $region8
  $region5: #{tpu_custom_call.1} parent=0 // loop_body
    %s17 = ssub.s32 %s12, 1
    %s18 = ssub.s32 %s12, 2
    %s25 = sadd.s32 1, %s20
    %p26 = scmp.ge.s32.totalorder %s25, 2
    %s27 = scalar_select %p26, 0, %s25
    %s28 = sadd.s32 1, %s19
    %s29 = scalar_select %p26, %s28, %s19
    %p30 = scmp.ge.s32.totalorder %s29, 2
    %s31 = scalar_select %p30, 0, %s29
    %s32 = ssub.s32 %s19, %s31
    %s33 = ssub.s32 %s20, %s27
    %s34 = sor.u32 %s32, %s33
    %p35 = scmp.eq.s32.totalorder %s34, 0
    %s37 = sadd.s32 %s36, 1
    %s38 = scalar_select %p35, %s36, %s37
    %p41 = pneg %p35
    %p42 = scmp.eq.s32.totalorder %s12, 3
    %p43 = por %p41, %p42
    %p44 = scmp.ne.s32.totalorder %s36, %s39
    %p45 = scmp.eq.s32.totalorder %s12, 0
    %p46 = por %p44, %p45
    %p47 = scmp.ne.s32.totalorder %s36, %s39
    %p48 = scmp.eq.s32.totalorder %s17, 3
    %p49 = por %p47, %p48
    %p50 = scmp.ne.s32.totalorder %s39, %s40
    %p51 = scmp.eq.s32.totalorder %s17, 0
    %p52 = por %p50, %p51
    %p53 = scmp.ne.s32.totalorder %s39, %s40
    %p54 = scmp.eq.s32.totalorder %s18, 3
    %p55 = por %p53, %p54
    %p57 = scmp.ne.s32.totalorder %s40, %s56
    %p58 = scmp.eq.s32.totalorder %s18, 0
    %p59 = por %p57, %p58
    %s60 = sadd.s32 %s20, 1
    %s61 = smul.u32 %s60, 8
    %s62 = sadd.s32 %s27, 1
    %s63 = smul.u32 %s62, 8
    %s64 = ssub.s32 %s19, %s31
    %s65 = ssub.s32 %s61, %s63
    %s66 = sor.u32 %s64, %s65
    %p67 = scmp.eq.s32.totalorder %s66, 0
    %s69 = sadd.s32 %s68, 1
    %s70 = scalar_select %p67, %s68, %s69
    %p73 = pneg %p67
    %p74 = scmp.eq.s32.totalorder %s12, 3
    %p75 = por %p73, %p74
    %p76 = scmp.ne.s32.totalorder %s68, %s71
    %p77 = scmp.eq.s32.totalorder %s12, 0
    %p78 = por %p76, %p77
    %p79 = scmp.ne.s32.totalorder %s68, %s71
    %p80 = scmp.eq.s32.totalorder %s17, 3
    %p81 = por %p79, %p80
    %p82 = scmp.ne.s32.totalorder %s71, %s72
    %p83 = scmp.eq.s32.totalorder %s17, 0
    %p84 = por %p82, %p83
    %p85 = scmp.ne.s32.totalorder %s71, %s72
    %p86 = scmp.eq.s32.totalorder %s18, 3
    %p87 = por %p85, %p86
    %p89 = scmp.ne.s32.totalorder %s72, %s88
    %p90 = scmp.eq.s32.totalorder %s18, 0
    %p91 = por %p89, %p90
    %s93 = sadd.s32 %s92, 1
    %p96 = scmp.eq.s32.totalorder %s12, 3
    %p97 = scmp.ne.s32.totalorder %s92, %s94
    %p98 = scmp.eq.s32.totalorder %s12, 0
    %p99 = por %p97, %p98
    %p100 = scmp.ne.s32.totalorder %s92, %s94
    %p101 = scmp.eq.s32.totalorder %s17, 3
    %p102 = por %p100, %p101
    %p103 = scmp.ne.s32.totalorder %s94, %s95
    %p104 = scmp.eq.s32.totalorder %s17, 0
    %p105 = por %p103, %p104
    %p106 = scmp.ne.s32.totalorder %s94, %s95
    %p107 = scmp.eq.s32.totalorder %s18, 3
    %p108 = por %p106, %p107
    %p110 = scmp.ne.s32.totalorder %s95, %s109
    %p111 = scmp.eq.s32.totalorder %s18, 0
    %p112 = por %p110, %p111
    %s114 = sadd.s32 %s113, 1
    %p117 = scmp.eq.s32.totalorder %s12, 3
    %p118 = scmp.ne.s32.totalorder %s113, %s115
    %p119 = scmp.eq.s32.totalorder %s12, 0
    %p120 = por %p118, %p119
    %p121 = scmp.ne.s32.totalorder %s113, %s115
    %p122 = scmp.eq.s32.totalorder %s17, 3
    %p123 = por %p121, %p122
    %p124 = scmp.ne.s32.totalorder %s115, %s116
    %p125 = scmp.eq.s32.totalorder %s17, 0
    %p126 = por %p124, %p125
    %p127 = scmp.ne.s32.totalorder %s115, %s116
    %p128 = scmp.eq.s32.totalorder %s18, 3
    %p129 = por %p127, %p128
    %p131 = scmp.ne.s32.totalorder %s116, %s130
    %p132 = scmp.eq.s32.totalorder %s18, 0
    %p133 = por %p131, %p132
    %s135 = sadd.s32 %s134, 1
    %p138 = scmp.eq.s32.totalorder %s12, 3
    %p139 = scmp.ne.s32.totalorder %s134, %s136
    %p140 = scmp.eq.s32.totalorder %s12, 0
    %p141 = por %p139, %p140
    %p142 = scmp.ne.s32.totalorder %s134, %s136
    %p143 = scmp.eq.s32.totalorder %s17, 3
    %p144 = por %p142, %p143
    %p145 = scmp.ne.s32.totalorder %s136, %s137
    %p146 = scmp.eq.s32.totalorder %s17, 0
    %p147 = por %p145, %p146
    %p148 = scmp.ne.s32.totalorder %s136, %s137
    %p149 = scmp.eq.s32.totalorder %s18, 3
    %p150 = por %p148, %p149
    %p152 = scmp.ne.s32.totalorder %s137, %s151
    %p153 = scmp.eq.s32.totalorder %s18, 0
    %p154 = por %p152, %p153
    %s156 = sadd.s32 %s155, 1
    %p159 = scmp.eq.s32.totalorder %s12, 3
    %p160 = scmp.ne.s32.totalorder %s155, %s157
    %p161 = scmp.eq.s32.totalorder %s12, 0
    %p162 = por %p160, %p161
    %p163 = scmp.ne.s32.totalorder %s155, %s157
    %p164 = scmp.eq.s32.totalorder %s17, 3
    %p165 = por %p163, %p164
    %p166 = scmp.ne.s32.totalorder %s157, %s158
    %p167 = scmp.eq.s32.totalorder %s17, 0
    %p168 = por %p166, %p167
    %p169 = scmp.ne.s32.totalorder %s157, %s158
    %p170 = scmp.eq.s32.totalorder %s18, 3
    %p171 = por %p169, %p170
    %p173 = scmp.ne.s32.totalorder %s158, %s172
    %p174 = scmp.eq.s32.totalorder %s18, 0
    %p175 = por %p173, %p174
    %s176 = ssub.s32 %s19, %s31
    %s177 = ssub.s32 %s20, %s27
    %s178 = sor.u32 %s176, %s177
    %p179 = scmp.eq.s32.totalorder %s178, 0
    %s181 = sadd.s32 %s180, 1
    %s182 = scalar_select %p179, %s180, %s181
    %p185 = pneg %p179
    %p186 = scmp.eq.s32.totalorder %s12, 3
    %p187 = por %p185, %p186
    %p188 = scmp.ne.s32.totalorder %s180, %s183
    %p189 = scmp.eq.s32.totalorder %s12, 0
    %p190 = por %p188, %p189
    %p191 = scmp.ne.s32.totalorder %s180, %s183
    %p192 = scmp.eq.s32.totalorder %s17, 3
    %p193 = por %p191, %p192
    %p194 = scmp.ne.s32.totalorder %s183, %s184
    %p195 = scmp.eq.s32.totalorder %s17, 0
    %p196 = por %p194, %p195
    %p197 = scmp.ne.s32.totalorder %s183, %s184
    %p198 = scmp.eq.s32.totalorder %s18, 3
    %p199 = por %p197, %p198
    %p201 = scmp.ne.s32.totalorder %s184, %s200
    %p202 = scmp.eq.s32.totalorder %s18, 0
    %p203 = por %p201, %p202
    %p204 = scmp.le.s32.totalorder 1, %s12
    %p205 = scmp.lt.s32.totalorder %s12, 5
    %p206 = pnand %p204, %p205
    %p207 = pneg %p206
    // Predicated region
    $region9: #{tpu_custom_call.1} parent=5 // pred_check
      _
    $region10: #{tpu_custom_call.1} parent=5 // pred_check_branch
      %209 = sbr.rel (%p206) target = $region12
    $region11: #{tpu_custom_call.1} parent=5 // pred_region
      %s210 = ssub.s32 %s12, 1
      // Predicated region
      $region13: #{tpu_custom_call.1} parent=11 // pred_check
        %p211 = pneg %p105
      $region14: #{tpu_custom_call.1} parent=11 // pred_check_branch
        %213 = sbr.rel (%p211) target = $region16
      $region15: #{tpu_custom_call.1} parent=11 // pred_region
        _
      $region16: #{tpu_custom_call.1} parent=11 // pred_fallthru
        _
      // Predicated region
      $region17: #{tpu_custom_call.1} parent=11 // pred_check
        %p214 = pneg %p126
      $region18: #{tpu_custom_call.1} parent=11 // pred_check_branch
        %216 = sbr.rel (%p214) target = $region20
      $region19: #{tpu_custom_call.1} parent=11 // pred_region
        _
      $region20: #{tpu_custom_call.1} parent=11 // pred_fallthru
        _
      // Predicated region
      $region21: #{tpu_custom_call.1} parent=11 // pred_check
        %p217 = pneg %p147
      $region22: #{tpu_custom_call.1} parent=11 // pred_check_branch
        %219 = sbr.rel (%p217) target = $region24
      $region23: #{tpu_custom_call.1} parent=11 // pred_region
        _
      $region24: #{tpu_custom_call.1} parent=11 // pred_fallthru
        _
      // Predicated region
      $region25: #{tpu_custom_call.1} parent=11 // pred_check
        %p220 = pneg %p168
      $region26: #{tpu_custom_call.1} parent=11 // pred_check_branch
        %222 = sbr.rel (%p220) target = $region28
      $region27: #{tpu_custom_call.1} parent=11 // pred_region
        _
      $region28: #{tpu_custom_call.1} parent=11 // pred_fallthru
        _
    $region12: #{tpu_custom_call.1} parent=5 // pred_fallthru
      _
    %p223 = scmp.lt.s32.totalorder %s12, 4
    // Predicated region
    $region29: #{tpu_custom_call.1} parent=5 // pred_check
      %p224 = pneg %p223
    $region30: #{tpu_custom_call.1} parent=5 // pred_check_branch
      %226 = sbr.rel (%p224) target = $region32
    $region31: #{tpu_custom_call.1} parent=5 // pred_region
      // Predicated region
      $region33: #{tpu_custom_call.1} parent=31 // pred_check
        %p227 = pneg %p46
      $region34: #{tpu_custom_call.1} parent=31 // pred_check_branch
        %229 = sbr.rel (%p227) target = $region36
      $region35: #{tpu_custom_call.1} parent=31 // pred_region
        %s230 = smul.u32 8, %s20
        %s231 = ssub.s32 17, %s230
        %p232 = scmp.lt.s32.totalorder %s231, 8
        %s233 = scalar_select %p232, %s231, 8
        %s234 = smul.u32 128, %s233
        %s235 = smul.u32 %s234, 3
        %p236 = scmp.lt.s32.totalorder %s19, 1
        %s237 = scalar_select %p236, %s19, 1
        %p238 = scmp.lt.s32.totalorder %s230, 16
        %s239 = scalar_select %p238, %s230, 16
        %s240 = smul.addr %s239, 3
        %s241 = smul.addr %s237, 51
        %s242 = sadd.s32 %s240, %s241
        %s243 = smul.addr %s242, 8
        %s244 = scalar_lea.vmem %s0, %s243
        %s245 = smul.u32 8, %s20
        %s246 = ssub.s32 17, %s245
        %p247 = scmp.lt.s32.totalorder %s246, 8
        %s248 = scalar_select %p247, %s246, 8
        %s249 = smul.u32 128, %s248
        %s250 = smul.u32 %s249, 3
      $region36: #{tpu_custom_call.1} parent=31 // pred_fallthru
        _
      // Predicated region
      $region37: #{tpu_custom_call.1} parent=31 // pred_check
        %p251 = pneg %p78
      $region38: #{tpu_custom_call.1} parent=31 // pred_check_branch
        %253 = sbr.rel (%p251) target = $region40
      $region39: #{tpu_custom_call.1} parent=31 // pred_region
        %s254 = sadd.s32 %s20, 1
        %s255 = smul.u32 %s254, 8
        %p256 = scmp.lt.s32.totalorder %s19, 1
        %s257 = scalar_select %p256, %s19, 1
        %p258 = scmp.lt.s32.totalorder %s255, 16
        %s259 = scalar_select %p258, %s255, 16
        %s260 = smul.addr %s259, 3
        %s261 = smul.addr %s257, 51
        %s262 = sadd.s32 %s260, %s261
        %s263 = smul.addr %s262, 8
        %s264 = scalar_lea.vmem %s1, %s263
        %s265 = sadd.s32 %s20, 1
        %s266 = smul.u32 %s265, 8
      $region40: #{tpu_custom_call.1} parent=31 // pred_fallthru
        _
    $region32: #{tpu_custom_call.1} parent=5 // pred_fallthru
      _
    %p267 = scmp.le.s32.totalorder 1, %s12
    %p268 = scmp.lt.s32.totalorder %s12, 5
    %p269 = pnand %p267, %p268
    %p270 = pneg %p269
    // Predicated region
    $region41: #{tpu_custom_call.1} parent=5 // pred_check
      _
    $region42: #{tpu_custom_call.1} parent=5 // pred_check_branch
      %272 = sbr.rel (%p269) target = $region44
    $region43: #{tpu_custom_call.1} parent=5 // pred_region
      %s273 = ssub.s32 %s12, 1
      %s274 = smul.u32 8, %s22
      %s275 = ssub.s32 17, %s274
      %p276 = scmp.lt.s32.totalorder %s275, 8
      %s277 = scalar_select %p276, %s275, 8
      %s278 = smul.u32 128, %s277
      %s279 = smul.u32 %s278, 3
      %p280 = scmp.lt.s32.totalorder %s21, 1
      %s281 = scalar_select %p280, %s21, 1
      %p282 = scmp.lt.s32.totalorder %s274, 16
      %s283 = scalar_select %p282, %s274, 16
      %s284 = smul.addr %s283, 3
      %s285 = smul.addr %s281, 51
      %s286 = sadd.s32 %s284, %s285
      %s287 = smul.addr %s286, 8
      %s288 = scalar_lea.vmem %s0, %s287
      %p289 = pneg %p52
      %p290 = pneg %p49
      %s291 = sadd.s32 %s22, 1
      %s292 = smul.u32 %s291, 8
      %p293 = scmp.lt.s32.totalorder %s21, 1
      %s294 = scalar_select %p293, %s21, 1
      %p295 = scmp.lt.s32.totalorder %s292, 16
      %s296 = scalar_select %p295, %s292, 16
      %s297 = smul.addr %s296, 3
      %s298 = smul.addr %s294, 51
      %s299 = sadd.s32 %s297, %s298
      %s300 = smul.addr %s299, 8
      %s301 = scalar_lea.vmem %s1, %s300
      %p302 = pneg %p84
      %p303 = pneg %p81
      %p304 = pneg %p105
      %p305 = pneg %p102
      %p306 = pneg %p126
      %p307 = pneg %p123
      %p308 = pneg %p147
      %p309 = pneg %p144
      %p310 = pneg %p168
      %p311 = pneg %p165
      %p312 = pneg %p196
      %p313 = pneg %p193
      %s314 = smul.u32 16, %s22
      %p315 = scmp.lt.s32.totalorder %s21, 1
      %s316 = scalar_select %p315, %s21, 1
      %p317 = scmp.lt.s32.totalorder %s314, 31
      %s318 = scalar_select %p317, %s314, 31
      %s319 = smul.addr %s316, 32
      %s320 = sadd.s32 %s318, %s319
      %s321 = smul.addr %s320, 8
      %s322 = scalar_lea.vmem %s6, %s321
      %s323 = smul.u32 8, %s22
      %s324 = ssub.s32 17, %s323
      %p325 = scmp.lt.s32.totalorder %s324, 8
      %s326 = scalar_select %p325, %s324, 8
      %s327 = smul.u32 128, %s326
      %s328 = smul.u32 %s327, 3
      %p329 = scmp.lt.s32.totalorder %s21, 1
      %s330 = scalar_select %p329, %s21, 1
      %p331 = scmp.lt.s32.totalorder %s323, 16
      %s332 = scalar_select %p331, %s323, 16
      %s333 = smul.addr %s332, 3
      %s334 = smul.addr %s330, 51
      %s335 = sadd.s32 %s333, %s334
      %s336 = smul.addr %s335, 8
      %s337 = scalar_lea.vmem %s0, %s336
      %s338 = smul.u32 8, %s22
      %s339 = ssub.s32 17, %s338
      %p340 = scmp.lt.s32.totalorder %s339, 8
      %s341 = scalar_select %p340, %s339, 8
      %s342 = smul.u32 128, %s341
      %s343 = smul.u32 %s342, 3
      %s344 = sadd.s32 %s22, 1
      %s345 = smul.u32 %s344, 8
      %p346 = scmp.lt.s32.totalorder %s21, 1
      %s347 = scalar_select %p346, %s21, 1
      %p348 = scmp.lt.s32.totalorder %s345, 16
      %s349 = scalar_select %p348, %s345, 16
      %s350 = smul.addr %s349, 3
      %s351 = smul.addr %s347, 51
      %s352 = sadd.s32 %s350, %s351
      %s353 = smul.addr %s352, 8
      %s354 = scalar_lea.vmem %s1, %s353
      %s355 = sadd.s32 %s22, 1
      %s356 = smul.u32 %s355, 8
      %s357 = smul.u32 16, %s22
      %p358 = scmp.lt.s32.totalorder %s21, 1
      %s359 = scalar_select %p358, %s21, 1
      %p360 = scmp.lt.s32.totalorder %s357, 31
      %s361 = scalar_select %p360, %s357, 31
      %s362 = smul.addr %s359, 32
      %s363 = sadd.s32 %s361, %s362
      %s364 = smul.addr %s363, 8
      %s365 = scalar_lea.vmem %s6, %s364
      %s366 = smul.u32 16, %s22
      %v367 = vld [vmem:[%s337] sm:$0xff]
      %v368 = vld [vmem:[%s337 + $0x8] sm:$0xff]
      %v369 = vld [vmem:[%s337 + $0x18] sm:$0xff]
      %v370 = vld [vmem:[%s337 + $0x20] sm:$0xff]
      %v371 = vld [vmem:[%s337 + $0x30] sm:$0xff]
      %v372 = vld [vmem:[%s337 + $0x38] sm:$0xff]
      %v373 = vld [vmem:[%s337 + $0x48] sm:$0xff]
      %v374 = vld [vmem:[%s337 + $0x50] sm:$0xff]
      %v375 = vld [vmem:[%s337 + $0x60] sm:$0xff]
      %v376 = vld [vmem:[%s337 + $0x68] sm:$0xff]
      %v377 = vld [vmem:[%s337 + $0x78] sm:$0xff]
      %v378 = vld [vmem:[%s337 + $0x80] sm:$0xff]
      %v379 = vld [vmem:[%s337 + $0x90] sm:$0xff]
      %v380 = vld [vmem:[%s337 + $0x98] sm:$0xff]
      %v381 = vld [vmem:[%s337 + $0xa8] sm:$0xff]
      %v382 = vld [vmem:[%s337 + $0xb0] sm:$0xff]
      %v383 = vld [vmem:[%s2] sm:$0xff]
      %v384 = vld [vmem:[%s2 + $0x8] sm:$0xff]
      %v385 = vld [vmem:[%s337 + $0x1] sm:$0xff]
      %v386 = vld [vmem:[%s337 + $0x9] sm:$0xff]
      %v387 = vld [vmem:[%s337 + $0x19] sm:$0xff]
      %v388 = vld [vmem:[%s337 + $0x21] sm:$0xff]
      %v389 = vld [vmem:[%s337 + $0x31] sm:$0xff]
      %v390 = vld [vmem:[%s337 + $0x39] sm:$0xff]
      %v391 = vld [vmem:[%s337 + $0x49] sm:$0xff]
      %v392 = vld [vmem:[%s337 + $0x51] sm:$0xff]
      %v393 = vld [vmem:[%s337 + $0x61] sm:$0xff]
      %v394 = vld [vmem:[%s337 + $0x69] sm:$0xff]
      %v395 = vld [vmem:[%s337 + $0x79] sm:$0xff]
      %v396 = vld [vmem:[%s337 + $0x81] sm:$0xff]
      %v397 = vld [vmem:[%s337 + $0x91] sm:$0xff]
      %v398 = vld [vmem:[%s337 + $0x99] sm:$0xff]
      %v399 = vld [vmem:[%s337 + $0xa9] sm:$0xff]
      %v400 = vld [vmem:[%s337 + $0xb1] sm:$0xff]
      %s401 = scalar_lea.vmem %s2, 16
      %v402 = vld [vmem:[%s401] sm:$0xff]
      %v403 = vld [vmem:[%s401 + $0x8] sm:$0xff]
      %vm404 = vcmask 130048
      %v406 = vsel %vm404, %v385, 0
      %v409 = vsel %vm404, %v386, 0
      %v412 = vsel %vm404, %v387, 0
      %v415 = vsel %vm404, %v388, 0
      %v418 = vsel %vm404, %v389, 0
      %v421 = vsel %vm404, %v390, 0
      %v424 = vsel %vm404, %v391, 0
      %v427 = vsel %vm404, %v392, 0
      %v430 = vsel %vm404, %v393, 0
      %v433 = vsel %vm404, %v394, 0
      %v436 = vsel %vm404, %v395, 0
      %v439 = vsel %vm404, %v396, 0
      %v442 = vsel %vm404, %v397, 0
      %v445 = vsel %vm404, %v398, 0
      %v448 = vsel %vm404, %v399, 0
      %v451 = vsel %vm404, %v400, 0
      %453 = vmatprep.subr.mxu0 0.0
      %454 = vmatpush1.msra.mxu0 0.0
      %455 = vmatprep.subr.mxu0 0.0
      %456 = vmatpush1.msra.mxu0 0.0
      %457 = vmatprep.subr.mxu0 0.0
      %458 = vmatpush1.msra.mxu0 0.0
      %459 = vmatprep.subr.mxu0 0.0
      %460 = vmatpush1.msra.mxu0 0.0
      %461 = vmatprep.subr.mxu0 0.0
      %462 = vmatpush1.msra.mxu0 0.0
      %463 = vmatprep.subr.mxu0 0.0
      %464 = vmatpush1.msra.mxu0 0.0
      %465 = vmatprep.subr.mxu0 0.0
      %466 = vmatpush1.msra.mxu0 0.0
      %467 = vmatprep.subr.mxu0 0.0
      %468 = vmatpush1.msra.mxu0 0.0
      %469 = vmatprep.subr.mxu0 0.0
      %470 = vmatpush1.msra.mxu0 0.0
      %471 = vmatprep.subr.mxu0 0.0
      %472 = vmatpush1.msra.mxu0 0.0
      %473 = vmatprep.subr.mxu0 0.0
      %474 = vmatpush1.msra.mxu0 0.0
      %475 = vmatprep.subr.mxu0 0.0
      %476 = vmatpush1.msra.mxu0 0.0
      %477 = vmatprep.subr.mxu0 0.0
      %478 = vmatpush1.msra.mxu0 0.0
      %479 = vmatprep.subr.mxu0 0.0
      %480 = vmatpush1.msra.mxu0 0.0
      %481 = vmatprep.subr.mxu0 0.0
      %482 = vmatpush1.msra.mxu0 %v403
      %483 = vmatprep.subr.mxu0 0.0
      %484 = vmatpush1.msra.mxu0 %v402
      %485 = vmatprep.subr.mxu0 0.0
      %486 = vmatpush2.msra.mxu0 0.0
      %487 = vmatprep.subr.mxu0 0.0
      %488 = vmatpush2.msra.mxu0 0.0
      %489 = vmatprep.subr.mxu0 0.0
      %490 = vmatpush2.msra.mxu0 0.0
      %491 = vmatprep.subr.mxu0 0.0
      %492 = vmatpush2.msra.mxu0 0.0
      %493 = vmatprep.subr.mxu0 0.0
      %494 = vmatpush2.msra.mxu0 0.0
      %495 = vmatprep.subr.mxu0 0.0
      %496 = vmatpush2.msra.mxu0 0.0
      %497 = vmatprep.subr.mxu0 0.0
      %498 = vmatpush2.msra.mxu0 0.0
      %499 = vmatprep.subr.mxu0 0.0
      %500 = vmatpush2.msra.mxu0 0.0
      %501 = vmatprep.subr.mxu0 0.0
      %502 = vmatpush2.msra.mxu0 0.0
      %503 = vmatprep.subr.mxu0 0.0
      %504 = vmatpush2.msra.mxu0 0.0
      %505 = vmatprep.subr.mxu0 0.0
      %506 = vmatpush2.msra.mxu0 0.0
      %507 = vmatprep.subr.mxu0 0.0
      %508 = vmatpush2.msra.mxu0 0.0
      %509 = vmatprep.subr.mxu0 0.0
      %510 = vmatpush2.msra.mxu0 0.0
      %511 = vmatprep.subr.mxu0 0.0
      %512 = vmatpush2.msra.mxu0 0.0
      %513 = vmatprep.subr.mxu0 0.0
      %514 = vmatpush2.msra.mxu0 0.0
      %515 = vmatprep.subr.mxu0 0.0
      %516 = vmatpush2.msra.mxu0 0.0
      %517 = vmatprep.mubr.f32.mxu0 0.0
      %518 = vmatmul.mubr.f32.gmra.mxu0 %v406
      %v519 = vpop.f32.mrf.mxu0
      %v520 = vadd.f32 0.0, %v519
      %v521 = vpop.f32.mrf.mxu0
      %522 = vmatprep.mubr.f32.mxu0 0.0
      %523 = vmatmul.mubr.f32.gmra.mxu0 %v409
      %v524 = vpop.f32.mrf.mxu0
      %v525 = vadd.f32 0.0, %v524
      %v526 = vpop.f32.mrf.mxu0
      %527 = vmatprep.mubr.f32.mxu0 0.0
      %528 = vmatmul.mubr.f32.gmra.mxu0 %v412
      %v529 = vpop.f32.mrf.mxu0
      %v530 = vadd.f32 0.0, %v529
      %v531 = vpop.f32.mrf.mxu0
      %532 = vmatprep.mubr.f32.mxu0 0.0
      %533 = vmatmul.mubr.f32.gmra.mxu0 %v415
      %v534 = vpop.f32.mrf.mxu0
      %v535 = vadd.f32 0.0, %v534
      %v536 = vpop.f32.mrf.mxu0
      %537 = vmatprep.mubr.f32.mxu0 0.0
      %538 = vmatmul.mubr.f32.gmra.mxu0 %v418
      %v539 = vpop.f32.mrf.mxu0
      %v540 = vadd.f32 0.0, %v539
      %v541 = vpop.f32.mrf.mxu0
      %542 = vmatprep.mubr.f32.mxu0 0.0
      %543 = vmatmul.mubr.f32.gmra.mxu0 %v421
      %v544 = vpop.f32.mrf.mxu0
      %v545 = vadd.f32 0.0, %v544
      %v546 = vpop.f32.mrf.mxu0
      %547 = vmatprep.mubr.f32.mxu0 0.0
      %548 = vmatmul.mubr.f32.gmra.mxu0 %v424
      %v549 = vpop.f32.mrf.mxu0
      %v550 = vadd.f32 0.0, %v549
      %v551 = vpop.f32.mrf.mxu0
      %552 = vmatprep.mubr.f32.mxu0 0.0
      %553 = vmatmul.mubr.f32.gmra.mxu0 %v427
      %v554 = vpop.f32.mrf.mxu0
      %v555 = vadd.f32 0.0, %v554
      %v556 = vpop.f32.mrf.mxu0
      %557 = vmatprep.mubr.f32.mxu0 0.0
      %558 = vmatmul.mubr.f32.gmra.mxu0 %v430
      %v559 = vpop.f32.mrf.mxu0
      %v560 = vadd.f32 0.0, %v559
      %v561 = vpop.f32.mrf.mxu0
      %562 = vmatprep.mubr.f32.mxu0 0.0
      %563 = vmatmul.mubr.f32.gmra.mxu0 %v433
      %v564 = vpop.f32.mrf.mxu0
      %v565 = vadd.f32 0.0, %v564
      %v566 = vpop.f32.mrf.mxu0
      %567 = vmatprep.mubr.f32.mxu0 0.0
      %568 = vmatmul.mubr.f32.gmra.mxu0 %v436
      %v569 = vpop.f32.mrf.mxu0
      %v570 = vadd.f32 0.0, %v569
      %v571 = vpop.f32.mrf.mxu0
      %572 = vmatprep.mubr.f32.mxu0 0.0
      %573 = vmatmul.mubr.f32.gmra.mxu0 %v439
      %v574 = vpop.f32.mrf.mxu0
      %v575 = vadd.f32 0.0, %v574
      %v576 = vpop.f32.mrf.mxu0
      %577 = vmatprep.mubr.f32.mxu0 0.0
      %578 = vmatmul.mubr.f32.gmra.mxu0 %v442
      %v579 = vpop.f32.mrf.mxu0
      %v580 = vadd.f32 0.0, %v579
      %v581 = vpop.f32.mrf.mxu0
      %582 = vmatprep.mubr.f32.mxu0 0.0
      %583 = vmatmul.mubr.f32.gmra.mxu0 %v445
      %v584 = vpop.f32.mrf.mxu0
      %v585 = vadd.f32 0.0, %v584
      %v586 = vpop.f32.mrf.mxu0
      %587 = vmatprep.mubr.f32.mxu0 0.0
      %588 = vmatmul.mubr.f32.gmra.mxu0 %v448
      %v589 = vpop.f32.mrf.mxu0
      %v590 = vadd.f32 0.0, %v589
      %v591 = vpop.f32.mrf.mxu0
      %592 = vmatprep.mubr.f32.mxu0 0.0
      %593 = vmatmul.mubr.f32.gmra.mxu0 %v451
      %v594 = vpop.f32.mrf.mxu0
      %v595 = vadd.f32 0.0, %v594
      %v596 = vpop.f32.mrf.mxu0
      %597 = vdwg.mxu0
      %v599 = vsel %vm404, %v367, 0
      %v602 = vsel %vm404, %v368, 0
      %v605 = vsel %vm404, %v369, 0
      %v608 = vsel %vm404, %v370, 0
      %v611 = vsel %vm404, %v371, 0
      %v614 = vsel %vm404, %v372, 0
      %v617 = vsel %vm404, %v373, 0
      %v620 = vsel %vm404, %v374, 0
      %v623 = vsel %vm404, %v375, 0
      %v626 = vsel %vm404, %v376, 0
      %v629 = vsel %vm404, %v377, 0
      %v632 = vsel %vm404, %v378, 0
      %v635 = vsel %vm404, %v379, 0
      %v638 = vsel %vm404, %v380, 0
      %v641 = vsel %vm404, %v381, 0
      %v644 = vsel %vm404, %v382, 0
      %646 = vmatprep.subr.mxu0 0.0
      %647 = vmatpush1.msra.mxu0 0.0
      %648 = vmatprep.subr.mxu0 0.0
      %649 = vmatpush1.msra.mxu0 0.0
      %650 = vmatprep.subr.mxu0 0.0
      %651 = vmatpush1.msra.mxu0 0.0
      %652 = vmatprep.subr.mxu0 0.0
      %653 = vmatpush1.msra.mxu0 0.0
      %654 = vmatprep.subr.mxu0 0.0
      %655 = vmatpush1.msra.mxu0 0.0
      %656 = vmatprep.subr.mxu0 0.0
      %657 = vmatpush1.msra.mxu0 0.0
      %658 = vmatprep.subr.mxu0 0.0
      %659 = vmatpush1.msra.mxu0 0.0
      %660 = vmatprep.subr.mxu0 0.0
      %661 = vmatpush1.msra.mxu0 0.0
      %662 = vmatprep.subr.mxu0 0.0
      %663 = vmatpush1.msra.mxu0 0.0
      %664 = vmatprep.subr.mxu0 0.0
      %665 = vmatpush1.msra.mxu0 0.0
      %666 = vmatprep.subr.mxu0 0.0
      %667 = vmatpush1.msra.mxu0 0.0
      %668 = vmatprep.subr.mxu0 0.0
      %669 = vmatpush1.msra.mxu0 0.0
      %670 = vmatprep.subr.mxu0 0.0
      %671 = vmatpush1.msra.mxu0 0.0
      %672 = vmatprep.subr.mxu0 0.0
      %673 = vmatpush1.msra.mxu0 0.0
      %674 = vmatprep.subr.mxu0 0.0
      %675 = vmatpush1.msra.mxu0 %v384
      %676 = vmatprep.subr.mxu0 0.0
      %677 = vmatpush1.msra.mxu0 %v383
      %678 = vmatprep.subr.mxu0 0.0
      %679 = vmatpush2.msra.mxu0 0.0
      %680 = vmatprep.subr.mxu0 0.0
      %681 = vmatpush2.msra.mxu0 0.0
      %682 = vmatprep.subr.mxu0 0.0
      %683 = vmatpush2.msra.mxu0 0.0
      %684 = vmatprep.subr.mxu0 0.0
      %685 = vmatpush2.msra.mxu0 0.0
      %686 = vmatprep.subr.mxu0 0.0
      %687 = vmatpush2.msra.mxu0 0.0
      %688 = vmatprep.subr.mxu0 0.0
      %689 = vmatpush2.msra.mxu0 0.0
      %690 = vmatprep.subr.mxu0 0.0
      %691 = vmatpush2.msra.mxu0 0.0
      %692 = vmatprep.subr.mxu0 0.0
      %693 = vmatpush2.msra.mxu0 0.0
      %694 = vmatprep.subr.mxu0 0.0
      %695 = vmatpush2.msra.mxu0 0.0
      %696 = vmatprep.subr.mxu0 0.0
      %697 = vmatpush2.msra.mxu0 0.0
      %698 = vmatprep.subr.mxu0 0.0
      %699 = vmatpush2.msra.mxu0 0.0
      %700 = vmatprep.subr.mxu0 0.0
      %701 = vmatpush2.msra.mxu0 0.0
      %702 = vmatprep.subr.mxu0 0.0
      %703 = vmatpush2.msra.mxu0 0.0
      %704 = vmatprep.subr.mxu0 0.0
      %705 = vmatpush2.msra.mxu0 0.0
      %706 = vmatprep.subr.mxu0 0.0
      %707 = vmatpush2.msra.mxu0 0.0
      %708 = vmatprep.subr.mxu0 0.0
      %709 = vmatpush2.msra.mxu0 0.0
      %710 = vmatprep.mubr.f32.mxu0 0.0
      %711 = vmatmul.mubr.f32.gmra.mxu0 %v599
      %v712 = vpop.f32.mrf.mxu0
      %v713 = vadd.f32 %v520, %v712
      %v714 = vpop.f32.mrf.mxu0
      %715 = vmatprep.mubr.f32.mxu0 0.0
      %716 = vmatmul.mubr.f32.gmra.mxu0 %v602
      %v717 = vpop.f32.mrf.mxu0
      %v718 = vadd.f32 %v525, %v717
      %v719 = vpop.f32.mrf.mxu0
      %720 = vmatprep.mubr.f32.mxu0 0.0
      %721 = vmatmul.mubr.f32.gmra.mxu0 %v605
      %v722 = vpop.f32.mrf.mxu0
      %v723 = vadd.f32 %v530, %v722
      %v724 = vpop.f32.mrf.mxu0
      %725 = vmatprep.mubr.f32.mxu0 0.0
      %726 = vmatmul.mubr.f32.gmra.mxu0 %v608
      %v727 = vpop.f32.mrf.mxu0
      %v728 = vadd.f32 %v535, %v727
      %v729 = vpop.f32.mrf.mxu0
      %730 = vmatprep.mubr.f32.mxu0 0.0
      %731 = vmatmul.mubr.f32.gmra.mxu0 %v611
      %v732 = vpop.f32.mrf.mxu0
      %v733 = vadd.f32 %v540, %v732
      %v734 = vpop.f32.mrf.mxu0
      %735 = vmatprep.mubr.f32.mxu0 0.0
      %736 = vmatmul.mubr.f32.gmra.mxu0 %v614
      %v737 = vpop.f32.mrf.mxu0
      %v738 = vadd.f32 %v545, %v737
      %v739 = vpop.f32.mrf.mxu0
      %740 = vmatprep.mubr.f32.mxu0 0.0
      %741 = vmatmul.mubr.f32.gmra.mxu0 %v617
      %v742 = vpop.f32.mrf.mxu0
      %v743 = vadd.f32 %v550, %v742
      %v744 = vpop.f32.mrf.mxu0
      %745 = vmatprep.mubr.f32.mxu0 0.0
      %746 = vmatmul.mubr.f32.gmra.mxu0 %v620
      %v747 = vpop.f32.mrf.mxu0
      %v748 = vadd.f32 %v555, %v747
      %v749 = vpop.f32.mrf.mxu0
      %750 = vmatprep.mubr.f32.mxu0 0.0
      %751 = vmatmul.mubr.f32.gmra.mxu0 %v623
      %v752 = vpop.f32.mrf.mxu0
      %v753 = vadd.f32 %v560, %v752
      %v754 = vpop.f32.mrf.mxu0
      %755 = vmatprep.mubr.f32.mxu0 0.0
      %756 = vmatmul.mubr.f32.gmra.mxu0 %v626
      %v757 = vpop.f32.mrf.mxu0
      %v758 = vadd.f32 %v565, %v757
      %v759 = vpop.f32.mrf.mxu0
      %760 = vmatprep.mubr.f32.mxu0 0.0
      %761 = vmatmul.mubr.f32.gmra.mxu0 %v629
      %v762 = vpop.f32.mrf.mxu0
      %v763 = vadd.f32 %v570, %v762
      %v764 = vpop.f32.mrf.mxu0
      %765 = vmatprep.mubr.f32.mxu0 0.0
      %766 = vmatmul.mubr.f32.gmra.mxu0 %v632
      %v767 = vpop.f32.mrf.mxu0
      %v768 = vadd.f32 %v575, %v767
      %v769 = vpop.f32.mrf.mxu0
      %770 = vmatprep.mubr.f32.mxu0 0.0
      %771 = vmatmul.mubr.f32.gmra.mxu0 %v635
      %v772 = vpop.f32.mrf.mxu0
      %v773 = vadd.f32 %v580, %v772
      %v774 = vpop.f32.mrf.mxu0
      %775 = vmatprep.mubr.f32.mxu0 0.0
      %776 = vmatmul.mubr.f32.gmra.mxu0 %v638
      %v777 = vpop.f32.mrf.mxu0
      %v778 = vadd.f32 %v585, %v777
      %v779 = vpop.f32.mrf.mxu0
      %780 = vmatprep.mubr.f32.mxu0 0.0
      %781 = vmatmul.mubr.f32.gmra.mxu0 %v641
      %v782 = vpop.f32.mrf.mxu0
      %v783 = vadd.f32 %v590, %v782
      %v784 = vpop.f32.mrf.mxu0
      %785 = vmatprep.mubr.f32.mxu0 0.0
      %786 = vmatmul.mubr.f32.gmra.mxu0 %v644
      %v787 = vpop.f32.mrf.mxu0
      %v788 = vadd.f32 %v595, %v787
      %v789 = vpop.f32.mrf.mxu0
      %790 = vdwg.mxu0
      %791 = vst.msk [vmem:[#allocation2] sm:$0xff] %vm404, %v713
      %792 = vst.msk [vmem:[#allocation2 + $0x8] sm:$0xff] %vm404, %v718
      %793 = vst.msk [vmem:[#allocation2 + $0x10] sm:$0xff] %vm404, %v723
      %794 = vst.msk [vmem:[#allocation2 + $0x18] sm:$0xff] %vm404, %v728
      %795 = vst.msk [vmem:[#allocation2 + $0x20] sm:$0xff] %vm404, %v733
      %796 = vst.msk [vmem:[#allocation2 + $0x28] sm:$0xff] %vm404, %v738
      %797 = vst.msk [vmem:[#allocation2 + $0x30] sm:$0xff] %vm404, %v743
      %798 = vst.msk [vmem:[#allocation2 + $0x38] sm:$0xff] %vm404, %v748
      %799 = vst.msk [vmem:[#allocation2 + $0x40] sm:$0xff] %vm404, %v753
      %800 = vst.msk [vmem:[#allocation2 + $0x48] sm:$0xff] %vm404, %v758
      %801 = vst.msk [vmem:[#allocation2 + $0x50] sm:$0xff] %vm404, %v763
      %802 = vst.msk [vmem:[#allocation2 + $0x58] sm:$0xff] %vm404, %v768
      %803 = vst.msk [vmem:[#allocation2 + $0x60] sm:$0xff] %vm404, %v773
      %804 = vst.msk [vmem:[#allocation2 + $0x68] sm:$0xff] %vm404, %v778
      %805 = vst.msk [vmem:[#allocation2 + $0x70] sm:$0xff] %vm404, %v783
      %806 = vst.msk [vmem:[#allocation2 + $0x78] sm:$0xff] %vm404, %v788
      %v807 = vld [vmem:[#allocation2] sm:$0xff]
      %v808 = vld [vmem:[#allocation2 + $0x8] sm:$0xff]
      %v809 = vld [vmem:[#allocation2 + $0x10] sm:$0xff]
      %v810 = vld [vmem:[#allocation2 + $0x18] sm:$0xff]
      %v811 = vld [vmem:[#allocation2 + $0x20] sm:$0xff]
      %v812 = vld [vmem:[#allocation2 + $0x28] sm:$0xff]
      %v813 = vld [vmem:[#allocation2 + $0x30] sm:$0xff]
      %v814 = vld [vmem:[#allocation2 + $0x38] sm:$0xff]
      %v815 = vld [vmem:[#allocation2 + $0x40] sm:$0xff]
      %v816 = vld [vmem:[#allocation2 + $0x48] sm:$0xff]
      %v817 = vld [vmem:[#allocation2 + $0x50] sm:$0xff]
      %v818 = vld [vmem:[#allocation2 + $0x58] sm:$0xff]
      %v819 = vld [vmem:[#allocation2 + $0x60] sm:$0xff]
      %v820 = vld [vmem:[#allocation2 + $0x68] sm:$0xff]
      %s821 = scalar_lea.vmem %s337, 24
      %v822 = vld [vmem:[%s821] sm:$0xff]
      %v823 = vld [vmem:[%s821 + $0x8] sm:$0xff]
      %v824 = vld [vmem:[%s821 + $0x18] sm:$0xff]
      %v825 = vld [vmem:[%s821 + $0x20] sm:$0xff]
      %v826 = vld [vmem:[%s821 + $0x30] sm:$0xff]
      %v827 = vld [vmem:[%s821 + $0x38] sm:$0xff]
      %v828 = vld [vmem:[%s821 + $0x48] sm:$0xff]
      %v829 = vld [vmem:[%s821 + $0x50] sm:$0xff]
      %v830 = vld [vmem:[%s821 + $0x60] sm:$0xff]
      %v831 = vld [vmem:[%s821 + $0x68] sm:$0xff]
      %v832 = vld [vmem:[%s821 + $0x78] sm:$0xff]
      %v833 = vld [vmem:[%s821 + $0x80] sm:$0xff]
      %v834 = vld [vmem:[%s821 + $0x90] sm:$0xff]
      %v835 = vld [vmem:[%s821 + $0x98] sm:$0xff]
      %s836 = scalar_lea.vmem %s2, 32
      %v837 = vld [vmem:[%s836] sm:$0xff]
      %v838 = vld [vmem:[%s836 + $0x8] sm:$0xff]
      %v840 = vsel %vm404, %v822, 0
      %v843 = vsel %vm404, %v823, 0
      %v846 = vsel %vm404, %v824, 0
      %v849 = vsel %vm404, %v825, 0
      %v852 = vsel %vm404, %v826, 0
      %v855 = vsel %vm404, %v827, 0
      %v858 = vsel %vm404, %v828, 0
      %v861 = vsel %vm404, %v829, 0
      %v864 = vsel %vm404, %v830, 0
      %v867 = vsel %vm404, %v831, 0
      %v870 = vsel %vm404, %v832, 0
      %v873 = vsel %vm404, %v833, 0
      %v876 = vsel %vm404, %v834, 0
      %v879 = vsel %vm404, %v835, 0
      %881 = vmatprep.subr.mxu0 0.0
      %882 = vmatpush1.msra.mxu0 0.0
      %883 = vmatprep.subr.mxu0 0.0
      %884 = vmatpush1.msra.mxu0 0.0
      %885 = vmatprep.subr.mxu0 0.0
      %886 = vmatpush1.msra.mxu0 0.0
      %887 = vmatprep.subr.mxu0 0.0
      %888 = vmatpush1.msra.mxu0 0.0
      %889 = vmatprep.subr.mxu0 0.0
      %890 = vmatpush1.msra.mxu0 0.0
      %891 = vmatprep.subr.mxu0 0.0
      %892 = vmatpush1.msra.mxu0 0.0
      %893 = vmatprep.subr.mxu0 0.0
      %894 = vmatpush1.msra.mxu0 0.0
      %895 = vmatprep.subr.mxu0 0.0
      %896 = vmatpush1.msra.mxu0 0.0
      %897 = vmatprep.subr.mxu0 0.0
      %898 = vmatpush1.msra.mxu0 0.0
      %899 = vmatprep.subr.mxu0 0.0
      %900 = vmatpush1.msra.mxu0 0.0
      %901 = vmatprep.subr.mxu0 0.0
      %902 = vmatpush1.msra.mxu0 0.0
      %903 = vmatprep.subr.mxu0 0.0
      %904 = vmatpush1.msra.mxu0 0.0
      %905 = vmatprep.subr.mxu0 0.0
      %906 = vmatpush1.msra.mxu0 0.0
      %907 = vmatprep.subr.mxu0 0.0
      %908 = vmatpush1.msra.mxu0 0.0
      %909 = vmatprep.subr.mxu0 0.0
      %910 = vmatpush1.msra.mxu0 %v838
      %911 = vmatprep.subr.mxu0 0.0
      %912 = vmatpush1.msra.mxu0 %v837
      %913 = vmatprep.subr.mxu0 0.0
      %914 = vmatpush2.msra.mxu0 0.0
      %915 = vmatprep.subr.mxu0 0.0
      %916 = vmatpush2.msra.mxu0 0.0
      %917 = vmatprep.subr.mxu0 0.0
      %918 = vmatpush2.msra.mxu0 0.0
      %919 = vmatprep.subr.mxu0 0.0
      %920 = vmatpush2.msra.mxu0 0.0
      %921 = vmatprep.subr.mxu0 0.0
      %922 = vmatpush2.msra.mxu0 0.0
      %923 = vmatprep.subr.mxu0 0.0
      %924 = vmatpush2.msra.mxu0 0.0
      %925 = vmatprep.subr.mxu0 0.0
      %926 = vmatpush2.msra.mxu0 0.0
      %927 = vmatprep.subr.mxu0 0.0
      %928 = vmatpush2.msra.mxu0 0.0
      %929 = vmatprep.subr.mxu0 0.0
      %930 = vmatpush2.msra.mxu0 0.0
      %931 = vmatprep.subr.mxu0 0.0
      %932 = vmatpush2.msra.mxu0 0.0
      %933 = vmatprep.subr.mxu0 0.0
      %934 = vmatpush2.msra.mxu0 0.0
      %935 = vmatprep.subr.mxu0 0.0
      %936 = vmatpush2.msra.mxu0 0.0
      %937 = vmatprep.subr.mxu0 0.0
      %938 = vmatpush2.msra.mxu0 0.0
      %939 = vmatprep.subr.mxu0 0.0
      %940 = vmatpush2.msra.mxu0 0.0
      %941 = vmatprep.subr.mxu0 0.0
      %942 = vmatpush2.msra.mxu0 0.0
      %943 = vmatprep.subr.mxu0 0.0
      %944 = vmatpush2.msra.mxu0 0.0
      %945 = vmatprep.mubr.f32.mxu0 0.0
      %946 = vmatmul.mubr.f32.gmra.mxu0 %v840
      %v947 = vpop.f32.mrf.mxu0
      %v948 = vadd.f32 0.0, %v947
      %v949 = vpop.f32.mrf.mxu0
      %950 = vmatprep.mubr.f32.mxu0 0.0
      %951 = vmatmul.mubr.f32.gmra.mxu0 %v843
      %v952 = vpop.f32.mrf.mxu0
      %v953 = vadd.f32 0.0, %v952
      %v954 = vpop.f32.mrf.mxu0
      %955 = vmatprep.mubr.f32.mxu0 0.0
      %956 = vmatmul.mubr.f32.gmra.mxu0 %v846
      %v957 = vpop.f32.mrf.mxu0
      %v958 = vadd.f32 0.0, %v957
      %v959 = vpop.f32.mrf.mxu0
      %960 = vmatprep.mubr.f32.mxu0 0.0
      %961 = vmatmul.mubr.f32.gmra.mxu0 %v849
      %v962 = vpop.f32.mrf.mxu0
      %v963 = vadd.f32 0.0, %v962
      %v964 = vpop.f32.mrf.mxu0
      %965 = vmatprep.mubr.f32.mxu0 0.0
      %966 = vmatmul.mubr.f32.gmra.mxu0 %v852
      %v967 = vpop.f32.mrf.mxu0
      %v968 = vadd.f32 0.0, %v967
      %v969 = vpop.f32.mrf.mxu0
      %970 = vmatprep.mubr.f32.mxu0 0.0
      %971 = vmatmul.mubr.f32.gmra.mxu0 %v855
      %v972 = vpop.f32.mrf.mxu0
      %v973 = vadd.f32 0.0, %v972
      %v974 = vpop.f32.mrf.mxu0
      %975 = vmatprep.mubr.f32.mxu0 0.0
      %976 = vmatmul.mubr.f32.gmra.mxu0 %v858
      %v977 = vpop.f32.mrf.mxu0
      %v978 = vadd.f32 0.0, %v977
      %v979 = vpop.f32.mrf.mxu0
      %980 = vmatprep.mubr.f32.mxu0 0.0
      %981 = vmatmul.mubr.f32.gmra.mxu0 %v861
      %v982 = vpop.f32.mrf.mxu0
      %v983 = vadd.f32 0.0, %v982
      %v984 = vpop.f32.mrf.mxu0
      %985 = vmatprep.mubr.f32.mxu0 0.0
      %986 = vmatmul.mubr.f32.gmra.mxu0 %v864
      %v987 = vpop.f32.mrf.mxu0
      %v988 = vadd.f32 0.0, %v987
      %v989 = vpop.f32.mrf.mxu0
      %990 = vmatprep.mubr.f32.mxu0 0.0
      %991 = vmatmul.mubr.f32.gmra.mxu0 %v867
      %v992 = vpop.f32.mrf.mxu0
      %v993 = vadd.f32 0.0, %v992
      %v994 = vpop.f32.mrf.mxu0
      %995 = vmatprep.mubr.f32.mxu0 0.0
      %996 = vmatmul.mubr.f32.gmra.mxu0 %v870
      %v997 = vpop.f32.mrf.mxu0
      %v998 = vadd.f32 0.0, %v997
      %v999 = vpop.f32.mrf.mxu0
      %1000 = vmatprep.mubr.f32.mxu0 0.0
      %1001 = vmatmul.mubr.f32.gmra.mxu0 %v873
      %v1002 = vpop.f32.mrf.mxu0
      %v1003 = vadd.f32 0.0, %v1002
      %v1004 = vpop.f32.mrf.mxu0
      %1005 = vmatprep.mubr.f32.mxu0 0.0
      %1006 = vmatmul.mubr.f32.gmra.mxu0 %v876
      %v1007 = vpop.f32.mrf.mxu0
      %v1008 = vadd.f32 0.0, %v1007
      %v1009 = vpop.f32.mrf.mxu0
      %1010 = vmatprep.mubr.f32.mxu0 0.0
      %1011 = vmatmul.mubr.f32.gmra.mxu0 %v879
      %v1012 = vpop.f32.mrf.mxu0
      %v1013 = vadd.f32 0.0, %v1012
      %v1014 = vpop.f32.mrf.mxu0
      %1015 = vdwg.mxu0
      %v1016 = vadd.f32 %v807, %v948
      %v1017 = vadd.f32 %v808, %v953
      %v1018 = vadd.f32 %v809, %v958
      %v1019 = vadd.f32 %v810, %v963
      %v1020 = vadd.f32 %v811, %v968
      %v1021 = vadd.f32 %v812, %v973
      %v1022 = vadd.f32 %v813, %v978
      %v1023 = vadd.f32 %v814, %v983
      %v1024 = vadd.f32 %v815, %v988
      %v1025 = vadd.f32 %v816, %v993
      %v1026 = vadd.f32 %v817, %v998
      %v1027 = vadd.f32 %v818, %v1003
      %v1028 = vadd.f32 %v819, %v1008
      %v1029 = vadd.f32 %v820, %v1013
      %1030 = vst.msk [vmem:[#allocation2] sm:$0xff] %vm404, %v1016
      %1031 = vst.msk [vmem:[#allocation2 + $0x8] sm:$0xff] %vm404, %v1017
      %1032 = vst.msk [vmem:[#allocation2 + $0x10] sm:$0xff] %vm404, %v1018
      %1033 = vst.msk [vmem:[#allocation2 + $0x18] sm:$0xff] %vm404, %v1019
      %1034 = vst.msk [vmem:[#allocation2 + $0x20] sm:$0xff] %vm404, %v1020
      %1035 = vst.msk [vmem:[#allocation2 + $0x28] sm:$0xff] %vm404, %v1021
      %1036 = vst.msk [vmem:[#allocation2 + $0x30] sm:$0xff] %vm404, %v1022
      %1037 = vst.msk [vmem:[#allocation2 + $0x38] sm:$0xff] %vm404, %v1023
      %1038 = vst.msk [vmem:[#allocation2 + $0x40] sm:$0xff] %vm404, %v1024
      %1039 = vst.msk [vmem:[#allocation2 + $0x48] sm:$0xff] %vm404, %v1025
      %1040 = vst.msk [vmem:[#allocation2 + $0x50] sm:$0xff] %vm404, %v1026
      %1041 = vst.msk [vmem:[#allocation2 + $0x58] sm:$0xff] %vm404, %v1027
      %1042 = vst.msk [vmem:[#allocation2 + $0x60] sm:$0xff] %vm404, %v1028
      %1043 = vst.msk [vmem:[#allocation2 + $0x68] sm:$0xff] %vm404, %v1029
      %v1044 = vld [vmem:[#allocation2] sm:$0xff]
      %v1045 = vld [vmem:[#allocation2 + $0x8] sm:$0xff]
      %v1046 = vld [vmem:[#allocation2 + $0x10] sm:$0xff]
      %v1047 = vld [vmem:[#allocation2 + $0x18] sm:$0xff]
      %v1048 = vld [vmem:[#allocation2 + $0x20] sm:$0xff]
      %v1049 = vld [vmem:[#allocation2 + $0x28] sm:$0xff]
      %v1050 = vld [vmem:[#allocation2 + $0x30] sm:$0xff]
      %v1051 = vld [vmem:[#allocation2 + $0x38] sm:$0xff]
      %v1052 = vld [vmem:[#allocation2 + $0x40] sm:$0xff]
      %v1053 = vld [vmem:[#allocation2 + $0x48] sm:$0xff]
      %v1054 = vld [vmem:[#allocation2 + $0x50] sm:$0xff]
      %v1055 = vld [vmem:[#allocation2 + $0x58] sm:$0xff]
      %v1056 = vld [vmem:[#allocation2 + $0x60] sm:$0xff]
      %v1057 = vld [vmem:[#allocation2 + $0x68] sm:$0xff]
      %v1058 = vld [vmem:[%s821 + $0x1] sm:$0xff]
      %v1059 = vld [vmem:[%s821 + $0x9] sm:$0xff]
      %v1060 = vld [vmem:[%s821 + $0x19] sm:$0xff]
      %v1061 = vld [vmem:[%s821 + $0x21] sm:$0xff]
      %v1062 = vld [vmem:[%s821 + $0x31] sm:$0xff]
      %v1063 = vld [vmem:[%s821 + $0x39] sm:$0xff]
      %v1064 = vld [vmem:[%s821 + $0x49] sm:$0xff]
      %v1065 = vld [vmem:[%s821 + $0x51] sm:$0xff]
      %v1066 = vld [vmem:[%s821 + $0x61] sm:$0xff]
      %v1067 = vld [vmem:[%s821 + $0x69] sm:$0xff]
      %v1068 = vld [vmem:[%s821 + $0x79] sm:$0xff]
      %v1069 = vld [vmem:[%s821 + $0x81] sm:$0xff]
      %v1070 = vld [vmem:[%s821 + $0x91] sm:$0xff]
      %v1071 = vld [vmem:[%s821 + $0x99] sm:$0xff]
      %s1072 = scalar_lea.vmem %s2, 48
      %v1073 = vld [vmem:[%s1072] sm:$0xff]
      %v1074 = vld [vmem:[%s1072 + $0x8] sm:$0xff]
      %v1076 = vsel %vm404, %v1058, 0
      %v1079 = vsel %vm404, %v1059, 0
      %v1082 = vsel %vm404, %v1060, 0
      %v1085 = vsel %vm404, %v1061, 0
      %v1088 = vsel %vm404, %v1062, 0
      %v1091 = vsel %vm404, %v1063, 0
      %v1094 = vsel %vm404, %v1064, 0
      %v1097 = vsel %vm404, %v1065, 0
      %v1100 = vsel %vm404, %v1066, 0
      %v1103 = vsel %vm404, %v1067, 0
      %v1106 = vsel %vm404, %v1068, 0
      %v1109 = vsel %vm404, %v1069, 0
      %v1112 = vsel %vm404, %v1070, 0
      %v1115 = vsel %vm404, %v1071, 0
      %1117 = vmatprep.subr.mxu0 0.0
      %1118 = vmatpush1.msra.mxu0 0.0
      %1119 = vmatprep.subr.mxu0 0.0
      %1120 = vmatpush1.msra.mxu0 0.0
      %1121 = vmatprep.subr.mxu0 0.0
      %1122 = vmatpush1.msra.mxu0 0.0
      %1123 = vmatprep.subr.mxu0 0.0
      %1124 = vmatpush1.msra.mxu0 0.0
      %1125 = vmatprep.subr.mxu0 0.0
      %1126 = vmatpush1.msra.mxu0 0.0
      %1127 = vmatprep.subr.mxu0 0.0
      %1128 = vmatpush1.msra.mxu0 0.0
      %1129 = vmatprep.subr.mxu0 0.0
      %1130 = vmatpush1.msra.mxu0 0.0
      %1131 = vmatprep.subr.mxu0 0.0
      %1132 = vmatpush1.msra.mxu0 0.0
      %1133 = vmatprep.subr.mxu0 0.0
      %1134 = vmatpush1.msra.mxu0 0.0
      %1135 = vmatprep.subr.mxu0 0.0
      %1136 = vmatpush1.msra.mxu0 0.0
      %1137 = vmatprep.subr.mxu0 0.0
      %1138 = vmatpush1.msra.mxu0 0.0
      %1139 = vmatprep.subr.mxu0 0.0
      %1140 = vmatpush1.msra.mxu0 0.0
      %1141 = vmatprep.subr.mxu0 0.0
      %1142 = vmatpush1.msra.mxu0 0.0
      %1143 = vmatprep.subr.mxu0 0.0
      %1144 = vmatpush1.msra.mxu0 0.0
      %1145 = vmatprep.subr.mxu0 0.0
      %1146 = vmatpush1.msra.mxu0 %v1074
      %1147 = vmatprep.subr.mxu0 0.0
      %1148 = vmatpush1.msra.mxu0 %v1073
      %1149 = vmatprep.subr.mxu0 0.0
      %1150 = vmatpush2.msra.mxu0 0.0
      %1151 = vmatprep.subr.mxu0 0.0
      %1152 = vmatpush2.msra.mxu0 0.0
      %1153 = vmatprep.subr.mxu0 0.0
      %1154 = vmatpush2.msra.mxu0 0.0
      %1155 = vmatprep.subr.mxu0 0.0
      %1156 = vmatpush2.msra.mxu0 0.0
      %1157 = vmatprep.subr.mxu0 0.0
      %1158 = vmatpush2.msra.mxu0 0.0
      %1159 = vmatprep.subr.mxu0 0.0
      %1160 = vmatpush2.msra.mxu0 0.0
      %1161 = vmatprep.subr.mxu0 0.0
      %1162 = vmatpush2.msra.mxu0 0.0
      %1163 = vmatprep.subr.mxu0 0.0
      %1164 = vmatpush2.msra.mxu0 0.0
      %1165 = vmatprep.subr.mxu0 0.0
      %1166 = vmatpush2.msra.mxu0 0.0
      %1167 = vmatprep.subr.mxu0 0.0
      %1168 = vmatpush2.msra.mxu0 0.0
      %1169 = vmatprep.subr.mxu0 0.0
      %1170 = vmatpush2.msra.mxu0 0.0
      %1171 = vmatprep.subr.mxu0 0.0
      %1172 = vmatpush2.msra.mxu0 0.0
      %1173 = vmatprep.subr.mxu0 0.0
      %1174 = vmatpush2.msra.mxu0 0.0
      %1175 = vmatprep.subr.mxu0 0.0
      %1176 = vmatpush2.msra.mxu0 0.0
      %1177 = vmatprep.subr.mxu0 0.0
      %1178 = vmatpush2.msra.mxu0 0.0
      %1179 = vmatprep.subr.mxu0 0.0
      %1180 = vmatpush2.msra.mxu0 0.0
      %1181 = vmatprep.mubr.f32.mxu0 0.0
      %1182 = vmatmul.mubr.f32.gmra.mxu0 %v1076
      %v1183 = vpop.f32.mrf.mxu0
      %v1184 = vadd.f32 0.0, %v1183
      %v1185 = vpop.f32.mrf.mxu0
      %1186 = vmatprep.mubr.f32.mxu0 0.0
      %1187 = vmatmul.mubr.f32.gmra.mxu0 %v1079
      %v1188 = vpop.f32.mrf.mxu0
      %v1189 = vadd.f32 0.0, %v1188
      %v1190 = vpop.f32.mrf.mxu0
      %1191 = vmatprep.mubr.f32.mxu0 0.0
      %1192 = vmatmul.mubr.f32.gmra.mxu0 %v1082
      %v1193 = vpop.f32.mrf.mxu0
      %v1194 = vadd.f32 0.0, %v1193
      %v1195 = vpop.f32.mrf.mxu0
      %1196 = vmatprep.mubr.f32.mxu0 0.0
      %1197 = vmatmul.mubr.f32.gmra.mxu0 %v1085
      %v1198 = vpop.f32.mrf.mxu0
      %v1199 = vadd.f32 0.0, %v1198
      %v1200 = vpop.f32.mrf.mxu0
      %1201 = vmatprep.mubr.f32.mxu0 0.0
      %1202 = vmatmul.mubr.f32.gmra.mxu0 %v1088
      %v1203 = vpop.f32.mrf.mxu0
      %v1204 = vadd.f32 0.0, %v1203
      %v1205 = vpop.f32.mrf.mxu0
      %1206 = vmatprep.mubr.f32.mxu0 0.0
      %1207 = vmatmul.mubr.f32.gmra.mxu0 %v1091
      %v1208 = vpop.f32.mrf.mxu0
      %v1209 = vadd.f32 0.0, %v1208
      %v1210 = vpop.f32.mrf.mxu0
      %1211 = vmatprep.mubr.f32.mxu0 0.0
      %1212 = vmatmul.mubr.f32.gmra.mxu0 %v1094
      %v1213 = vpop.f32.mrf.mxu0
      %v1214 = vadd.f32 0.0, %v1213
      %v1215 = vpop.f32.mrf.mxu0
      %1216 = vmatprep.mubr.f32.mxu0 0.0
      %1217 = vmatmul.mubr.f32.gmra.mxu0 %v1097
      %v1218 = vpop.f32.mrf.mxu0
      %v1219 = vadd.f32 0.0, %v1218
      %v1220 = vpop.f32.mrf.mxu0
      %1221 = vmatprep.mubr.f32.mxu0 0.0
      %1222 = vmatmul.mubr.f32.gmra.mxu0 %v1100
      %v1223 = vpop.f32.mrf.mxu0
      %v1224 = vadd.f32 0.0, %v1223
      %v1225 = vpop.f32.mrf.mxu0
      %1226 = vmatprep.mubr.f32.mxu0 0.0
      %1227 = vmatmul.mubr.f32.gmra.mxu0 %v1103
      %v1228 = vpop.f32.mrf.mxu0
      %v1229 = vadd.f32 0.0, %v1228
      %v1230 = vpop.f32.mrf.mxu0
      %1231 = vmatprep.mubr.f32.mxu0 0.0
      %1232 = vmatmul.mubr.f32.gmra.mxu0 %v1106
      %v1233 = vpop.f32.mrf.mxu0
      %v1234 = vadd.f32 0.0, %v1233
      %v1235 = vpop.f32.mrf.mxu0
      %1236 = vmatprep.mubr.f32.mxu0 0.0
      %1237 = vmatmul.mubr.f32.gmra.mxu0 %v1109
      %v1238 = vpop.f32.mrf.mxu0
      %v1239 = vadd.f32 0.0, %v1238
      %v1240 = vpop.f32.mrf.mxu0
      %1241 = vmatprep.mubr.f32.mxu0 0.0
      %1242 = vmatmul.mubr.f32.gmra.mxu0 %v1112
      %v1243 = vpop.f32.mrf.mxu0
      %v1244 = vadd.f32 0.0, %v1243
      %v1245 = vpop.f32.mrf.mxu0
      %1246 = vmatprep.mubr.f32.mxu0 0.0
      %1247 = vmatmul.mubr.f32.gmra.mxu0 %v1115
      %v1248 = vpop.f32.mrf.mxu0
      %v1249 = vadd.f32 0.0, %v1248
      %v1250 = vpop.f32.mrf.mxu0
      %1251 = vdwg.mxu0
      %v1252 = vadd.f32 %v1044, %v1184
      %v1253 = vadd.f32 %v1045, %v1189
      %v1254 = vadd.f32 %v1046, %v1194
      %v1255 = vadd.f32 %v1047, %v1199
      %v1256 = vadd.f32 %v1048, %v1204
      %v1257 = vadd.f32 %v1049, %v1209
      %v1258 = vadd.f32 %v1050, %v1214
      %v1259 = vadd.f32 %v1051, %v1219
      %v1260 = vadd.f32 %v1052, %v1224
      %v1261 = vadd.f32 %v1053, %v1229
      %v1262 = vadd.f32 %v1054, %v1234
      %v1263 = vadd.f32 %v1055, %v1239
      %v1264 = vadd.f32 %v1056, %v1244
      %v1265 = vadd.f32 %v1057, %v1249
      %1266 = vst.msk [vmem:[#allocation2] sm:$0xff] %vm404, %v1252
      %1267 = vst.msk [vmem:[#allocation2 + $0x8] sm:$0xff] %vm404, %v1253
      %1268 = vst.msk [vmem:[#allocation2 + $0x10] sm:$0xff] %vm404, %v1254
      %1269 = vst.msk [vmem:[#allocation2 + $0x18] sm:$0xff] %vm404, %v1255
      %1270 = vst.msk [vmem:[#allocation2 + $0x20] sm:$0xff] %vm404, %v1256
      %1271 = vst.msk [vmem:[#allocation2 + $0x28] sm:$0xff] %vm404, %v1257
      %1272 = vst.msk [vmem:[#allocation2 + $0x30] sm:$0xff] %vm404, %v1258
      %1273 = vst.msk [vmem:[#allocation2 + $0x38] sm:$0xff] %vm404, %v1259
      %1274 = vst.msk [vmem:[#allocation2 + $0x40] sm:$0xff] %vm404, %v1260
      %1275 = vst.msk [vmem:[#allocation2 + $0x48] sm:$0xff] %vm404, %v1261
      %1276 = vst.msk [vmem:[#allocation2 + $0x50] sm:$0xff] %vm404, %v1262
      %1277 = vst.msk [vmem:[#allocation2 + $0x58] sm:$0xff] %vm404, %v1263
      %1278 = vst.msk [vmem:[#allocation2 + $0x60] sm:$0xff] %vm404, %v1264
      %1279 = vst.msk [vmem:[#allocation2 + $0x68] sm:$0xff] %vm404, %v1265
      %v1280 = vld [vmem:[#allocation2 + $0x70] sm:$0xff]
      %v1281 = vld [vmem:[#allocation2 + $0x78] sm:$0xff]
      %v1282 = vld [vmem:[%s354] sm:$0xff]
      %v1283 = vld [vmem:[%s354 + $0x8] sm:$0xff]
      %v1284 = vld [vmem:[%s836] sm:$0xff]
      %v1285 = vld [vmem:[%s836 + $0x8] sm:$0xff]
      %v1287 = vsel %vm404, %v1282, 0
      %v1290 = vsel %vm404, %v1283, 0
      %1292 = vmatprep.subr.mxu0 0.0
      %1293 = vmatpush1.msra.mxu0 0.0
      %1294 = vmatprep.subr.mxu0 0.0
      %1295 = vmatpush1.msra.mxu0 0.0
      %1296 = vmatprep.subr.mxu0 0.0
      %1297 = vmatpush1.msra.mxu0 0.0
      %1298 = vmatprep.subr.mxu0 0.0
      %1299 = vmatpush1.msra.mxu0 0.0
      %1300 = vmatprep.subr.mxu0 0.0
      %1301 = vmatpush1.msra.mxu0 0.0
      %1302 = vmatprep.subr.mxu0 0.0
      %1303 = vmatpush1.msra.mxu0 0.0
      %1304 = vmatprep.subr.mxu0 0.0
      %1305 = vmatpush1.msra.mxu0 0.0
      %1306 = vmatprep.subr.mxu0 0.0
      %1307 = vmatpush1.msra.mxu0 0.0
      %1308 = vmatprep.subr.mxu0 0.0
      %1309 = vmatpush1.msra.mxu0 0.0
      %1310 = vmatprep.subr.mxu0 0.0
      %1311 = vmatpush1.msra.mxu0 0.0
      %1312 = vmatprep.subr.mxu0 0.0
      %1313 = vmatpush1.msra.mxu0 0.0
      %1314 = vmatprep.subr.mxu0 0.0
      %1315 = vmatpush1.msra.mxu0 0.0
      %1316 = vmatprep.subr.mxu0 0.0
      %1317 = vmatpush1.msra.mxu0 0.0
      %1318 = vmatprep.subr.mxu0 0.0
      %1319 = vmatpush1.msra.mxu0 0.0
      %1320 = vmatprep.subr.mxu0 0.0
      %1321 = vmatpush1.msra.mxu0 %v1285
      %1322 = vmatprep.subr.mxu0 0.0
      %1323 = vmatpush1.msra.mxu0 %v1284
      %1324 = vmatprep.subr.mxu0 0.0
      %1325 = vmatpush2.msra.mxu0 0.0
      %1326 = vmatprep.subr.mxu0 0.0
      %1327 = vmatpush2.msra.mxu0 0.0
      %1328 = vmatprep.subr.mxu0 0.0
      %1329 = vmatpush2.msra.mxu0 0.0
      %1330 = vmatprep.subr.mxu0 0.0
      %1331 = vmatpush2.msra.mxu0 0.0
      %1332 = vmatprep.subr.mxu0 0.0
      %1333 = vmatpush2.msra.mxu0 0.0
      %1334 = vmatprep.subr.mxu0 0.0
      %1335 = vmatpush2.msra.mxu0 0.0
      %1336 = vmatprep.subr.mxu0 0.0
      %1337 = vmatpush2.msra.mxu0 0.0
      %1338 = vmatprep.subr.mxu0 0.0
      %1339 = vmatpush2.msra.mxu0 0.0
      %1340 = vmatprep.subr.mxu0 0.0
      %1341 = vmatpush2.msra.mxu0 0.0
      %1342 = vmatprep.subr.mxu0 0.0
      %1343 = vmatpush2.msra.mxu0 0.0
      %1344 = vmatprep.subr.mxu0 0.0
      %1345 = vmatpush2.msra.mxu0 0.0
      %1346 = vmatprep.subr.mxu0 0.0
      %1347 = vmatpush2.msra.mxu0 0.0
      %1348 = vmatprep.subr.mxu0 0.0
      %1349 = vmatpush2.msra.mxu0 0.0
      %1350 = vmatprep.subr.mxu0 0.0
      %1351 = vmatpush2.msra.mxu0 0.0
      %1352 = vmatprep.subr.mxu0 0.0
      %1353 = vmatpush2.msra.mxu0 0.0
      %1354 = vmatprep.subr.mxu0 0.0
      %1355 = vmatpush2.msra.mxu0 0.0
      %1356 = vmatprep.mubr.f32.mxu0 0.0
      %1357 = vmatmul.mubr.f32.gmra.mxu0 %v1287
      %v1358 = vpop.f32.mrf.mxu0
      %v1359 = vadd.f32 0.0, %v1358
      %v1360 = vpop.f32.mrf.mxu0
      %1361 = vmatprep.mubr.f32.mxu0 0.0
      %1362 = vmatmul.mubr.f32.gmra.mxu0 %v1290
      %v1363 = vpop.f32.mrf.mxu0
      %v1364 = vadd.f32 0.0, %v1363
      %v1365 = vpop.f32.mrf.mxu0
      %1366 = vdwg.mxu0
      %v1367 = vadd.f32 %v1280, %v1359
      %v1368 = vadd.f32 %v1281, %v1364
      %1369 = vst.msk [vmem:[#allocation2 + $0x70] sm:$0xff] %vm404, %v1367
      %1370 = vst.msk [vmem:[#allocation2 + $0x78] sm:$0xff] %vm404, %v1368
      %v1371 = vld [vmem:[#allocation2 + $0x70] sm:$0xff]
      %v1372 = vld [vmem:[#allocation2 + $0x78] sm:$0xff]
      %v1373 = vld [vmem:[%s354 + $0x1] sm:$0xff]
      %v1374 = vld [vmem:[%s354 + $0x9] sm:$0xff]
      %v1375 = vld [vmem:[%s1072] sm:$0xff]
      %v1376 = vld [vmem:[%s1072 + $0x8] sm:$0xff]
      %v1378 = vsel %vm404, %v1373, 0
      %v1381 = vsel %vm404, %v1374, 0
      %1383 = vmatprep.subr.mxu0 0.0
      %1384 = vmatpush1.msra.mxu0 0.0
      %1385 = vmatprep.subr.mxu0 0.0
      %1386 = vmatpush1.msra.mxu0 0.0
      %1387 = vmatprep.subr.mxu0 0.0
      %1388 = vmatpush1.msra.mxu0 0.0
      %1389 = vmatprep.subr.mxu0 0.0
      %1390 = vmatpush1.msra.mxu0 0.0
      %1391 = vmatprep.subr.mxu0 0.0
      %1392 = vmatpush1.msra.mxu0 0.0
      %1393 = vmatprep.subr.mxu0 0.0
      %1394 = vmatpush1.msra.mxu0 0.0
      %1395 = vmatprep.subr.mxu0 0.0
      %1396 = vmatpush1.msra.mxu0 0.0
      %1397 = vmatprep.subr.mxu0 0.0
      %1398 = vmatpush1.msra.mxu0 0.0
      %1399 = vmatprep.subr.mxu0 0.0
      %1400 = vmatpush1.msra.mxu0 0.0
      %1401 = vmatprep.subr.mxu0 0.0
      %1402 = vmatpush1.msra.mxu0 0.0
      %1403 = vmatprep.subr.mxu0 0.0
      %1404 = vmatpush1.msra.mxu0 0.0
      %1405 = vmatprep.subr.mxu0 0.0
      %1406 = vmatpush1.msra.mxu0 0.0
      %1407 = vmatprep.subr.mxu0 0.0
      %1408 = vmatpush1.msra.mxu0 0.0
      %1409 = vmatprep.subr.mxu0 0.0
      %1410 = vmatpush1.msra.mxu0 0.0
      %1411 = vmatprep.subr.mxu0 0.0
      %1412 = vmatpush1.msra.mxu0 %v1376
      %1413 = vmatprep.subr.mxu0 0.0
      %1414 = vmatpush1.msra.mxu0 %v1375
      %1415 = vmatprep.subr.mxu0 0.0
      %1416 = vmatpush2.msra.mxu0 0.0
      %1417 = vmatprep.subr.mxu0 0.0
      %1418 = vmatpush2.msra.mxu0 0.0
      %1419 = vmatprep.subr.mxu0 0.0
      %1420 = vmatpush2.msra.mxu0 0.0
      %1421 = vmatprep.subr.mxu0 0.0
      %1422 = vmatpush2.msra.mxu0 0.0
      %1423 = vmatprep.subr.mxu0 0.0
      %1424 = vmatpush2.msra.mxu0 0.0
      %1425 = vmatprep.subr.mxu0 0.0
      %1426 = vmatpush2.msra.mxu0 0.0
      %1427 = vmatprep.subr.mxu0 0.0
      %1428 = vmatpush2.msra.mxu0 0.0
      %1429 = vmatprep.subr.mxu0 0.0
      %1430 = vmatpush2.msra.mxu0 0.0
      %1431 = vmatprep.subr.mxu0 0.0
      %1432 = vmatpush2.msra.mxu0 0.0
      %1433 = vmatprep.subr.mxu0 0.0
      %1434 = vmatpush2.msra.mxu0 0.0
      %1435 = vmatprep.subr.mxu0 0.0
      %1436 = vmatpush2.msra.mxu0 0.0
      %1437 = vmatprep.subr.mxu0 0.0
      %1438 = vmatpush2.msra.mxu0 0.0
      %1439 = vmatprep.subr.mxu0 0.0
      %1440 = vmatpush2.msra.mxu0 0.0
      %1441 = vmatprep.subr.mxu0 0.0
      %1442 = vmatpush2.msra.mxu0 0.0
      %1443 = vmatprep.subr.mxu0 0.0
      %1444 = vmatpush2.msra.mxu0 0.0
      %1445 = vmatprep.subr.mxu0 0.0
      %1446 = vmatpush2.msra.mxu0 0.0
      %1447 = vmatprep.mubr.f32.mxu0 0.0
      %1448 = vmatmul.mubr.f32.gmra.mxu0 %v1378
      %v1449 = vpop.f32.mrf.mxu0
      %v1450 = vadd.f32 0.0, %v1449
      %v1451 = vpop.f32.mrf.mxu0
      %1452 = vmatprep.mubr.f32.mxu0 0.0
      %1453 = vmatmul.mubr.f32.gmra.mxu0 %v1381
      %v1454 = vpop.f32.mrf.mxu0
      %v1455 = vadd.f32 0.0, %v1454
      %v1456 = vpop.f32.mrf.mxu0
      %1457 = vdwg.mxu0
      %v1458 = vadd.f32 %v1371, %v1450
      %v1459 = vadd.f32 %v1372, %v1455
      %1460 = vst.msk [vmem:[#allocation2 + $0x70] sm:$0xff] %vm404, %v1458
      %1461 = vst.msk [vmem:[#allocation2 + $0x78] sm:$0xff] %vm404, %v1459
      %v1462 = vld [vmem:[#allocation2] sm:$0xff]
      %v1463 = vld [vmem:[#allocation2 + $0x8] sm:$0xff]
      %v1464 = vld [vmem:[#allocation2 + $0x10] sm:$0xff]
      %v1465 = vld [vmem:[#allocation2 + $0x18] sm:$0xff]
      %v1466 = vld [vmem:[#allocation2 + $0x20] sm:$0xff]
      %v1467 = vld [vmem:[#allocation2 + $0x28] sm:$0xff]
      %v1468 = vld [vmem:[#allocation2 + $0x30] sm:$0xff]
      %v1469 = vld [vmem:[#allocation2 + $0x38] sm:$0xff]
      %v1470 = vld [vmem:[#allocation2 + $0x40] sm:$0xff]
      %v1471 = vld [vmem:[#allocation2 + $0x48] sm:$0xff]
      %v1472 = vld [vmem:[#allocation2 + $0x50] sm:$0xff]
      %v1473 = vld [vmem:[#allocation2 + $0x58] sm:$0xff]
      %v1474 = vld [vmem:[#allocation2 + $0x60] sm:$0xff]
      %v1475 = vld [vmem:[#allocation2 + $0x68] sm:$0xff]
      %v1476 = vld [vmem:[#allocation2 + $0x70] sm:$0xff]
      %v1477 = vld [vmem:[#allocation2 + $0x78] sm:$0xff]
      %v1478 = vld [vmem:[%s3] sm:$0x1]
      %v1480 = vlaneseq
      %v1481 = vshrl.u32 %v1480, 7
      %v1482 = vsub.s32 0, %v1481
      %v1483 = vrot.slane %v1478, %v1482
      %v1485 = vadd.f32 %v1462, %v1483
      %v1486 = vadd.f32 %v1463, %v1483
      %v1487 = vadd.f32 %v1464, %v1483
      %v1488 = vadd.f32 %v1465, %v1483
      %v1489 = vadd.f32 %v1466, %v1483
      %v1490 = vadd.f32 %v1467, %v1483
      %v1491 = vadd.f32 %v1468, %v1483
      %v1492 = vadd.f32 %v1469, %v1483
      %v1493 = vadd.f32 %v1470, %v1483
      %v1494 = vadd.f32 %v1471, %v1483
      %v1495 = vadd.f32 %v1472, %v1483
      %v1496 = vadd.f32 %v1473, %v1483
      %v1497 = vadd.f32 %v1474, %v1483
      %v1498 = vadd.f32 %v1475, %v1483
      %v1499 = vadd.f32 %v1476, %v1483
      %v1500 = vadd.f32 %v1477, %v1483
      %v1501 = vmul.f32 %v1485, 0.1
      %v1502 = vmul.f32 %v1486, 0.1
      %v1503 = vmul.f32 %v1487, 0.1
      %v1504 = vmul.f32 %v1488, 0.1
      %v1505 = vmul.f32 %v1489, 0.1
      %v1506 = vmul.f32 %v1490, 0.1
      %v1507 = vmul.f32 %v1491, 0.1
      %v1508 = vmul.f32 %v1492, 0.1
      %v1509 = vmul.f32 %v1493, 0.1
      %v1510 = vmul.f32 %v1494, 0.1
      %v1511 = vmul.f32 %v1495, 0.1
      %v1512 = vmul.f32 %v1496, 0.1
      %v1513 = vmul.f32 %v1497, 0.1
      %v1514 = vmul.f32 %v1498, 0.1
      %v1515 = vmul.f32 %v1499, 0.1
      %v1516 = vmul.f32 %v1500, 0.1
      %v1517 = vmax.f32 %v1485, %v1501
      %v1518 = vmax.f32 %v1486, %v1502
      %v1519 = vmax.f32 %v1487, %v1503
      %v1520 = vmax.f32 %v1488, %v1504
      %v1521 = vmax.f32 %v1489, %v1505
      %v1522 = vmax.f32 %v1490, %v1506
      %v1523 = vmax.f32 %v1491, %v1507
      %v1524 = vmax.f32 %v1492, %v1508
      %v1525 = vmax.f32 %v1493, %v1509
      %v1526 = vmax.f32 %v1494, %v1510
      %v1527 = vmax.f32 %v1495, %v1511
      %v1528 = vmax.f32 %v1496, %v1512
      %v1529 = vmax.f32 %v1497, %v1513
      %v1530 = vmax.f32 %v1498, %v1514
      %v1531 = vmax.f32 %v1499, %v1515
      %v1532 = vmax.f32 %v1500, %v1516
      %v1533 = vld [vmem:[%s4] sm:$0xff]
      %v1534 = vld [vmem:[%s5] sm:$0x1]
      %v1536 = vlaneseq
      %v1537 = vshrl.u32 %v1536, 7
      %v1538 = vsub.s32 0, %v1537
      %v1539 = vrot.slane %v1534, %v1538
      %vm1541 = vcmask 64512
      %v1543 = vsel %vm1541, %v1517, 0
      %v1546 = vsel %vm1541, %v1518, 0
      %v1549 = vsel %vm1541, %v1519, 0
      %v1552 = vsel %vm1541, %v1520, 0
      %v1555 = vsel %vm1541, %v1521, 0
      %v1558 = vsel %vm1541, %v1522, 0
      %v1561 = vsel %vm1541, %v1523, 0
      %v1564 = vsel %vm1541, %v1524, 0
      %v1567 = vsel %vm1541, %v1525, 0
      %v1570 = vsel %vm1541, %v1526, 0
      %v1573 = vsel %vm1541, %v1527, 0
      %v1576 = vsel %vm1541, %v1528, 0
      %v1579 = vsel %vm1541, %v1529, 0
      %v1582 = vsel %vm1541, %v1530, 0
      %v1585 = vsel %vm1541, %v1531, 0
      %v1588 = vsel %vm1541, %v1532, 0
      %1590 = vmatprep.subr.mxu0 0.0
      %1591 = vmatpush1.msra.mxu0 0.0
      %1592 = vmatprep.subr.mxu0 0.0
      %1593 = vmatpush1.msra.mxu0 0.0
      %1594 = vmatprep.subr.mxu0 0.0
      %1595 = vmatpush1.msra.mxu0 0.0
      %1596 = vmatprep.subr.mxu0 0.0
      %1597 = vmatpush1.msra.mxu0 0.0
      %1598 = vmatprep.subr.mxu0 0.0
      %1599 = vmatpush1.msra.mxu0 0.0
      %1600 = vmatprep.subr.mxu0 0.0
      %1601 = vmatpush1.msra.mxu0 0.0
      %1602 = vmatprep.subr.mxu0 0.0
      %1603 = vmatpush1.msra.mxu0 0.0
      %1604 = vmatprep.subr.mxu0 0.0
      %1605 = vmatpush1.msra.mxu0 0.0
      %1606 = vmatprep.subr.mxu0 0.0
      %1607 = vmatpush1.msra.mxu0 0.0
      %1608 = vmatprep.subr.mxu0 0.0
      %1609 = vmatpush1.msra.mxu0 0.0
      %1610 = vmatprep.subr.mxu0 0.0
      %1611 = vmatpush1.msra.mxu0 0.0
      %1612 = vmatprep.subr.mxu0 0.0
      %1613 = vmatpush1.msra.mxu0 0.0
      %1614 = vmatprep.subr.mxu0 0.0
      %1615 = vmatpush1.msra.mxu0 0.0
      %1616 = vmatprep.subr.mxu0 0.0
      %1617 = vmatpush1.msra.mxu0 0.0
      %1618 = vmatprep.subr.mxu0 0.0
      %1619 = vmatpush1.msra.mxu0 0.0
      %1620 = vmatprep.subr.mxu0 0.0
      %1621 = vmatpush1.msra.mxu0 %v1533
      %1622 = vmatprep.subr.mxu0 0.0
      %1623 = vmatpush2.msra.mxu0 0.0
      %1624 = vmatprep.subr.mxu0 0.0
      %1625 = vmatpush2.msra.mxu0 0.0
      %1626 = vmatprep.subr.mxu0 0.0
      %1627 = vmatpush2.msra.mxu0 0.0
      %1628 = vmatprep.subr.mxu0 0.0
      %1629 = vmatpush2.msra.mxu0 0.0
      %1630 = vmatprep.subr.mxu0 0.0
      %1631 = vmatpush2.msra.mxu0 0.0
      %1632 = vmatprep.subr.mxu0 0.0
      %1633 = vmatpush2.msra.mxu0 0.0
      %1634 = vmatprep.subr.mxu0 0.0
      %1635 = vmatpush2.msra.mxu0 0.0
      %1636 = vmatprep.subr.mxu0 0.0
      %1637 = vmatpush2.msra.mxu0 0.0
      %1638 = vmatprep.subr.mxu0 0.0
      %1639 = vmatpush2.msra.mxu0 0.0
      %1640 = vmatprep.subr.mxu0 0.0
      %1641 = vmatpush2.msra.mxu0 0.0
      %1642 = vmatprep.subr.mxu0 0.0
      %1643 = vmatpush2.msra.mxu0 0.0
      %1644 = vmatprep.subr.mxu0 0.0
      %1645 = vmatpush2.msra.mxu0 0.0
      %1646 = vmatprep.subr.mxu0 0.0
      %1647 = vmatpush2.msra.mxu0 0.0
      %1648 = vmatprep.subr.mxu0 0.0
      %1649 = vmatpush2.msra.mxu0 0.0
      %1650 = vmatprep.subr.mxu0 0.0
      %1651 = vmatpush2.msra.mxu0 0.0
      %1652 = vmatprep.subr.mxu0 0.0
      %1653 = vmatpush2.msra.mxu0 0.0
      %1654 = vmatprep.mubr.f32.mxu0 0.0
      %1655 = vmatmul.mubr.f32.gmra.mxu0 %v1543
      %v1656 = vpop.f32.mrf.mxu0
      %v1657 = vadd.f32 %v1539, %v1656
      %v1658 = vpop.f32.mrf.mxu0
      %1659 = vmatprep.mubr.f32.mxu0 0.0
      %1660 = vmatmul.mubr.f32.gmra.mxu0 %v1546
      %v1661 = vpop.f32.mrf.mxu0
      %v1662 = vadd.f32 %v1539, %v1661
      %v1663 = vpop.f32.mrf.mxu0
      %1664 = vmatprep.mubr.f32.mxu0 0.0
      %1665 = vmatmul.mubr.f32.gmra.mxu0 %v1549
      %v1666 = vpop.f32.mrf.mxu0
      %v1667 = vadd.f32 %v1539, %v1666
      %v1668 = vpop.f32.mrf.mxu0
      %1669 = vmatprep.mubr.f32.mxu0 0.0
      %1670 = vmatmul.mubr.f32.gmra.mxu0 %v1552
      %v1671 = vpop.f32.mrf.mxu0
      %v1672 = vadd.f32 %v1539, %v1671
      %v1673 = vpop.f32.mrf.mxu0
      %1674 = vmatprep.mubr.f32.mxu0 0.0
      %1675 = vmatmul.mubr.f32.gmra.mxu0 %v1555
      %v1676 = vpop.f32.mrf.mxu0
      %v1677 = vadd.f32 %v1539, %v1676
      %v1678 = vpop.f32.mrf.mxu0
      %1679 = vmatprep.mubr.f32.mxu0 0.0
      %1680 = vmatmul.mubr.f32.gmra.mxu0 %v1558
      %v1681 = vpop.f32.mrf.mxu0
      %v1682 = vadd.f32 %v1539, %v1681
      %v1683 = vpop.f32.mrf.mxu0
      %1684 = vmatprep.mubr.f32.mxu0 0.0
      %1685 = vmatmul.mubr.f32.gmra.mxu0 %v1561
      %v1686 = vpop.f32.mrf.mxu0
      %v1687 = vadd.f32 %v1539, %v1686
      %v1688 = vpop.f32.mrf.mxu0
      %1689 = vmatprep.mubr.f32.mxu0 0.0
      %1690 = vmatmul.mubr.f32.gmra.mxu0 %v1564
      %v1691 = vpop.f32.mrf.mxu0
      %v1692 = vadd.f32 %v1539, %v1691
      %v1693 = vpop.f32.mrf.mxu0
      %1694 = vmatprep.mubr.f32.mxu0 0.0
      %1695 = vmatmul.mubr.f32.gmra.mxu0 %v1567
      %v1696 = vpop.f32.mrf.mxu0
      %v1697 = vadd.f32 %v1539, %v1696
      %v1698 = vpop.f32.mrf.mxu0
      %1699 = vmatprep.mubr.f32.mxu0 0.0
      %1700 = vmatmul.mubr.f32.gmra.mxu0 %v1570
      %v1701 = vpop.f32.mrf.mxu0
      %v1702 = vadd.f32 %v1539, %v1701
      %v1703 = vpop.f32.mrf.mxu0
      %1704 = vmatprep.mubr.f32.mxu0 0.0
      %1705 = vmatmul.mubr.f32.gmra.mxu0 %v1573
      %v1706 = vpop.f32.mrf.mxu0
      %v1707 = vadd.f32 %v1539, %v1706
      %v1708 = vpop.f32.mrf.mxu0
      %1709 = vmatprep.mubr.f32.mxu0 0.0
      %1710 = vmatmul.mubr.f32.gmra.mxu0 %v1576
      %v1711 = vpop.f32.mrf.mxu0
      %v1712 = vadd.f32 %v1539, %v1711
      %v1713 = vpop.f32.mrf.mxu0
      %1714 = vmatprep.mubr.f32.mxu0 0.0
      %1715 = vmatmul.mubr.f32.gmra.mxu0 %v1579
      %v1716 = vpop.f32.mrf.mxu0
      %v1717 = vadd.f32 %v1539, %v1716
      %v1718 = vpop.f32.mrf.mxu0
      %1719 = vmatprep.mubr.f32.mxu0 0.0
      %1720 = vmatmul.mubr.f32.gmra.mxu0 %v1582
      %v1721 = vpop.f32.mrf.mxu0
      %v1722 = vadd.f32 %v1539, %v1721
      %v1723 = vpop.f32.mrf.mxu0
      %1724 = vmatprep.mubr.f32.mxu0 0.0
      %1725 = vmatmul.mubr.f32.gmra.mxu0 %v1585
      %v1726 = vpop.f32.mrf.mxu0
      %v1727 = vadd.f32 %v1539, %v1726
      %v1728 = vpop.f32.mrf.mxu0
      %1729 = vmatprep.mubr.f32.mxu0 0.0
      %1730 = vmatmul.mubr.f32.gmra.mxu0 %v1588
      %v1731 = vpop.f32.mrf.mxu0
      %v1732 = vadd.f32 %v1539, %v1731
      %v1733 = vpop.f32.mrf.mxu0
      %1734 = vdwg.mxu0
      %v1735 = vmul.f32 %v1657, 0.1
      %v1736 = vmul.f32 %v1662, 0.1
      %v1737 = vmul.f32 %v1667, 0.1
      %v1738 = vmul.f32 %v1672, 0.1
      %v1739 = vmul.f32 %v1677, 0.1
      %v1740 = vmul.f32 %v1682, 0.1
      %v1741 = vmul.f32 %v1687, 0.1
      %v1742 = vmul.f32 %v1692, 0.1
      %v1743 = vmul.f32 %v1697, 0.1
      %v1744 = vmul.f32 %v1702, 0.1
      %v1745 = vmul.f32 %v1707, 0.1
      %v1746 = vmul.f32 %v1712, 0.1
      %v1747 = vmul.f32 %v1717, 0.1
      %v1748 = vmul.f32 %v1722, 0.1
      %v1749 = vmul.f32 %v1727, 0.1
      %v1750 = vmul.f32 %v1732, 0.1
      %v1751 = vmax.f32 %v1657, %v1735
      %v1752 = vmax.f32 %v1662, %v1736
      %v1753 = vmax.f32 %v1667, %v1737
      %v1754 = vmax.f32 %v1672, %v1738
      %v1755 = vmax.f32 %v1677, %v1739
      %v1756 = vmax.f32 %v1682, %v1740
      %v1757 = vmax.f32 %v1687, %v1741
      %v1758 = vmax.f32 %v1692, %v1742
      %v1759 = vmax.f32 %v1697, %v1743
      %v1760 = vmax.f32 %v1702, %v1744
      %v1761 = vmax.f32 %v1707, %v1745
      %v1762 = vmax.f32 %v1712, %v1746
      %v1763 = vmax.f32 %v1717, %v1747
      %v1764 = vmax.f32 %v1722, %v1748
      %v1765 = vmax.f32 %v1727, %v1749
      %v1766 = vmax.f32 %v1732, %v1750
      %1783 = vrot.lane.b32.xlu0 %v1462, 120
      %v1784 = vpop.permute.xlu0 %1783
      %1785 = vrot.lane.b32.xlu0 %v1463, 120
      %v1786 = vpop.permute.xlu0 %1785
      %1787 = vrot.lane.b32.xlu0 %v1464, 120
      %v1788 = vpop.permute.xlu0 %1787
      %1789 = vrot.lane.b32.xlu0 %v1465, 120
      %v1790 = vpop.permute.xlu0 %1789
      %1791 = vrot.lane.b32.xlu0 %v1466, 120
      %v1792 = vpop.permute.xlu0 %1791
      %1793 = vrot.lane.b32.xlu0 %v1467, 120
      %v1794 = vpop.permute.xlu0 %1793
      %1795 = vrot.lane.b32.xlu0 %v1468, 120
      %v1796 = vpop.permute.xlu0 %1795
      %1797 = vrot.lane.b32.xlu0 %v1469, 120
      %v1798 = vpop.permute.xlu0 %1797
      %1799 = vrot.lane.b32.xlu0 %v1470, 120
      %v1800 = vpop.permute.xlu0 %1799
      %1801 = vrot.lane.b32.xlu0 %v1471, 120
      %v1802 = vpop.permute.xlu0 %1801
      %1803 = vrot.lane.b32.xlu0 %v1472, 120
      %v1804 = vpop.permute.xlu0 %1803
      %1805 = vrot.lane.b32.xlu0 %v1473, 120
      %v1806 = vpop.permute.xlu0 %1805
      %1807 = vrot.lane.b32.xlu0 %v1474, 120
      %v1808 = vpop.permute.xlu0 %1807
      %1809 = vrot.lane.b32.xlu0 %v1475, 120
      %v1810 = vpop.permute.xlu0 %1809
      %1811 = vrot.lane.b32.xlu0 %v1476, 120
      %v1812 = vpop.permute.xlu0 %1811
      %1813 = vrot.lane.b32.xlu0 %v1477, 120
      %v1814 = vpop.permute.xlu0 %1813
      %v1831 = vadd.f32 %v1751, %v1784
      %v1832 = vadd.f32 %v1752, %v1786
      %v1833 = vadd.f32 %v1753, %v1788
      %v1834 = vadd.f32 %v1754, %v1790
      %v1835 = vadd.f32 %v1755, %v1792
      %v1836 = vadd.f32 %v1756, %v1794
      %v1837 = vadd.f32 %v1757, %v1796
      %v1838 = vadd.f32 %v1758, %v1798
      %v1839 = vadd.f32 %v1759, %v1800
      %v1840 = vadd.f32 %v1760, %v1802
      %v1841 = vadd.f32 %v1761, %v1804
      %v1842 = vadd.f32 %v1762, %v1806
      %v1843 = vadd.f32 %v1763, %v1808
      %v1844 = vadd.f32 %v1764, %v1810
      %v1845 = vadd.f32 %v1765, %v1812
      %v1846 = vadd.f32 %v1766, %v1814
      %1847 = vst.msk [vmem:[%s365] sm:$0xff] %vm1541, %v1831
      %1848 = vst.msk [vmem:[%s365 + $0x8] sm:$0xff] %vm1541, %v1832
      %1849 = vst.msk [vmem:[%s365 + $0x10] sm:$0xff] %vm1541, %v1833
      %1850 = vst.msk [vmem:[%s365 + $0x18] sm:$0xff] %vm1541, %v1834
      %1851 = vst.msk [vmem:[%s365 + $0x20] sm:$0xff] %vm1541, %v1835
      %1852 = vst.msk [vmem:[%s365 + $0x28] sm:$0xff] %vm1541, %v1836
      %1853 = vst.msk [vmem:[%s365 + $0x30] sm:$0xff] %vm1541, %v1837
      %1854 = vst.msk [vmem:[%s365 + $0x38] sm:$0xff] %vm1541, %v1838
      %1855 = vst.msk [vmem:[%s365 + $0x40] sm:$0xff] %vm1541, %v1839
      %1856 = vst.msk [vmem:[%s365 + $0x48] sm:$0xff] %vm1541, %v1840
      %1857 = vst.msk [vmem:[%s365 + $0x50] sm:$0xff] %vm1541, %v1841
      %1858 = vst.msk [vmem:[%s365 + $0x58] sm:$0xff] %vm1541, %v1842
      %1859 = vst.msk [vmem:[%s365 + $0x60] sm:$0xff] %vm1541, %v1843
      %1860 = vst.msk [vmem:[%s365 + $0x68] sm:$0xff] %vm1541, %v1844
      %1861 = vst.msk [vmem:[%s365 + $0x70] sm:$0xff] %vm1541, %v1845
      %1862 = vst.msk [vmem:[%s365 + $0x78] sm:$0xff] %vm1541, %v1846
      %s1863 = smul.u32 16, %s22
      %p1864 = scmp.lt.s32.totalorder %s21, 1
      %s1865 = scalar_select %p1864, %s21, 1
      %p1866 = scmp.lt.s32.totalorder %s1863, 31
      %s1867 = scalar_select %p1866, %s1863, 31
      %s1868 = smul.addr %s1865, 32
      %s1869 = sadd.s32 %s1867, %s1868
      %s1870 = smul.addr %s1869, 8
      %s1871 = scalar_lea.vmem %s6, %s1870
      // Predicated region
      $region45: #{tpu_custom_call.1} parent=43 // pred_check
        %p1872 = pneg %p193
      $region46: #{tpu_custom_call.1} parent=43 // pred_check_branch
        %1874 = sbr.rel (%p1872) target = $region48
      $region47: #{tpu_custom_call.1} parent=43 // pred_region
        %s1875 = smul.u32 16, %s22
      $region48: #{tpu_custom_call.1} parent=43 // pred_fallthru
        _
    $region44: #{tpu_custom_call.1} parent=5 // pred_fallthru
      _
    %p1876 = scmp.le.s32.totalorder 2, %s12
    // Predicated region
    $region49: #{tpu_custom_call.1} parent=5 // pred_check
      %p1877 = pneg %p1876
    $region50: #{tpu_custom_call.1} parent=5 // pred_check_branch
      %1879 = sbr.rel (%p1877) target = $region52
    $region51: #{tpu_custom_call.1} parent=5 // pred_region
      %s1880 = ssub.s32 %s12, 2
      // Predicated region
      $region53: #{tpu_custom_call.1} parent=51 // pred_check
        %p1881 = pneg %p199
      $region54: #{tpu_custom_call.1} parent=51 // pred_check_branch
        %1883 = sbr.rel (%p1881) target = $region56
      $region55: #{tpu_custom_call.1} parent=51 // pred_region
        %s1884 = smul.u32 16, %s24
        %p1885 = scmp.lt.s32.totalorder %s23, 1
        %s1886 = scalar_select %p1885, %s23, 1
        %p1887 = scmp.lt.s32.totalorder %s1884, 31
        %s1888 = scalar_select %p1887, %s1884, 31
        %s1889 = smul.addr %s1886, 32
        %s1890 = sadd.s32 %s1888, %s1889
        %s1891 = smul.addr %s1890, 8
        %s1892 = scalar_lea.vmem %s6, %s1891
      $region56: #{tpu_custom_call.1} parent=51 // pred_fallthru
        _
    $region52: #{tpu_custom_call.1} parent=5 // pred_fallthru
      _
  $region6: #{tpu_custom_call.1} parent=0 // loop_footer
    %s16 = sadd.s32 1, %s12
  $region7: #{tpu_custom_call.1} parent=0 // loop_footer_branch
    %11 = sbr.rel target = $region3
  $region8: #{tpu_custom_call.1} parent=0 // loop_exit
    _

</llo_original>
